<compile_context>
chip_gen: v7x
topology: tpu7x:2x2x1
jax: 0.10.0
libtpu: 0.0.40
codegen_flags: <defaults>
</compile_context>

<pallas_src>
import jax
import jax.numpy as jnp
from jax import lax
from jax.experimental import pallas as pl
from jax.experimental.pallas import tpu as pltpu

PAD = 4  # max half-kernel over all convs (1x9 / 9x1 need padding 4)

# order of parameters inside the flat SMEM buffer
PARAM_ORDER = [
    "w33", "b33", "a11",
    "w19", "b19", "a12",
    "w91", "b91",
    "w51", "b51", "a2",
    "w15", "b15",
    "acat",
    "w11", "b11",
    "aout",
]


def _round_up(v, m):
    return (v + m - 1) // m * m


def _flatten_params(params):
    parts, offs, off = [], {}, 0
    for k in PARAM_ORDER:
        v = jnp.asarray(params[k], jnp.float32).reshape(-1)
        offs[k] = off
        off += int(v.shape[0])
        parts.append(v)
    return jnp.concatenate(parts), offs


def _make_kernel(H, W, NB, Hr, L, offs):
    P = PAD
    Wp = W + 2 * P

    def kernel(theta_ref, x_ref, o_ref):
        t = theta_ref  # flat parameter buffer in SMEM (cheap scalar reads)

        # Interior mask: 1 inside each image's HxW window, 0 in halos / lane padding.
        # Built once per grid step; all convs reuse it.
        row = lax.broadcasted_iota(jnp.int32, (Hr, L), 0)
        lane = lax.broadcasted_iota(jnp.int32, (Hr, L), 1)
        row_ok = (row >= P) & (row < P + H)
        lane_ok = (lane >= P) & (lane < P + W)
        for n in range(1, NB):
            lo = n * Wp + P
            lane_ok = lane_ok | ((lane >= lo) & (lane < lo + W))
        mask = row_ok & lane_ok

        def conv_bn(chans, wk, bk, cin, cout, kh, kw, remask=True):
            # "same" conv with folded-BN bias. Each tap = static lane/sublane rotation
            # (XLU slot, otherwise idle) of the register-resident slab + scalar
            # multiply-add on the VPU.  Rolls are hoisted: one row roll per (ci, i),
            # one lane roll per (ci, i, j), shared across all output channels.
            w0, b0 = offs[wk], offs[bk]
            ph, pw = (kh - 1) // 2, (kw - 1) // 2
            acc = [jnp.zeros((Hr, L), jnp.float32) for _ in range(cout)]
            for ci in range(cin):
                for i in range(kh):
                    di = i - ph
                    zr = chans[ci]
                    if di % Hr:
                        zr = pltpu.roll(zr, shift=(-di) % Hr, axis=0)
                    for j in range(kw):
                        dj = j - pw
                        s = zr
                        if dj % L:
                            s = pltpu.roll(s, shift=(-dj) % L, axis=1)
                        for co in range(cout):
                            widx = w0 + ((co * cin + ci) * kh + i) * kw + j
                            acc[co] = acc[co] + t[widx] * s
            if remask:
                # Add bias on the interior only; keep the zero halo intact so the
                # next conv's taps read correct "same"-padding zeros.
                return [jnp.where(mask, acc[co] + t[b0 + co], 0.0) for co in range(cout)]
            # Last conv of the block: halos are stripped by the wrapper, skip the select.
            return [acc[co] + t[b0 + co] for co in range(cout)]

        def prelu(chans, ak):
            # Zero halos stay zero through PReLU, so no re-masking needed here.
            a0 = offs[ak]
            return [jnp.where(c >= 0, c, t[a0 + i] * c) for i, c in enumerate(chans)]

        ident = [x_ref[0, c] for c in range(2)]  # halos already zero (wrapper-padded)

        # path1: conv3x3 -> PReLU -> conv[1,9] -> PReLU -> conv[9,1]
        p = conv_bn(ident, "w33", "b33", 2, 2, 3, 3)
        p = prelu(p, "a11")
        p = conv_bn(p, "w19", "b19", 2, 2, 1, 9)
        p = prelu(p, "a12")
        out1 = conv_bn(p, "w91", "b91", 2, 2, 9, 1)

        # path2: conv[5,1] -> PReLU -> conv[1,5]
        q = conv_bn(ident, "w51", "b51", 2, 2, 5, 1)
        q = prelu(q, "a2")
        out2 = conv_bn(q, "w15", "b15", 2, 2, 1, 5)

        # concat (channel list), PReLU(4), 1x1 conv, residual add, PReLU(2)
        cat = prelu(out1 + out2, "acat")
        out = conv_bn(cat, "w11", "b11", 4, 2, 1, 1, remask=False)
        out = [out[c] + ident[c] for c in range(2)]
        out = prelu(out, "aout")

        o_ref[0, 0] = out[0]
        o_ref[0, 1] = out[1]

    return kernel


def crblock_pallas(x, params, num_chunks=1):
    # num_chunks=1 packs the whole batch into one grid step (best for v5e/v6e at small N);
    # use num_chunks=2 on v7x so both TensorCores get a parallel grid step.
    N, C, H, W = x.shape
    assert C == 2 and N % num_chunks == 0
    NB = N // num_chunks
    P = PAD
    Hp, Wp = H + 2 * P, W + 2 * P
    Hr = _round_up(Hp, 8)          # sublane-aligned row count
    Lv = NB * Wp                   # valid packed lanes
    L = _round_up(Lv, 128)         # lane-aligned (full-lane loads / unmasked stores)

    theta, offs = _flatten_params(params)

    # Pack (layout plumbing only): (N,C,H,W) -> zero-padded per-image stripes on the lane axis.
    xp = jnp.pad(x.astype(jnp.float32), ((0, 0), (0, 0), (P, P + Hr - Hp), (P, P)))
    xp = xp.reshape(num_chunks, NB, C, Hr, Wp).transpose(0, 2, 3, 1, 4)
    xp = xp.reshape(num_chunks, C, Hr, Lv)
    xp = jnp.pad(xp, ((0, 0), (0, 0), (0, 0), (0, L - Lv)))

    kernel = _make_kernel(H, W, NB, Hr, L, offs)

    op = pl.pallas_call(
        kernel,
        out_shape=jax.ShapeDtypeStruct((num_chunks, C, Hr, L), jnp.float32),
        grid=(num_chunks,),
        in_specs=[
            pl.BlockSpec(memory_space=pltpu.MemorySpace.SMEM),        # flat params
            pl.BlockSpec((1, C, Hr, L), lambda g: (g, 0, 0, 0)),       # packed input
        ],
        out_specs=pl.BlockSpec((1, C, Hr, L), lambda g: (g, 0, 0, 0)),
        compiler_params=pltpu.CompilerParams(dimension_semantics=("parallel",)),
    )(theta, xp)

    # Unpack: strip halos / lane padding and restore (N, C, H, W).
    op = op[:, :, :, :Lv].reshape(num_chunks, C, Hr, NB, Wp)
    out = op[:, :, P:P + H, :, P:P + W].transpose(0, 3, 1, 2, 4)
    return out.reshape(N, C, H, W)


# ----------------------------- parameter setup -----------------------------

def init_convbn(key, cout, cin, kh, kw):
    k1, k2, k3, k4, k5 = jax.random.split(key, 5)
    fan_in = cin * kh * kw
    w = jax.random.normal(k1, (cout, cin, kh, kw), jnp.float32) / jnp.sqrt(fan_in)
    gamma = 1.0 + 0.1 * jax.random.normal(k2, (cout,), jnp.float32)
    beta = 0.1 * jax.random.normal(k3, (cout,), jnp.float32)
    mean = 0.1 * jax.random.normal(k4, (cout,), jnp.float32)
    var = 1.0 + 0.1 * jnp.abs(jax.random.normal(k5, (cout,), jnp.float32))
    return {"w": w, "gamma": gamma, "beta": beta, "mean": mean, "var": var}


def fold_bn(cb, eps=1e-5):
    scale = cb["gamma"] / jnp.sqrt(cb["var"] + eps)
    w_f = cb["w"] * scale[:, None, None, None]
    b_f = cb["beta"] - cb["mean"] * scale
    return w_f.reshape(-1), b_f


# --------------------------- pure-JAX reference ----------------------------

def conv_bn_ref(x, cb, pad, eps=1e-5):
    y = lax.conv_general_dilated(
        x, cb["w"], (1, 1), [(pad[0], pad[0]), (pad[1], pad[1])],
        dimension_numbers=("NCHW", "OIHW", "NCHW"))
    scale = cb["gamma"] / jnp.sqrt(cb["var"] + eps)
    bias = cb["beta"] - cb["mean"] * scale
    return y * scale[None, :, None, None] + bias[None, :, None, None]


def prelu_ref(x, a):
    return jnp.where(x >= 0, x, a[None, :, None, None] * x)


def crblock_ref(x, P):
    identity = x
    o = conv_bn_ref(x, P["conv3x3"], (1, 1))
    o = prelu_ref(o, P["a11"])
    o = conv_bn_ref(o, P["conv1x9"], (0, 4))
    o = prelu_ref(o, P["a12"])
    out1 = conv_bn_ref(o, P["conv9x1"], (4, 0))
    q = conv_bn_ref(x, P["conv5x1"], (2, 0))
    q = prelu_ref(q, P["a2"])
    out2 = conv_bn_ref(q, P["conv1x5"], (0, 2))
    out = jnp.concatenate([out1, out2], axis=1)
    out = prelu_ref(out, P["acat"])
    out = conv_bn_ref(out, P["conv1x1"], (0, 0))
    out = prelu_ref(out + identity, P["aout"])
    return out


# ---------------------------------- main -----------------------------------

if __name__ == "__main__":
    key = jax.random.PRNGKey(0)
    N, C, H, W = 2, 2, 16, 16
    kx, k1, k2, k3, k4, k5, k6 = jax.random.split(key, 7)
    x = jax.random.normal(kx, (N, C, H, W), jnp.float32)

    # TODO(synk): BatchNorm is implemented in eval mode (folded affine); PyTorch
    # training-mode batch statistics are not reproduced.
    P = {
        "conv3x3": init_convbn(k1, 2, 2, 3, 3),
        "conv1x9": init_convbn(k2, 2, 2, 1, 9),
        "conv9x1": init_convbn(k3, 2, 2, 9, 1),
        "conv5x1": init_convbn(k4, 2, 2, 5, 1),   # PyTorch path2 'conv1x5': kernel [5, 1]
        "conv1x5": init_convbn(k5, 2, 2, 1, 5),   # PyTorch path2 'conv5x1': kernel [1, 5]
        "conv1x1": init_convbn(k6, 2, 4, 1, 1),
        "a11": jnp.full((2,), 0.3, jnp.float32),
        "a12": jnp.full((2,), 0.3, jnp.float32),
        "a2": jnp.full((2,), 0.3, jnp.float32),
        "acat": jnp.full((4,), 0.3, jnp.float32),
        "aout": jnp.full((2,), 0.3, jnp.float32),
    }

    params = {}
    params["w33"], params["b33"] = fold_bn(P["conv3x3"])
    params["a11"] = P["a11"]
    params["w19"], params["b19"] = fold_bn(P["conv1x9"])
    params["a12"] = P["a12"]
    params["w91"], params["b91"] = fold_bn(P["conv9x1"])
    params["w51"], params["b51"] = fold_bn(P["conv5x1"])
    params["a2"] = P["a2"]
    params["w15"], params["b15"] = fold_bn(P["conv1x5"])
    params["acat"] = P["acat"]
    params["w11"], params["b11"] = fold_bn(P["conv1x1"])
    params["aout"] = P["aout"]

    out = jax.block_until_ready(crblock_pallas(x, params, num_chunks=1))

    ref = crblock_ref(x, P)
    err = float(jnp.max(jnp.abs(out - ref)))
    assert jnp.allclose(out, ref, atol=1e-4, rtol=1e-4), f"max abs err = {err}"

    print("KERNEL_OK")
</pallas_src>

<mosaic_0001>
module attributes {stable_mosaic.version = 11 : i64} {
  func.func @kernel(%arg0: i32, %arg1: memref<180xf32, #tpu.memory_space<smem>>, %arg2: memref<1x2x24x128xf32, #tpu.memory_space<vmem>>, %arg3: memref<1x2x24x128xf32, #tpu.memory_space<vmem>>) attributes {dimension_semantics = [#tpu.dimension_semantics<parallel>], iteration_bounds = array<i64: 1>, scalar_prefetch = 0 : i64, scratch_operands = 0 : i64, tpu.core_type = #tpu.core_type<tc>, window_params = [{transform_indices = @transform_0, window_bounds = array<i64: 180>}, {transform_indices = @transform_1, window_bounds = array<i64: 1, 2, 24, 128>}, {transform_indices = @transform_2, window_bounds = array<i64: 1, 2, 24, 128>}]} {
    %0 = tpu.iota {dimensions = array<i32: 0>} : vector<24x128xi32>
    %1 = tpu.iota {dimensions = array<i32: 1>} : vector<24x128xi32>
    %c4_i32 = arith.constant 4 : i32
    %2 = vector.broadcast %c4_i32 : i32 to vector<24x128xi32>
    %3 = arith.cmpi sge, %0, %2 : vector<24x128xi32>
    %c20_i32 = arith.constant 20 : i32
    %4 = vector.broadcast %c20_i32 : i32 to vector<24x128xi32>
    %5 = arith.cmpi slt, %0, %4 : vector<24x128xi32>
    %6 = arith.andi %3, %5 : vector<24x128xi1>
    %c4_i32_0 = arith.constant 4 : i32
    %7 = vector.broadcast %c4_i32_0 : i32 to vector<24x128xi32>
    %8 = arith.cmpi sge, %1, %7 : vector<24x128xi32>
    %c20_i32_1 = arith.constant 20 : i32
    %9 = vector.broadcast %c20_i32_1 : i32 to vector<24x128xi32>
    %10 = arith.cmpi slt, %1, %9 : vector<24x128xi32>
    %11 = arith.andi %8, %10 : vector<24x128xi1>
    %c28_i32 = arith.constant 28 : i32
    %12 = vector.broadcast %c28_i32 : i32 to vector<24x128xi32>
    %13 = arith.cmpi sge, %1, %12 : vector<24x128xi32>
    %c44_i32 = arith.constant 44 : i32
    %14 = vector.broadcast %c44_i32 : i32 to vector<24x128xi32>
    %15 = arith.cmpi slt, %1, %14 : vector<24x128xi32>
    %16 = arith.andi %13, %15 : vector<24x128xi1>
    %17 = arith.ori %11, %16 : vector<24x128xi1>
    %18 = arith.andi %6, %17 : vector<24x128xi1>
    %c0 = arith.constant 0 : index
    %c0_2 = arith.constant 0 : index
    %c0_3 = arith.constant 0 : index
    %c0_4 = arith.constant 0 : index
    %19 = vector.load %arg2[%c0, %c0_2, %c0_3, %c0_4] : memref<1x2x24x128xf32, #tpu.memory_space<vmem>>, vector<1x1x24x128xf32>
    %20 = vector.shape_cast %19 : vector<1x1x24x128xf32> to vector<24x128xf32>
    %c0_5 = arith.constant 0 : index
    %c1 = arith.constant 1 : index
    %c0_6 = arith.constant 0 : index
    %c0_7 = arith.constant 0 : index
    %21 = vector.load %arg2[%c0_5, %c1, %c0_6, %c0_7] : memref<1x2x24x128xf32, #tpu.memory_space<vmem>>, vector<1x1x24x128xf32>
    %22 = vector.shape_cast %21 : vector<1x1x24x128xf32> to vector<24x128xf32>
    %cst = arith.constant 0.000000e+00 : f32
    %23 = vector.broadcast %cst : f32 to vector<24x128xf32>
    %cst_8 = arith.constant 0.000000e+00 : f32
    %24 = vector.broadcast %cst_8 : f32 to vector<24x128xf32>
    %c1_i32 = arith.constant 1 : i32
    %25 = tpu.dynamic_rotate %20 by %c1_i32 dim 0 : vector<24x128xf32>, i32 -> vector<24x128xf32>
    %c1_i32_9 = arith.constant 1 : i32
    %26 = tpu.dynamic_rotate %25 by %c1_i32_9 dim 1 : vector<24x128xf32>, i32 -> vector<24x128xf32>
    %c0_10 = arith.constant 0 : index
    %27 = memref.load %arg1[%c0_10] : memref<180xf32, #tpu.memory_space<smem>>
    %28 = vector.broadcast %27 : f32 to vector<24x128xf32>
    %29 = arith.mulf %28, %26 : vector<24x128xf32>
    %30 = arith.addf %23, %29 : vector<24x128xf32>
    %c18 = arith.constant 18 : index
    %31 = memref.load %arg1[%c18] : memref<180xf32, #tpu.memory_space<smem>>
    %32 = vector.broadcast %31 : f32 to vector<24x128xf32>
    %33 = arith.mulf %32, %26 : vector<24x128xf32>
    %34 = arith.addf %24, %33 : vector<24x128xf32>
    %c1_11 = arith.constant 1 : index
    %35 = memref.load %arg1[%c1_11] : memref<180xf32, #tpu.memory_space<smem>>
    %36 = vector.broadcast %35 : f32 to vector<24x128xf32>
    %37 = arith.mulf %36, %25 : vector<24x128xf32>
    %38 = arith.addf %30, %37 : vector<24x128xf32>
    %c19 = arith.constant 19 : index
    %39 = memref.load %arg1[%c19] : memref<180xf32, #tpu.memory_space<smem>>
    %40 = vector.broadcast %39 : f32 to vector<24x128xf32>
    %41 = arith.mulf %40, %25 : vector<24x128xf32>
    %42 = arith.addf %34, %41 : vector<24x128xf32>
    %c127_i32 = arith.constant 127 : i32
    %43 = tpu.dynamic_rotate %25 by %c127_i32 dim 1 : vector<24x128xf32>, i32 -> vector<24x128xf32>
    %c2 = arith.constant 2 : index
    %44 = memref.load %arg1[%c2] : memref<180xf32, #tpu.memory_space<smem>>
    %45 = vector.broadcast %44 : f32 to vector<24x128xf32>
    %46 = arith.mulf %45, %43 : vector<24x128xf32>
    %47 = arith.addf %38, %46 : vector<24x128xf32>
    %c20 = arith.constant 20 : index
    %48 = memref.load %arg1[%c20] : memref<180xf32, #tpu.memory_space<smem>>
    %49 = vector.broadcast %48 : f32 to vector<24x128xf32>
    %50 = arith.mulf %49, %43 : vector<24x128xf32>
    %51 = arith.addf %42, %50 : vector<24x128xf32>
    %c1_i32_12 = arith.constant 1 : i32
    %52 = tpu.dynamic_rotate %20 by %c1_i32_12 dim 1 : vector<24x128xf32>, i32 -> vector<24x128xf32>
    %c3 = arith.constant 3 : index
    %53 = memref.load %arg1[%c3] : memref<180xf32, #tpu.memory_space<smem>>
    %54 = vector.broadcast %53 : f32 to vector<24x128xf32>
    %55 = arith.mulf %54, %52 : vector<24x128xf32>
    %56 = arith.addf %47, %55 : vector<24x128xf32>
    %c21 = arith.constant 21 : index
    %57 = memref.load %arg1[%c21] : memref<180xf32, #tpu.memory_space<smem>>
    %58 = vector.broadcast %57 : f32 to vector<24x128xf32>
    %59 = arith.mulf %58, %52 : vector<24x128xf32>
    %60 = arith.addf %51, %59 : vector<24x128xf32>
    %c4 = arith.constant 4 : index
    %61 = memref.load %arg1[%c4] : memref<180xf32, #tpu.memory_space<smem>>
    %62 = vector.broadcast %61 : f32 to vector<24x128xf32>
    %63 = arith.mulf %62, %20 : vector<24x128xf32>
    %64 = arith.addf %56, %63 : vector<24x128xf32>
    %c22 = arith.constant 22 : index
    %65 = memref.load %arg1[%c22] : memref<180xf32, #tpu.memory_space<smem>>
    %66 = vector.broadcast %65 : f32 to vector<24x128xf32>
    %67 = arith.mulf %66, %20 : vector<24x128xf32>
    %68 = arith.addf %60, %67 : vector<24x128xf32>
    %c127_i32_13 = arith.constant 127 : i32
    %69 = tpu.dynamic_rotate %20 by %c127_i32_13 dim 1 : vector<24x128xf32>, i32 -> vector<24x128xf32>
    %c5 = arith.constant 5 : index
    %70 = memref.load %arg1[%c5] : memref<180xf32, #tpu.memory_space<smem>>
    %71 = vector.broadcast %70 : f32 to vector<24x128xf32>
    %72 = arith.mulf %71, %69 : vector<24x128xf32>
    %73 = arith.addf %64, %72 : vector<24x128xf32>
    %c23 = arith.constant 23 : index
    %74 = memref.load %arg1[%c23] : memref<180xf32, #tpu.memory_space<smem>>
    %75 = vector.broadcast %74 : f32 to vector<24x128xf32>
    %76 = arith.mulf %75, %69 : vector<24x128xf32>
    %77 = arith.addf %68, %76 : vector<24x128xf32>
    %c23_i32 = arith.constant 23 : i32
    %78 = tpu.dynamic_rotate %20 by %c23_i32 dim 0 : vector<24x128xf32>, i32 -> vector<24x128xf32>
    %c1_i32_14 = arith.constant 1 : i32
    %79 = tpu.dynamic_rotate %78 by %c1_i32_14 dim 1 : vector<24x128xf32>, i32 -> vector<24x128xf32>
    %c6 = arith.constant 6 : index
    %80 = memref.load %arg1[%c6] : memref<180xf32, #tpu.memory_space<smem>>
    %81 = vector.broadcast %80 : f32 to vector<24x128xf32>
    %82 = arith.mulf %81, %79 : vector<24x128xf32>
    %83 = arith.addf %73, %82 : vector<24x128xf32>
    %c24 = arith.constant 24 : index
    %84 = memref.load %arg1[%c24] : memref<180xf32, #tpu.memory_space<smem>>
    %85 = vector.broadcast %84 : f32 to vector<24x128xf32>
    %86 = arith.mulf %85, %79 : vector<24x128xf32>
    %87 = arith.addf %77, %86 : vector<24x128xf32>
    %c7 = arith.constant 7 : index
    %88 = memref.load %arg1[%c7] : memref<180xf32, #tpu.memory_space<smem>>
    %89 = vector.broadcast %88 : f32 to vector<24x128xf32>
    %90 = arith.mulf %89, %78 : vector<24x128xf32>
    %91 = arith.addf %83, %90 : vector<24x128xf32>
    %c25 = arith.constant 25 : index
    %92 = memref.load %arg1[%c25] : memref<180xf32, #tpu.memory_space<smem>>
    %93 = vector.broadcast %92 : f32 to vector<24x128xf32>
    %94 = arith.mulf %93, %78 : vector<24x128xf32>
    %95 = arith.addf %87, %94 : vector<24x128xf32>
    %c127_i32_15 = arith.constant 127 : i32
    %96 = tpu.dynamic_rotate %78 by %c127_i32_15 dim 1 : vector<24x128xf32>, i32 -> vector<24x128xf32>
    %c8 = arith.constant 8 : index
    %97 = memref.load %arg1[%c8] : memref<180xf32, #tpu.memory_space<smem>>
    %98 = vector.broadcast %97 : f32 to vector<24x128xf32>
    %99 = arith.mulf %98, %96 : vector<24x128xf32>
    %100 = arith.addf %91, %99 : vector<24x128xf32>
    %c26 = arith.constant 26 : index
    %101 = memref.load %arg1[%c26] : memref<180xf32, #tpu.memory_space<smem>>
    %102 = vector.broadcast %101 : f32 to vector<24x128xf32>
    %103 = arith.mulf %102, %96 : vector<24x128xf32>
    %104 = arith.addf %95, %103 : vector<24x128xf32>
    %c1_i32_16 = arith.constant 1 : i32
    %105 = tpu.dynamic_rotate %22 by %c1_i32_16 dim 0 : vector<24x128xf32>, i32 -> vector<24x128xf32>
    %c1_i32_17 = arith.constant 1 : i32
    %106 = tpu.dynamic_rotate %105 by %c1_i32_17 dim 1 : vector<24x128xf32>, i32 -> vector<24x128xf32>
    %c9 = arith.constant 9 : index
    %107 = memref.load %arg1[%c9] : memref<180xf32, #tpu.memory_space<smem>>
    %108 = vector.broadcast %107 : f32 to vector<24x128xf32>
    %109 = arith.mulf %108, %106 : vector<24x128xf32>
    %110 = arith.addf %100, %109 : vector<24x128xf32>
    %c27 = arith.constant 27 : index
    %111 = memref.load %arg1[%c27] : memref<180xf32, #tpu.memory_space<smem>>
    %112 = vector.broadcast %111 : f32 to vector<24x128xf32>
    %113 = arith.mulf %112, %106 : vector<24x128xf32>
    %114 = arith.addf %104, %113 : vector<24x128xf32>
    %c10 = arith.constant 10 : index
    %115 = memref.load %arg1[%c10] : memref<180xf32, #tpu.memory_space<smem>>
    %116 = vector.broadcast %115 : f32 to vector<24x128xf32>
    %117 = arith.mulf %116, %105 : vector<24x128xf32>
    %118 = arith.addf %110, %117 : vector<24x128xf32>
    %c28 = arith.constant 28 : index
    %119 = memref.load %arg1[%c28] : memref<180xf32, #tpu.memory_space<smem>>
    %120 = vector.broadcast %119 : f32 to vector<24x128xf32>
    %121 = arith.mulf %120, %105 : vector<24x128xf32>
    %122 = arith.addf %114, %121 : vector<24x128xf32>
    %c127_i32_18 = arith.constant 127 : i32
    %123 = tpu.dynamic_rotate %105 by %c127_i32_18 dim 1 : vector<24x128xf32>, i32 -> vector<24x128xf32>
    %c11 = arith.constant 11 : index
    %124 = memref.load %arg1[%c11] : memref<180xf32, #tpu.memory_space<smem>>
    %125 = vector.broadcast %124 : f32 to vector<24x128xf32>
    %126 = arith.mulf %125, %123 : vector<24x128xf32>
    %127 = arith.addf %118, %126 : vector<24x128xf32>
    %c29 = arith.constant 29 : index
    %128 = memref.load %arg1[%c29] : memref<180xf32, #tpu.memory_space<smem>>
    %129 = vector.broadcast %128 : f32 to vector<24x128xf32>
    %130 = arith.mulf %129, %123 : vector<24x128xf32>
    %131 = arith.addf %122, %130 : vector<24x128xf32>
    %c1_i32_19 = arith.constant 1 : i32
    %132 = tpu.dynamic_rotate %22 by %c1_i32_19 dim 1 : vector<24x128xf32>, i32 -> vector<24x128xf32>
    %c12 = arith.constant 12 : index
    %133 = memref.load %arg1[%c12] : memref<180xf32, #tpu.memory_space<smem>>
    %134 = vector.broadcast %133 : f32 to vector<24x128xf32>
    %135 = arith.mulf %134, %132 : vector<24x128xf32>
    %136 = arith.addf %127, %135 : vector<24x128xf32>
    %c30 = arith.constant 30 : index
    %137 = memref.load %arg1[%c30] : memref<180xf32, #tpu.memory_space<smem>>
    %138 = vector.broadcast %137 : f32 to vector<24x128xf32>
    %139 = arith.mulf %138, %132 : vector<24x128xf32>
    %140 = arith.addf %131, %139 : vector<24x128xf32>
    %c13 = arith.constant 13 : index
    %141 = memref.load %arg1[%c13] : memref<180xf32, #tpu.memory_space<smem>>
    %142 = vector.broadcast %141 : f32 to vector<24x128xf32>
    %143 = arith.mulf %142, %22 : vector<24x128xf32>
    %144 = arith.addf %136, %143 : vector<24x128xf32>
    %c31 = arith.constant 31 : index
    %145 = memref.load %arg1[%c31] : memref<180xf32, #tpu.memory_space<smem>>
    %146 = vector.broadcast %145 : f32 to vector<24x128xf32>
    %147 = arith.mulf %146, %22 : vector<24x128xf32>
    %148 = arith.addf %140, %147 : vector<24x128xf32>
    %c127_i32_20 = arith.constant 127 : i32
    %149 = tpu.dynamic_rotate %22 by %c127_i32_20 dim 1 : vector<24x128xf32>, i32 -> vector<24x128xf32>
    %c14 = arith.constant 14 : index
    %150 = memref.load %arg1[%c14] : memref<180xf32, #tpu.memory_space<smem>>
    %151 = vector.broadcast %150 : f32 to vector<24x128xf32>
    %152 = arith.mulf %151, %149 : vector<24x128xf32>
    %153 = arith.addf %144, %152 : vector<24x128xf32>
    %c32 = arith.constant 32 : index
    %154 = memref.load %arg1[%c32] : memref<180xf32, #tpu.memory_space<smem>>
    %155 = vector.broadcast %154 : f32 to vector<24x128xf32>
    %156 = arith.mulf %155, %149 : vector<24x128xf32>
    %157 = arith.addf %148, %156 : vector<24x128xf32>
    %c23_i32_21 = arith.constant 23 : i32
    %158 = tpu.dynamic_rotate %22 by %c23_i32_21 dim 0 : vector<24x128xf32>, i32 -> vector<24x128xf32>
    %c1_i32_22 = arith.constant 1 : i32
    %159 = tpu.dynamic_rotate %158 by %c1_i32_22 dim 1 : vector<24x128xf32>, i32 -> vector<24x128xf32>
    %c15 = arith.constant 15 : index
    %160 = memref.load %arg1[%c15] : memref<180xf32, #tpu.memory_space<smem>>
    %161 = vector.broadcast %160 : f32 to vector<24x128xf32>
    %162 = arith.mulf %161, %159 : vector<24x128xf32>
    %163 = arith.addf %153, %162 : vector<24x128xf32>
    %c33 = arith.constant 33 : index
    %164 = memref.load %arg1[%c33] : memref<180xf32, #tpu.memory_space<smem>>
    %165 = vector.broadcast %164 : f32 to vector<24x128xf32>
    %166 = arith.mulf %165, %159 : vector<24x128xf32>
    %167 = arith.addf %157, %166 : vector<24x128xf32>
    %c16 = arith.constant 16 : index
    %168 = memref.load %arg1[%c16] : memref<180xf32, #tpu.memory_space<smem>>
    %169 = vector.broadcast %168 : f32 to vector<24x128xf32>
    %170 = arith.mulf %169, %158 : vector<24x128xf32>
    %171 = arith.addf %163, %170 : vector<24x128xf32>
    %c34 = arith.constant 34 : index
    %172 = memref.load %arg1[%c34] : memref<180xf32, #tpu.memory_space<smem>>
    %173 = vector.broadcast %172 : f32 to vector<24x128xf32>
    %174 = arith.mulf %173, %158 : vector<24x128xf32>
    %175 = arith.addf %167, %174 : vector<24x128xf32>
    %c127_i32_23 = arith.constant 127 : i32
    %176 = tpu.dynamic_rotate %158 by %c127_i32_23 dim 1 : vector<24x128xf32>, i32 -> vector<24x128xf32>
    %c17 = arith.constant 17 : index
    %177 = memref.load %arg1[%c17] : memref<180xf32, #tpu.memory_space<smem>>
    %178 = vector.broadcast %177 : f32 to vector<24x128xf32>
    %179 = arith.mulf %178, %176 : vector<24x128xf32>
    %180 = arith.addf %171, %179 : vector<24x128xf32>
    %c35 = arith.constant 35 : index
    %181 = memref.load %arg1[%c35] : memref<180xf32, #tpu.memory_space<smem>>
    %182 = vector.broadcast %181 : f32 to vector<24x128xf32>
    %183 = arith.mulf %182, %176 : vector<24x128xf32>
    %184 = arith.addf %175, %183 : vector<24x128xf32>
    %c36 = arith.constant 36 : index
    %185 = memref.load %arg1[%c36] : memref<180xf32, #tpu.memory_space<smem>>
    %186 = vector.broadcast %185 : f32 to vector<24x128xf32>
    %187 = arith.addf %180, %186 : vector<24x128xf32>
    %cst_24 = arith.constant 0.000000e+00 : f32
    %188 = vector.broadcast %cst_24 : f32 to vector<24x128xf32>
    %189 = arith.select %18, %187, %188 : vector<24x128xi1>, vector<24x128xf32>
    %c37 = arith.constant 37 : index
    %190 = memref.load %arg1[%c37] : memref<180xf32, #tpu.memory_space<smem>>
    %191 = vector.broadcast %190 : f32 to vector<24x128xf32>
    %192 = arith.addf %184, %191 : vector<24x128xf32>
    %cst_25 = arith.constant 0.000000e+00 : f32
    %193 = vector.broadcast %cst_25 : f32 to vector<24x128xf32>
    %194 = arith.select %18, %192, %193 : vector<24x128xi1>, vector<24x128xf32>
    %cst_26 = arith.constant 0.000000e+00 : f32
    %195 = vector.broadcast %cst_26 : f32 to vector<24x128xf32>
    %196 = arith.cmpf oge, %189, %195 : vector<24x128xf32>
    %c38 = arith.constant 38 : index
    %197 = memref.load %arg1[%c38] : memref<180xf32, #tpu.memory_space<smem>>
    %198 = vector.broadcast %197 : f32 to vector<24x128xf32>
    %199 = arith.mulf %198, %189 : vector<24x128xf32>
    %200 = arith.select %196, %189, %199 : vector<24x128xi1>, vector<24x128xf32>
    %cst_27 = arith.constant 0.000000e+00 : f32
    %201 = vector.broadcast %cst_27 : f32 to vector<24x128xf32>
    %202 = arith.cmpf oge, %194, %201 : vector<24x128xf32>
    %c39 = arith.constant 39 : index
    %203 = memref.load %arg1[%c39] : memref<180xf32, #tpu.memory_space<smem>>
    %204 = vector.broadcast %203 : f32 to vector<24x128xf32>
    %205 = arith.mulf %204, %194 : vector<24x128xf32>
    %206 = arith.select %202, %194, %205 : vector<24x128xi1>, vector<24x128xf32>
    %cst_28 = arith.constant 0.000000e+00 : f32
    %207 = vector.broadcast %cst_28 : f32 to vector<24x128xf32>
    %cst_29 = arith.constant 0.000000e+00 : f32
    %208 = vector.broadcast %cst_29 : f32 to vector<24x128xf32>
    %c4_i32_30 = arith.constant 4 : i32
    %209 = tpu.dynamic_rotate %200 by %c4_i32_30 dim 1 : vector<24x128xf32>, i32 -> vector<24x128xf32>
    %c40 = arith.constant 40 : index
    %210 = memref.load %arg1[%c40] : memref<180xf32, #tpu.memory_space<smem>>
    %211 = vector.broadcast %210 : f32 to vector<24x128xf32>
    %212 = arith.mulf %211, %209 : vector<24x128xf32>
    %213 = arith.addf %207, %212 : vector<24x128xf32>
    %c58 = arith.constant 58 : index
    %214 = memref.load %arg1[%c58] : memref<180xf32, #tpu.memory_space<smem>>
    %215 = vector.broadcast %214 : f32 to vector<24x128xf32>
    %216 = arith.mulf %215, %209 : vector<24x128xf32>
    %217 = arith.addf %208, %216 : vector<24x128xf32>
    %c3_i32 = arith.constant 3 : i32
    %218 = tpu.dynamic_rotate %200 by %c3_i32 dim 1 : vector<24x128xf32>, i32 -> vector<24x128xf32>
    %c41 = arith.constant 41 : index
    %219 = memref.load %arg1[%c41] : memref<180xf32, #tpu.memory_space<smem>>
    %220 = vector.broadcast %219 : f32 to vector<24x128xf32>
    %221 = arith.mulf %220, %218 : vector<24x128xf32>
    %222 = arith.addf %213, %221 : vector<24x128xf32>
    %c59 = arith.constant 59 : index
    %223 = memref.load %arg1[%c59] : memref<180xf32, #tpu.memory_space<smem>>
    %224 = vector.broadcast %223 : f32 to vector<24x128xf32>
    %225 = arith.mulf %224, %218 : vector<24x128xf32>
    %226 = arith.addf %217, %225 : vector<24x128xf32>
    %c2_i32 = arith.constant 2 : i32
    %227 = tpu.dynamic_rotate %200 by %c2_i32 dim 1 : vector<24x128xf32>, i32 -> vector<24x128xf32>
    %c42 = arith.constant 42 : index
    %228 = memref.load %arg1[%c42] : memref<180xf32, #tpu.memory_space<smem>>
    %229 = vector.broadcast %228 : f32 to vector<24x128xf32>
    %230 = arith.mulf %229, %227 : vector<24x128xf32>
    %231 = arith.addf %222, %230 : vector<24x128xf32>
    %c60 = arith.constant 60 : index
    %232 = memref.load %arg1[%c60] : memref<180xf32, #tpu.memory_space<smem>>
    %233 = vector.broadcast %232 : f32 to vector<24x128xf32>
    %234 = arith.mulf %233, %227 : vector<24x128xf32>
    %235 = arith.addf %226, %234 : vector<24x128xf32>
    %c1_i32_31 = arith.constant 1 : i32
    %236 = tpu.dynamic_rotate %200 by %c1_i32_31 dim 1 : vector<24x128xf32>, i32 -> vector<24x128xf32>
    %c43 = arith.constant 43 : index
    %237 = memref.load %arg1[%c43] : memref<180xf32, #tpu.memory_space<smem>>
    %238 = vector.broadcast %237 : f32 to vector<24x128xf32>
    %239 = arith.mulf %238, %236 : vector<24x128xf32>
    %240 = arith.addf %231, %239 : vector<24x128xf32>
    %c61 = arith.constant 61 : index
    %241 = memref.load %arg1[%c61] : memref<180xf32, #tpu.memory_space<smem>>
    %242 = vector.broadcast %241 : f32 to vector<24x128xf32>
    %243 = arith.mulf %242, %236 : vector<24x128xf32>
    %244 = arith.addf %235, %243 : vector<24x128xf32>
    %c44 = arith.constant 44 : index
    %245 = memref.load %arg1[%c44] : memref<180xf32, #tpu.memory_space<smem>>
    %246 = vector.broadcast %245 : f32 to vector<24x128xf32>
    %247 = arith.mulf %246, %200 : vector<24x128xf32>
    %248 = arith.addf %240, %247 : vector<24x128xf32>
    %c62 = arith.constant 62 : index
    %249 = memref.load %arg1[%c62] : memref<180xf32, #tpu.memory_space<smem>>
    %250 = vector.broadcast %249 : f32 to vector<24x128xf32>
    %251 = arith.mulf %250, %200 : vector<24x128xf32>
    %252 = arith.addf %244, %251 : vector<24x128xf32>
    %c127_i32_32 = arith.constant 127 : i32
    %253 = tpu.dynamic_rotate %200 by %c127_i32_32 dim 1 : vector<24x128xf32>, i32 -> vector<24x128xf32>
    %c45 = arith.constant 45 : index
    %254 = memref.load %arg1[%c45] : memref<180xf32, #tpu.memory_space<smem>>
    %255 = vector.broadcast %254 : f32 to vector<24x128xf32>
    %256 = arith.mulf %255, %253 : vector<24x128xf32>
    %257 = arith.addf %248, %256 : vector<24x128xf32>
    %c63 = arith.constant 63 : index
    %258 = memref.load %arg1[%c63] : memref<180xf32, #tpu.memory_space<smem>>
    %259 = vector.broadcast %258 : f32 to vector<24x128xf32>
    %260 = arith.mulf %259, %253 : vector<24x128xf32>
    %261 = arith.addf %252, %260 : vector<24x128xf32>
    %c126_i32 = arith.constant 126 : i32
    %262 = tpu.dynamic_rotate %200 by %c126_i32 dim 1 : vector<24x128xf32>, i32 -> vector<24x128xf32>
    %c46 = arith.constant 46 : index
    %263 = memref.load %arg1[%c46] : memref<180xf32, #tpu.memory_space<smem>>
    %264 = vector.broadcast %263 : f32 to vector<24x128xf32>
    %265 = arith.mulf %264, %262 : vector<24x128xf32>
    %266 = arith.addf %257, %265 : vector<24x128xf32>
    %c64 = arith.constant 64 : index
    %267 = memref.load %arg1[%c64] : memref<180xf32, #tpu.memory_space<smem>>
    %268 = vector.broadcast %267 : f32 to vector<24x128xf32>
    %269 = arith.mulf %268, %262 : vector<24x128xf32>
    %270 = arith.addf %261, %269 : vector<24x128xf32>
    %c125_i32 = arith.constant 125 : i32
    %271 = tpu.dynamic_rotate %200 by %c125_i32 dim 1 : vector<24x128xf32>, i32 -> vector<24x128xf32>
    %c47 = arith.constant 47 : index
    %272 = memref.load %arg1[%c47] : memref<180xf32, #tpu.memory_space<smem>>
    %273 = vector.broadcast %272 : f32 to vector<24x128xf32>
    %274 = arith.mulf %273, %271 : vector<24x128xf32>
    %275 = arith.addf %266, %274 : vector<24x128xf32>
    %c65 = arith.constant 65 : index
    %276 = memref.load %arg1[%c65] : memref<180xf32, #tpu.memory_space<smem>>
    %277 = vector.broadcast %276 : f32 to vector<24x128xf32>
    %278 = arith.mulf %277, %271 : vector<24x128xf32>
    %279 = arith.addf %270, %278 : vector<24x128xf32>
    %c124_i32 = arith.constant 124 : i32
    %280 = tpu.dynamic_rotate %200 by %c124_i32 dim 1 : vector<24x128xf32>, i32 -> vector<24x128xf32>
    %c48 = arith.constant 48 : index
    %281 = memref.load %arg1[%c48] : memref<180xf32, #tpu.memory_space<smem>>
    %282 = vector.broadcast %281 : f32 to vector<24x128xf32>
    %283 = arith.mulf %282, %280 : vector<24x128xf32>
    %284 = arith.addf %275, %283 : vector<24x128xf32>
    %c66 = arith.constant 66 : index
    %285 = memref.load %arg1[%c66] : memref<180xf32, #tpu.memory_space<smem>>
    %286 = vector.broadcast %285 : f32 to vector<24x128xf32>
    %287 = arith.mulf %286, %280 : vector<24x128xf32>
    %288 = arith.addf %279, %287 : vector<24x128xf32>
    %c4_i32_33 = arith.constant 4 : i32
    %289 = tpu.dynamic_rotate %206 by %c4_i32_33 dim 1 : vector<24x128xf32>, i32 -> vector<24x128xf32>
    %c49 = arith.constant 49 : index
    %290 = memref.load %arg1[%c49] : memref<180xf32, #tpu.memory_space<smem>>
    %291 = vector.broadcast %290 : f32 to vector<24x128xf32>
    %292 = arith.mulf %291, %289 : vector<24x128xf32>
    %293 = arith.addf %284, %292 : vector<24x128xf32>
    %c67 = arith.constant 67 : index
    %294 = memref.load %arg1[%c67] : memref<180xf32, #tpu.memory_space<smem>>
    %295 = vector.broadcast %294 : f32 to vector<24x128xf32>
    %296 = arith.mulf %295, %289 : vector<24x128xf32>
    %297 = arith.addf %288, %296 : vector<24x128xf32>
    %c3_i32_34 = arith.constant 3 : i32
    %298 = tpu.dynamic_rotate %206 by %c3_i32_34 dim 1 : vector<24x128xf32>, i32 -> vector<24x128xf32>
    %c50 = arith.constant 50 : index
    %299 = memref.load %arg1[%c50] : memref<180xf32, #tpu.memory_space<smem>>
    %300 = vector.broadcast %299 : f32 to vector<24x128xf32>
    %301 = arith.mulf %300, %298 : vector<24x128xf32>
    %302 = arith.addf %293, %301 : vector<24x128xf32>
    %c68 = arith.constant 68 : index
    %303 = memref.load %arg1[%c68] : memref<180xf32, #tpu.memory_space<smem>>
    %304 = vector.broadcast %303 : f32 to vector<24x128xf32>
    %305 = arith.mulf %304, %298 : vector<24x128xf32>
    %306 = arith.addf %297, %305 : vector<24x128xf32>
    %c2_i32_35 = arith.constant 2 : i32
    %307 = tpu.dynamic_rotate %206 by %c2_i32_35 dim 1 : vector<24x128xf32>, i32 -> vector<24x128xf32>
    %c51 = arith.constant 51 : index
    %308 = memref.load %arg1[%c51] : memref<180xf32, #tpu.memory_space<smem>>
    %309 = vector.broadcast %308 : f32 to vector<24x128xf32>
    %310 = arith.mulf %309, %307 : vector<24x128xf32>
    %311 = arith.addf %302, %310 : vector<24x128xf32>
    %c69 = arith.constant 69 : index
    %312 = memref.load %arg1[%c69] : memref<180xf32, #tpu.memory_space<smem>>
    %313 = vector.broadcast %312 : f32 to vector<24x128xf32>
    %314 = arith.mulf %313, %307 : vector<24x128xf32>
    %315 = arith.addf %306, %314 : vector<24x128xf32>
    %c1_i32_36 = arith.constant 1 : i32
    %316 = tpu.dynamic_rotate %206 by %c1_i32_36 dim 1 : vector<24x128xf32>, i32 -> vector<24x128xf32>
    %c52 = arith.constant 52 : index
    %317 = memref.load %arg1[%c52] : memref<180xf32, #tpu.memory_space<smem>>
    %318 = vector.broadcast %317 : f32 to vector<24x128xf32>
    %319 = arith.mulf %318, %316 : vector<24x128xf32>
    %320 = arith.addf %311, %319 : vector<24x128xf32>
    %c70 = arith.constant 70 : index
    %321 = memref.load %arg1[%c70] : memref<180xf32, #tpu.memory_space<smem>>
    %322 = vector.broadcast %321 : f32 to vector<24x128xf32>
    %323 = arith.mulf %322, %316 : vector<24x128xf32>
    %324 = arith.addf %315, %323 : vector<24x128xf32>
    %c53 = arith.constant 53 : index
    %325 = memref.load %arg1[%c53] : memref<180xf32, #tpu.memory_space<smem>>
    %326 = vector.broadcast %325 : f32 to vector<24x128xf32>
    %327 = arith.mulf %326, %206 : vector<24x128xf32>
    %328 = arith.addf %320, %327 : vector<24x128xf32>
    %c71 = arith.constant 71 : index
    %329 = memref.load %arg1[%c71] : memref<180xf32, #tpu.memory_space<smem>>
    %330 = vector.broadcast %329 : f32 to vector<24x128xf32>
    %331 = arith.mulf %330, %206 : vector<24x128xf32>
    %332 = arith.addf %324, %331 : vector<24x128xf32>
    %c127_i32_37 = arith.constant 127 : i32
    %333 = tpu.dynamic_rotate %206 by %c127_i32_37 dim 1 : vector<24x128xf32>, i32 -> vector<24x128xf32>
    %c54 = arith.constant 54 : index
    %334 = memref.load %arg1[%c54] : memref<180xf32, #tpu.memory_space<smem>>
    %335 = vector.broadcast %334 : f32 to vector<24x128xf32>
    %336 = arith.mulf %335, %333 : vector<24x128xf32>
    %337 = arith.addf %328, %336 : vector<24x128xf32>
    %c72 = arith.constant 72 : index
    %338 = memref.load %arg1[%c72] : memref<180xf32, #tpu.memory_space<smem>>
    %339 = vector.broadcast %338 : f32 to vector<24x128xf32>
    %340 = arith.mulf %339, %333 : vector<24x128xf32>
    %341 = arith.addf %332, %340 : vector<24x128xf32>
    %c126_i32_38 = arith.constant 126 : i32
    %342 = tpu.dynamic_rotate %206 by %c126_i32_38 dim 1 : vector<24x128xf32>, i32 -> vector<24x128xf32>
    %c55 = arith.constant 55 : index
    %343 = memref.load %arg1[%c55] : memref<180xf32, #tpu.memory_space<smem>>
    %344 = vector.broadcast %343 : f32 to vector<24x128xf32>
    %345 = arith.mulf %344, %342 : vector<24x128xf32>
    %346 = arith.addf %337, %345 : vector<24x128xf32>
    %c73 = arith.constant 73 : index
    %347 = memref.load %arg1[%c73] : memref<180xf32, #tpu.memory_space<smem>>
    %348 = vector.broadcast %347 : f32 to vector<24x128xf32>
    %349 = arith.mulf %348, %342 : vector<24x128xf32>
    %350 = arith.addf %341, %349 : vector<24x128xf32>
    %c125_i32_39 = arith.constant 125 : i32
    %351 = tpu.dynamic_rotate %206 by %c125_i32_39 dim 1 : vector<24x128xf32>, i32 -> vector<24x128xf32>
    %c56 = arith.constant 56 : index
    %352 = memref.load %arg1[%c56] : memref<180xf32, #tpu.memory_space<smem>>
    %353 = vector.broadcast %352 : f32 to vector<24x128xf32>
    %354 = arith.mulf %353, %351 : vector<24x128xf32>
    %355 = arith.addf %346, %354 : vector<24x128xf32>
    %c74 = arith.constant 74 : index
    %356 = memref.load %arg1[%c74] : memref<180xf32, #tpu.memory_space<smem>>
    %357 = vector.broadcast %356 : f32 to vector<24x128xf32>
    %358 = arith.mulf %357, %351 : vector<24x128xf32>
    %359 = arith.addf %350, %358 : vector<24x128xf32>
    %c124_i32_40 = arith.constant 124 : i32
    %360 = tpu.dynamic_rotate %206 by %c124_i32_40 dim 1 : vector<24x128xf32>, i32 -> vector<24x128xf32>
    %c57 = arith.constant 57 : index
    %361 = memref.load %arg1[%c57] : memref<180xf32, #tpu.memory_space<smem>>
    %362 = vector.broadcast %361 : f32 to vector<24x128xf32>
    %363 = arith.mulf %362, %360 : vector<24x128xf32>
    %364 = arith.addf %355, %363 : vector<24x128xf32>
    %c75 = arith.constant 75 : index
    %365 = memref.load %arg1[%c75] : memref<180xf32, #tpu.memory_space<smem>>
    %366 = vector.broadcast %365 : f32 to vector<24x128xf32>
    %367 = arith.mulf %366, %360 : vector<24x128xf32>
    %368 = arith.addf %359, %367 : vector<24x128xf32>
    %c76 = arith.constant 76 : index
    %369 = memref.load %arg1[%c76] : memref<180xf32, #tpu.memory_space<smem>>
    %370 = vector.broadcast %369 : f32 to vector<24x128xf32>
    %371 = arith.addf %364, %370 : vector<24x128xf32>
    %cst_41 = arith.constant 0.000000e+00 : f32
    %372 = vector.broadcast %cst_41 : f32 to vector<24x128xf32>
    %373 = arith.select %18, %371, %372 : vector<24x128xi1>, vector<24x128xf32>
    %c77 = arith.constant 77 : index
    %374 = memref.load %arg1[%c77] : memref<180xf32, #tpu.memory_space<smem>>
    %375 = vector.broadcast %374 : f32 to vector<24x128xf32>
    %376 = arith.addf %368, %375 : vector<24x128xf32>
    %cst_42 = arith.constant 0.000000e+00 : f32
    %377 = vector.broadcast %cst_42 : f32 to vector<24x128xf32>
    %378 = arith.select %18, %376, %377 : vector<24x128xi1>, vector<24x128xf32>
    %cst_43 = arith.constant 0.000000e+00 : f32
    %379 = vector.broadcast %cst_43 : f32 to vector<24x128xf32>
    %380 = arith.cmpf oge, %373, %379 : vector<24x128xf32>
    %c78 = arith.constant 78 : index
    %381 = memref.load %arg1[%c78] : memref<180xf32, #tpu.memory_space<smem>>
    %382 = vector.broadcast %381 : f32 to vector<24x128xf32>
    %383 = arith.mulf %382, %373 : vector<24x128xf32>
    %384 = arith.select %380, %373, %383 : vector<24x128xi1>, vector<24x128xf32>
    %cst_44 = arith.constant 0.000000e+00 : f32
    %385 = vector.broadcast %cst_44 : f32 to vector<24x128xf32>
    %386 = arith.cmpf oge, %378, %385 : vector<24x128xf32>
    %c79 = arith.constant 79 : index
    %387 = memref.load %arg1[%c79] : memref<180xf32, #tpu.memory_space<smem>>
    %388 = vector.broadcast %387 : f32 to vector<24x128xf32>
    %389 = arith.mulf %388, %378 : vector<24x128xf32>
    %390 = arith.select %386, %378, %389 : vector<24x128xi1>, vector<24x128xf32>
    %cst_45 = arith.constant 0.000000e+00 : f32
    %391 = vector.broadcast %cst_45 : f32 to vector<24x128xf32>
    %cst_46 = arith.constant 0.000000e+00 : f32
    %392 = vector.broadcast %cst_46 : f32 to vector<24x128xf32>
    %c4_i32_47 = arith.constant 4 : i32
    %393 = tpu.dynamic_rotate %384 by %c4_i32_47 dim 0 : vector<24x128xf32>, i32 -> vector<24x128xf32>
    %c80 = arith.constant 80 : index
    %394 = memref.load %arg1[%c80] : memref<180xf32, #tpu.memory_space<smem>>
    %395 = vector.broadcast %394 : f32 to vector<24x128xf32>
    %396 = arith.mulf %395, %393 : vector<24x128xf32>
    %397 = arith.addf %391, %396 : vector<24x128xf32>
    %c98 = arith.constant 98 : index
    %398 = memref.load %arg1[%c98] : memref<180xf32, #tpu.memory_space<smem>>
    %399 = vector.broadcast %398 : f32 to vector<24x128xf32>
    %400 = arith.mulf %399, %393 : vector<24x128xf32>
    %401 = arith.addf %392, %400 : vector<24x128xf32>
    %c3_i32_48 = arith.constant 3 : i32
    %402 = tpu.dynamic_rotate %384 by %c3_i32_48 dim 0 : vector<24x128xf32>, i32 -> vector<24x128xf32>
    %c81 = arith.constant 81 : index
    %403 = memref.load %arg1[%c81] : memref<180xf32, #tpu.memory_space<smem>>
    %404 = vector.broadcast %403 : f32 to vector<24x128xf32>
    %405 = arith.mulf %404, %402 : vector<24x128xf32>
    %406 = arith.addf %397, %405 : vector<24x128xf32>
    %c99 = arith.constant 99 : index
    %407 = memref.load %arg1[%c99] : memref<180xf32, #tpu.memory_space<smem>>
    %408 = vector.broadcast %407 : f32 to vector<24x128xf32>
    %409 = arith.mulf %408, %402 : vector<24x128xf32>
    %410 = arith.addf %401, %409 : vector<24x128xf32>
    %c2_i32_49 = arith.constant 2 : i32
    %411 = tpu.dynamic_rotate %384 by %c2_i32_49 dim 0 : vector<24x128xf32>, i32 -> vector<24x128xf32>
    %c82 = arith.constant 82 : index
    %412 = memref.load %arg1[%c82] : memref<180xf32, #tpu.memory_space<smem>>
    %413 = vector.broadcast %412 : f32 to vector<24x128xf32>
    %414 = arith.mulf %413, %411 : vector<24x128xf32>
    %415 = arith.addf %406, %414 : vector<24x128xf32>
    %c100 = arith.constant 100 : index
    %416 = memref.load %arg1[%c100] : memref<180xf32, #tpu.memory_space<smem>>
    %417 = vector.broadcast %416 : f32 to vector<24x128xf32>
    %418 = arith.mulf %417, %411 : vector<24x128xf32>
    %419 = arith.addf %410, %418 : vector<24x128xf32>
    %c1_i32_50 = arith.constant 1 : i32
    %420 = tpu.dynamic_rotate %384 by %c1_i32_50 dim 0 : vector<24x128xf32>, i32 -> vector<24x128xf32>
    %c83 = arith.constant 83 : index
    %421 = memref.load %arg1[%c83] : memref<180xf32, #tpu.memory_space<smem>>
    %422 = vector.broadcast %421 : f32 to vector<24x128xf32>
    %423 = arith.mulf %422, %420 : vector<24x128xf32>
    %424 = arith.addf %415, %423 : vector<24x128xf32>
    %c101 = arith.constant 101 : index
    %425 = memref.load %arg1[%c101] : memref<180xf32, #tpu.memory_space<smem>>
    %426 = vector.broadcast %425 : f32 to vector<24x128xf32>
    %427 = arith.mulf %426, %420 : vector<24x128xf32>
    %428 = arith.addf %419, %427 : vector<24x128xf32>
    %c84 = arith.constant 84 : index
    %429 = memref.load %arg1[%c84] : memref<180xf32, #tpu.memory_space<smem>>
    %430 = vector.broadcast %429 : f32 to vector<24x128xf32>
    %431 = arith.mulf %430, %384 : vector<24x128xf32>
    %432 = arith.addf %424, %431 : vector<24x128xf32>
    %c102 = arith.constant 102 : index
    %433 = memref.load %arg1[%c102] : memref<180xf32, #tpu.memory_space<smem>>
    %434 = vector.broadcast %433 : f32 to vector<24x128xf32>
    %435 = arith.mulf %434, %384 : vector<24x128xf32>
    %436 = arith.addf %428, %435 : vector<24x128xf32>
    %c23_i32_51 = arith.constant 23 : i32
    %437 = tpu.dynamic_rotate %384 by %c23_i32_51 dim 0 : vector<24x128xf32>, i32 -> vector<24x128xf32>
    %c85 = arith.constant 85 : index
    %438 = memref.load %arg1[%c85] : memref<180xf32, #tpu.memory_space<smem>>
    %439 = vector.broadcast %438 : f32 to vector<24x128xf32>
    %440 = arith.mulf %439, %437 : vector<24x128xf32>
    %441 = arith.addf %432, %440 : vector<24x128xf32>
    %c103 = arith.constant 103 : index
    %442 = memref.load %arg1[%c103] : memref<180xf32, #tpu.memory_space<smem>>
    %443 = vector.broadcast %442 : f32 to vector<24x128xf32>
    %444 = arith.mulf %443, %437 : vector<24x128xf32>
    %445 = arith.addf %436, %444 : vector<24x128xf32>
    %c22_i32 = arith.constant 22 : i32
    %446 = tpu.dynamic_rotate %384 by %c22_i32 dim 0 : vector<24x128xf32>, i32 -> vector<24x128xf32>
    %c86 = arith.constant 86 : index
    %447 = memref.load %arg1[%c86] : memref<180xf32, #tpu.memory_space<smem>>
    %448 = vector.broadcast %447 : f32 to vector<24x128xf32>
    %449 = arith.mulf %448, %446 : vector<24x128xf32>
    %450 = arith.addf %441, %449 : vector<24x128xf32>
    %c104 = arith.constant 104 : index
    %451 = memref.load %arg1[%c104] : memref<180xf32, #tpu.memory_space<smem>>
    %452 = vector.broadcast %451 : f32 to vector<24x128xf32>
    %453 = arith.mulf %452, %446 : vector<24x128xf32>
    %454 = arith.addf %445, %453 : vector<24x128xf32>
    %c21_i32 = arith.constant 21 : i32
    %455 = tpu.dynamic_rotate %384 by %c21_i32 dim 0 : vector<24x128xf32>, i32 -> vector<24x128xf32>
    %c87 = arith.constant 87 : index
    %456 = memref.load %arg1[%c87] : memref<180xf32, #tpu.memory_space<smem>>
    %457 = vector.broadcast %456 : f32 to vector<24x128xf32>
    %458 = arith.mulf %457, %455 : vector<24x128xf32>
    %459 = arith.addf %450, %458 : vector<24x128xf32>
    %c105 = arith.constant 105 : index
    %460 = memref.load %arg1[%c105] : memref<180xf32, #tpu.memory_space<smem>>
    %461 = vector.broadcast %460 : f32 to vector<24x128xf32>
    %462 = arith.mulf %461, %455 : vector<24x128xf32>
    %463 = arith.addf %454, %462 : vector<24x128xf32>
    %c20_i32_52 = arith.constant 20 : i32
    %464 = tpu.dynamic_rotate %384 by %c20_i32_52 dim 0 : vector<24x128xf32>, i32 -> vector<24x128xf32>
    %c88 = arith.constant 88 : index
    %465 = memref.load %arg1[%c88] : memref<180xf32, #tpu.memory_space<smem>>
    %466 = vector.broadcast %465 : f32 to vector<24x128xf32>
    %467 = arith.mulf %466, %464 : vector<24x128xf32>
    %468 = arith.addf %459, %467 : vector<24x128xf32>
    %c106 = arith.constant 106 : index
    %469 = memref.load %arg1[%c106] : memref<180xf32, #tpu.memory_space<smem>>
    %470 = vector.broadcast %469 : f32 to vector<24x128xf32>
    %471 = arith.mulf %470, %464 : vector<24x128xf32>
    %472 = arith.addf %463, %471 : vector<24x128xf32>
    %c4_i32_53 = arith.constant 4 : i32
    %473 = tpu.dynamic_rotate %390 by %c4_i32_53 dim 0 : vector<24x128xf32>, i32 -> vector<24x128xf32>
    %c89 = arith.constant 89 : index
    %474 = memref.load %arg1[%c89] : memref<180xf32, #tpu.memory_space<smem>>
    %475 = vector.broadcast %474 : f32 to vector<24x128xf32>
    %476 = arith.mulf %475, %473 : vector<24x128xf32>
    %477 = arith.addf %468, %476 : vector<24x128xf32>
    %c107 = arith.constant 107 : index
    %478 = memref.load %arg1[%c107] : memref<180xf32, #tpu.memory_space<smem>>
    %479 = vector.broadcast %478 : f32 to vector<24x128xf32>
    %480 = arith.mulf %479, %473 : vector<24x128xf32>
    %481 = arith.addf %472, %480 : vector<24x128xf32>
    %c3_i32_54 = arith.constant 3 : i32
    %482 = tpu.dynamic_rotate %390 by %c3_i32_54 dim 0 : vector<24x128xf32>, i32 -> vector<24x128xf32>
    %c90 = arith.constant 90 : index
    %483 = memref.load %arg1[%c90] : memref<180xf32, #tpu.memory_space<smem>>
    %484 = vector.broadcast %483 : f32 to vector<24x128xf32>
    %485 = arith.mulf %484, %482 : vector<24x128xf32>
    %486 = arith.addf %477, %485 : vector<24x128xf32>
    %c108 = arith.constant 108 : index
    %487 = memref.load %arg1[%c108] : memref<180xf32, #tpu.memory_space<smem>>
    %488 = vector.broadcast %487 : f32 to vector<24x128xf32>
    %489 = arith.mulf %488, %482 : vector<24x128xf32>
    %490 = arith.addf %481, %489 : vector<24x128xf32>
    %c2_i32_55 = arith.constant 2 : i32
    %491 = tpu.dynamic_rotate %390 by %c2_i32_55 dim 0 : vector<24x128xf32>, i32 -> vector<24x128xf32>
    %c91 = arith.constant 91 : index
    %492 = memref.load %arg1[%c91] : memref<180xf32, #tpu.memory_space<smem>>
    %493 = vector.broadcast %492 : f32 to vector<24x128xf32>
    %494 = arith.mulf %493, %491 : vector<24x128xf32>
    %495 = arith.addf %486, %494 : vector<24x128xf32>
    %c109 = arith.constant 109 : index
    %496 = memref.load %arg1[%c109] : memref<180xf32, #tpu.memory_space<smem>>
    %497 = vector.broadcast %496 : f32 to vector<24x128xf32>
    %498 = arith.mulf %497, %491 : vector<24x128xf32>
    %499 = arith.addf %490, %498 : vector<24x128xf32>
    %c1_i32_56 = arith.constant 1 : i32
    %500 = tpu.dynamic_rotate %390 by %c1_i32_56 dim 0 : vector<24x128xf32>, i32 -> vector<24x128xf32>
    %c92 = arith.constant 92 : index
    %501 = memref.load %arg1[%c92] : memref<180xf32, #tpu.memory_space<smem>>
    %502 = vector.broadcast %501 : f32 to vector<24x128xf32>
    %503 = arith.mulf %502, %500 : vector<24x128xf32>
    %504 = arith.addf %495, %503 : vector<24x128xf32>
    %c110 = arith.constant 110 : index
    %505 = memref.load %arg1[%c110] : memref<180xf32, #tpu.memory_space<smem>>
    %506 = vector.broadcast %505 : f32 to vector<24x128xf32>
    %507 = arith.mulf %506, %500 : vector<24x128xf32>
    %508 = arith.addf %499, %507 : vector<24x128xf32>
    %c93 = arith.constant 93 : index
    %509 = memref.load %arg1[%c93] : memref<180xf32, #tpu.memory_space<smem>>
    %510 = vector.broadcast %509 : f32 to vector<24x128xf32>
    %511 = arith.mulf %510, %390 : vector<24x128xf32>
    %512 = arith.addf %504, %511 : vector<24x128xf32>
    %c111 = arith.constant 111 : index
    %513 = memref.load %arg1[%c111] : memref<180xf32, #tpu.memory_space<smem>>
    %514 = vector.broadcast %513 : f32 to vector<24x128xf32>
    %515 = arith.mulf %514, %390 : vector<24x128xf32>
    %516 = arith.addf %508, %515 : vector<24x128xf32>
    %c23_i32_57 = arith.constant 23 : i32
    %517 = tpu.dynamic_rotate %390 by %c23_i32_57 dim 0 : vector<24x128xf32>, i32 -> vector<24x128xf32>
    %c94 = arith.constant 94 : index
    %518 = memref.load %arg1[%c94] : memref<180xf32, #tpu.memory_space<smem>>
    %519 = vector.broadcast %518 : f32 to vector<24x128xf32>
    %520 = arith.mulf %519, %517 : vector<24x128xf32>
    %521 = arith.addf %512, %520 : vector<24x128xf32>
    %c112 = arith.constant 112 : index
    %522 = memref.load %arg1[%c112] : memref<180xf32, #tpu.memory_space<smem>>
    %523 = vector.broadcast %522 : f32 to vector<24x128xf32>
    %524 = arith.mulf %523, %517 : vector<24x128xf32>
    %525 = arith.addf %516, %524 : vector<24x128xf32>
    %c22_i32_58 = arith.constant 22 : i32
    %526 = tpu.dynamic_rotate %390 by %c22_i32_58 dim 0 : vector<24x128xf32>, i32 -> vector<24x128xf32>
    %c95 = arith.constant 95 : index
    %527 = memref.load %arg1[%c95] : memref<180xf32, #tpu.memory_space<smem>>
    %528 = vector.broadcast %527 : f32 to vector<24x128xf32>
    %529 = arith.mulf %528, %526 : vector<24x128xf32>
    %530 = arith.addf %521, %529 : vector<24x128xf32>
    %c113 = arith.constant 113 : index
    %531 = memref.load %arg1[%c113] : memref<180xf32, #tpu.memory_space<smem>>
    %532 = vector.broadcast %531 : f32 to vector<24x128xf32>
    %533 = arith.mulf %532, %526 : vector<24x128xf32>
    %534 = arith.addf %525, %533 : vector<24x128xf32>
    %c21_i32_59 = arith.constant 21 : i32
    %535 = tpu.dynamic_rotate %390 by %c21_i32_59 dim 0 : vector<24x128xf32>, i32 -> vector<24x128xf32>
    %c96 = arith.constant 96 : index
    %536 = memref.load %arg1[%c96] : memref<180xf32, #tpu.memory_space<smem>>
    %537 = vector.broadcast %536 : f32 to vector<24x128xf32>
    %538 = arith.mulf %537, %535 : vector<24x128xf32>
    %539 = arith.addf %530, %538 : vector<24x128xf32>
    %c114 = arith.constant 114 : index
    %540 = memref.load %arg1[%c114] : memref<180xf32, #tpu.memory_space<smem>>
    %541 = vector.broadcast %540 : f32 to vector<24x128xf32>
    %542 = arith.mulf %541, %535 : vector<24x128xf32>
    %543 = arith.addf %534, %542 : vector<24x128xf32>
    %c20_i32_60 = arith.constant 20 : i32
    %544 = tpu.dynamic_rotate %390 by %c20_i32_60 dim 0 : vector<24x128xf32>, i32 -> vector<24x128xf32>
    %c97 = arith.constant 97 : index
    %545 = memref.load %arg1[%c97] : memref<180xf32, #tpu.memory_space<smem>>
    %546 = vector.broadcast %545 : f32 to vector<24x128xf32>
    %547 = arith.mulf %546, %544 : vector<24x128xf32>
    %548 = arith.addf %539, %547 : vector<24x128xf32>
    %c115 = arith.constant 115 : index
    %549 = memref.load %arg1[%c115] : memref<180xf32, #tpu.memory_space<smem>>
    %550 = vector.broadcast %549 : f32 to vector<24x128xf32>
    %551 = arith.mulf %550, %544 : vector<24x128xf32>
    %552 = arith.addf %543, %551 : vector<24x128xf32>
    %c116 = arith.constant 116 : index
    %553 = memref.load %arg1[%c116] : memref<180xf32, #tpu.memory_space<smem>>
    %554 = vector.broadcast %553 : f32 to vector<24x128xf32>
    %555 = arith.addf %548, %554 : vector<24x128xf32>
    %cst_61 = arith.constant 0.000000e+00 : f32
    %556 = vector.broadcast %cst_61 : f32 to vector<24x128xf32>
    %557 = arith.select %18, %555, %556 : vector<24x128xi1>, vector<24x128xf32>
    %c117 = arith.constant 117 : index
    %558 = memref.load %arg1[%c117] : memref<180xf32, #tpu.memory_space<smem>>
    %559 = vector.broadcast %558 : f32 to vector<24x128xf32>
    %560 = arith.addf %552, %559 : vector<24x128xf32>
    %cst_62 = arith.constant 0.000000e+00 : f32
    %561 = vector.broadcast %cst_62 : f32 to vector<24x128xf32>
    %562 = arith.select %18, %560, %561 : vector<24x128xi1>, vector<24x128xf32>
    %cst_63 = arith.constant 0.000000e+00 : f32
    %563 = vector.broadcast %cst_63 : f32 to vector<24x128xf32>
    %cst_64 = arith.constant 0.000000e+00 : f32
    %564 = vector.broadcast %cst_64 : f32 to vector<24x128xf32>
    %c2_i32_65 = arith.constant 2 : i32
    %565 = tpu.dynamic_rotate %20 by %c2_i32_65 dim 0 : vector<24x128xf32>, i32 -> vector<24x128xf32>
    %c118 = arith.constant 118 : index
    %566 = memref.load %arg1[%c118] : memref<180xf32, #tpu.memory_space<smem>>
    %567 = vector.broadcast %566 : f32 to vector<24x128xf32>
    %568 = arith.mulf %567, %565 : vector<24x128xf32>
    %569 = arith.addf %563, %568 : vector<24x128xf32>
    %c128 = arith.constant 128 : index
    %570 = memref.load %arg1[%c128] : memref<180xf32, #tpu.memory_space<smem>>
    %571 = vector.broadcast %570 : f32 to vector<24x128xf32>
    %572 = arith.mulf %571, %565 : vector<24x128xf32>
    %573 = arith.addf %564, %572 : vector<24x128xf32>
    %c1_i32_66 = arith.constant 1 : i32
    %574 = tpu.dynamic_rotate %20 by %c1_i32_66 dim 0 : vector<24x128xf32>, i32 -> vector<24x128xf32>
    %c119 = arith.constant 119 : index
    %575 = memref.load %arg1[%c119] : memref<180xf32, #tpu.memory_space<smem>>
    %576 = vector.broadcast %575 : f32 to vector<24x128xf32>
    %577 = arith.mulf %576, %574 : vector<24x128xf32>
    %578 = arith.addf %569, %577 : vector<24x128xf32>
    %c129 = arith.constant 129 : index
    %579 = memref.load %arg1[%c129] : memref<180xf32, #tpu.memory_space<smem>>
    %580 = vector.broadcast %579 : f32 to vector<24x128xf32>
    %581 = arith.mulf %580, %574 : vector<24x128xf32>
    %582 = arith.addf %573, %581 : vector<24x128xf32>
    %c120 = arith.constant 120 : index
    %583 = memref.load %arg1[%c120] : memref<180xf32, #tpu.memory_space<smem>>
    %584 = vector.broadcast %583 : f32 to vector<24x128xf32>
    %585 = arith.mulf %584, %20 : vector<24x128xf32>
    %586 = arith.addf %578, %585 : vector<24x128xf32>
    %c130 = arith.constant 130 : index
    %587 = memref.load %arg1[%c130] : memref<180xf32, #tpu.memory_space<smem>>
    %588 = vector.broadcast %587 : f32 to vector<24x128xf32>
    %589 = arith.mulf %588, %20 : vector<24x128xf32>
    %590 = arith.addf %582, %589 : vector<24x128xf32>
    %c23_i32_67 = arith.constant 23 : i32
    %591 = tpu.dynamic_rotate %20 by %c23_i32_67 dim 0 : vector<24x128xf32>, i32 -> vector<24x128xf32>
    %c121 = arith.constant 121 : index
    %592 = memref.load %arg1[%c121] : memref<180xf32, #tpu.memory_space<smem>>
    %593 = vector.broadcast %592 : f32 to vector<24x128xf32>
    %594 = arith.mulf %593, %591 : vector<24x128xf32>
    %595 = arith.addf %586, %594 : vector<24x128xf32>
    %c131 = arith.constant 131 : index
    %596 = memref.load %arg1[%c131] : memref<180xf32, #tpu.memory_space<smem>>
    %597 = vector.broadcast %596 : f32 to vector<24x128xf32>
    %598 = arith.mulf %597, %591 : vector<24x128xf32>
    %599 = arith.addf %590, %598 : vector<24x128xf32>
    %c22_i32_68 = arith.constant 22 : i32
    %600 = tpu.dynamic_rotate %20 by %c22_i32_68 dim 0 : vector<24x128xf32>, i32 -> vector<24x128xf32>
    %c122 = arith.constant 122 : index
    %601 = memref.load %arg1[%c122] : memref<180xf32, #tpu.memory_space<smem>>
    %602 = vector.broadcast %601 : f32 to vector<24x128xf32>
    %603 = arith.mulf %602, %600 : vector<24x128xf32>
    %604 = arith.addf %595, %603 : vector<24x128xf32>
    %c132 = arith.constant 132 : index
    %605 = memref.load %arg1[%c132] : memref<180xf32, #tpu.memory_space<smem>>
    %606 = vector.broadcast %605 : f32 to vector<24x128xf32>
    %607 = arith.mulf %606, %600 : vector<24x128xf32>
    %608 = arith.addf %599, %607 : vector<24x128xf32>
    %c2_i32_69 = arith.constant 2 : i32
    %609 = tpu.dynamic_rotate %22 by %c2_i32_69 dim 0 : vector<24x128xf32>, i32 -> vector<24x128xf32>
    %c123 = arith.constant 123 : index
    %610 = memref.load %arg1[%c123] : memref<180xf32, #tpu.memory_space<smem>>
    %611 = vector.broadcast %610 : f32 to vector<24x128xf32>
    %612 = arith.mulf %611, %609 : vector<24x128xf32>
    %613 = arith.addf %604, %612 : vector<24x128xf32>
    %c133 = arith.constant 133 : index
    %614 = memref.load %arg1[%c133] : memref<180xf32, #tpu.memory_space<smem>>
    %615 = vector.broadcast %614 : f32 to vector<24x128xf32>
    %616 = arith.mulf %615, %609 : vector<24x128xf32>
    %617 = arith.addf %608, %616 : vector<24x128xf32>
    %c1_i32_70 = arith.constant 1 : i32
    %618 = tpu.dynamic_rotate %22 by %c1_i32_70 dim 0 : vector<24x128xf32>, i32 -> vector<24x128xf32>
    %c124 = arith.constant 124 : index
    %619 = memref.load %arg1[%c124] : memref<180xf32, #tpu.memory_space<smem>>
    %620 = vector.broadcast %619 : f32 to vector<24x128xf32>
    %621 = arith.mulf %620, %618 : vector<24x128xf32>
    %622 = arith.addf %613, %621 : vector<24x128xf32>
    %c134 = arith.constant 134 : index
    %623 = memref.load %arg1[%c134] : memref<180xf32, #tpu.memory_space<smem>>
    %624 = vector.broadcast %623 : f32 to vector<24x128xf32>
    %625 = arith.mulf %624, %618 : vector<24x128xf32>
    %626 = arith.addf %617, %625 : vector<24x128xf32>
    %c125 = arith.constant 125 : index
    %627 = memref.load %arg1[%c125] : memref<180xf32, #tpu.memory_space<smem>>
    %628 = vector.broadcast %627 : f32 to vector<24x128xf32>
    %629 = arith.mulf %628, %22 : vector<24x128xf32>
    %630 = arith.addf %622, %629 : vector<24x128xf32>
    %c135 = arith.constant 135 : index
    %631 = memref.load %arg1[%c135] : memref<180xf32, #tpu.memory_space<smem>>
    %632 = vector.broadcast %631 : f32 to vector<24x128xf32>
    %633 = arith.mulf %632, %22 : vector<24x128xf32>
    %634 = arith.addf %626, %633 : vector<24x128xf32>
    %c23_i32_71 = arith.constant 23 : i32
    %635 = tpu.dynamic_rotate %22 by %c23_i32_71 dim 0 : vector<24x128xf32>, i32 -> vector<24x128xf32>
    %c126 = arith.constant 126 : index
    %636 = memref.load %arg1[%c126] : memref<180xf32, #tpu.memory_space<smem>>
    %637 = vector.broadcast %636 : f32 to vector<24x128xf32>
    %638 = arith.mulf %637, %635 : vector<24x128xf32>
    %639 = arith.addf %630, %638 : vector<24x128xf32>
    %c136 = arith.constant 136 : index
    %640 = memref.load %arg1[%c136] : memref<180xf32, #tpu.memory_space<smem>>
    %641 = vector.broadcast %640 : f32 to vector<24x128xf32>
    %642 = arith.mulf %641, %635 : vector<24x128xf32>
    %643 = arith.addf %634, %642 : vector<24x128xf32>
    %c22_i32_72 = arith.constant 22 : i32
    %644 = tpu.dynamic_rotate %22 by %c22_i32_72 dim 0 : vector<24x128xf32>, i32 -> vector<24x128xf32>
    %c127 = arith.constant 127 : index
    %645 = memref.load %arg1[%c127] : memref<180xf32, #tpu.memory_space<smem>>
    %646 = vector.broadcast %645 : f32 to vector<24x128xf32>
    %647 = arith.mulf %646, %644 : vector<24x128xf32>
    %648 = arith.addf %639, %647 : vector<24x128xf32>
    %c137 = arith.constant 137 : index
    %649 = memref.load %arg1[%c137] : memref<180xf32, #tpu.memory_space<smem>>
    %650 = vector.broadcast %649 : f32 to vector<24x128xf32>
    %651 = arith.mulf %650, %644 : vector<24x128xf32>
    %652 = arith.addf %643, %651 : vector<24x128xf32>
    %c138 = arith.constant 138 : index
    %653 = memref.load %arg1[%c138] : memref<180xf32, #tpu.memory_space<smem>>
    %654 = vector.broadcast %653 : f32 to vector<24x128xf32>
    %655 = arith.addf %648, %654 : vector<24x128xf32>
    %cst_73 = arith.constant 0.000000e+00 : f32
    %656 = vector.broadcast %cst_73 : f32 to vector<24x128xf32>
    %657 = arith.select %18, %655, %656 : vector<24x128xi1>, vector<24x128xf32>
    %c139 = arith.constant 139 : index
    %658 = memref.load %arg1[%c139] : memref<180xf32, #tpu.memory_space<smem>>
    %659 = vector.broadcast %658 : f32 to vector<24x128xf32>
    %660 = arith.addf %652, %659 : vector<24x128xf32>
    %cst_74 = arith.constant 0.000000e+00 : f32
    %661 = vector.broadcast %cst_74 : f32 to vector<24x128xf32>
    %662 = arith.select %18, %660, %661 : vector<24x128xi1>, vector<24x128xf32>
    %cst_75 = arith.constant 0.000000e+00 : f32
    %663 = vector.broadcast %cst_75 : f32 to vector<24x128xf32>
    %664 = arith.cmpf oge, %657, %663 : vector<24x128xf32>
    %c140 = arith.constant 140 : index
    %665 = memref.load %arg1[%c140] : memref<180xf32, #tpu.memory_space<smem>>
    %666 = vector.broadcast %665 : f32 to vector<24x128xf32>
    %667 = arith.mulf %666, %657 : vector<24x128xf32>
    %668 = arith.select %664, %657, %667 : vector<24x128xi1>, vector<24x128xf32>
    %cst_76 = arith.constant 0.000000e+00 : f32
    %669 = vector.broadcast %cst_76 : f32 to vector<24x128xf32>
    %670 = arith.cmpf oge, %662, %669 : vector<24x128xf32>
    %c141 = arith.constant 141 : index
    %671 = memref.load %arg1[%c141] : memref<180xf32, #tpu.memory_space<smem>>
    %672 = vector.broadcast %671 : f32 to vector<24x128xf32>
    %673 = arith.mulf %672, %662 : vector<24x128xf32>
    %674 = arith.select %670, %662, %673 : vector<24x128xi1>, vector<24x128xf32>
    %cst_77 = arith.constant 0.000000e+00 : f32
    %675 = vector.broadcast %cst_77 : f32 to vector<24x128xf32>
    %cst_78 = arith.constant 0.000000e+00 : f32
    %676 = vector.broadcast %cst_78 : f32 to vector<24x128xf32>
    %c2_i32_79 = arith.constant 2 : i32
    %677 = tpu.dynamic_rotate %668 by %c2_i32_79 dim 1 : vector<24x128xf32>, i32 -> vector<24x128xf32>
    %c142 = arith.constant 142 : index
    %678 = memref.load %arg1[%c142] : memref<180xf32, #tpu.memory_space<smem>>
    %679 = vector.broadcast %678 : f32 to vector<24x128xf32>
    %680 = arith.mulf %679, %677 : vector<24x128xf32>
    %681 = arith.addf %675, %680 : vector<24x128xf32>
    %c152 = arith.constant 152 : index
    %682 = memref.load %arg1[%c152] : memref<180xf32, #tpu.memory_space<smem>>
    %683 = vector.broadcast %682 : f32 to vector<24x128xf32>
    %684 = arith.mulf %683, %677 : vector<24x128xf32>
    %685 = arith.addf %676, %684 : vector<24x128xf32>
    %c1_i32_80 = arith.constant 1 : i32
    %686 = tpu.dynamic_rotate %668 by %c1_i32_80 dim 1 : vector<24x128xf32>, i32 -> vector<24x128xf32>
    %c143 = arith.constant 143 : index
    %687 = memref.load %arg1[%c143] : memref<180xf32, #tpu.memory_space<smem>>
    %688 = vector.broadcast %687 : f32 to vector<24x128xf32>
    %689 = arith.mulf %688, %686 : vector<24x128xf32>
    %690 = arith.addf %681, %689 : vector<24x128xf32>
    %c153 = arith.constant 153 : index
    %691 = memref.load %arg1[%c153] : memref<180xf32, #tpu.memory_space<smem>>
    %692 = vector.broadcast %691 : f32 to vector<24x128xf32>
    %693 = arith.mulf %692, %686 : vector<24x128xf32>
    %694 = arith.addf %685, %693 : vector<24x128xf32>
    %c144 = arith.constant 144 : index
    %695 = memref.load %arg1[%c144] : memref<180xf32, #tpu.memory_space<smem>>
    %696 = vector.broadcast %695 : f32 to vector<24x128xf32>
    %697 = arith.mulf %696, %668 : vector<24x128xf32>
    %698 = arith.addf %690, %697 : vector<24x128xf32>
    %c154 = arith.constant 154 : index
    %699 = memref.load %arg1[%c154] : memref<180xf32, #tpu.memory_space<smem>>
    %700 = vector.broadcast %699 : f32 to vector<24x128xf32>
    %701 = arith.mulf %700, %668 : vector<24x128xf32>
    %702 = arith.addf %694, %701 : vector<24x128xf32>
    %c127_i32_81 = arith.constant 127 : i32
    %703 = tpu.dynamic_rotate %668 by %c127_i32_81 dim 1 : vector<24x128xf32>, i32 -> vector<24x128xf32>
    %c145 = arith.constant 145 : index
    %704 = memref.load %arg1[%c145] : memref<180xf32, #tpu.memory_space<smem>>
    %705 = vector.broadcast %704 : f32 to vector<24x128xf32>
    %706 = arith.mulf %705, %703 : vector<24x128xf32>
    %707 = arith.addf %698, %706 : vector<24x128xf32>
    %c155 = arith.constant 155 : index
    %708 = memref.load %arg1[%c155] : memref<180xf32, #tpu.memory_space<smem>>
    %709 = vector.broadcast %708 : f32 to vector<24x128xf32>
    %710 = arith.mulf %709, %703 : vector<24x128xf32>
    %711 = arith.addf %702, %710 : vector<24x128xf32>
    %c126_i32_82 = arith.constant 126 : i32
    %712 = tpu.dynamic_rotate %668 by %c126_i32_82 dim 1 : vector<24x128xf32>, i32 -> vector<24x128xf32>
    %c146 = arith.constant 146 : index
    %713 = memref.load %arg1[%c146] : memref<180xf32, #tpu.memory_space<smem>>
    %714 = vector.broadcast %713 : f32 to vector<24x128xf32>
    %715 = arith.mulf %714, %712 : vector<24x128xf32>
    %716 = arith.addf %707, %715 : vector<24x128xf32>
    %c156 = arith.constant 156 : index
    %717 = memref.load %arg1[%c156] : memref<180xf32, #tpu.memory_space<smem>>
    %718 = vector.broadcast %717 : f32 to vector<24x128xf32>
    %719 = arith.mulf %718, %712 : vector<24x128xf32>
    %720 = arith.addf %711, %719 : vector<24x128xf32>
    %c2_i32_83 = arith.constant 2 : i32
    %721 = tpu.dynamic_rotate %674 by %c2_i32_83 dim 1 : vector<24x128xf32>, i32 -> vector<24x128xf32>
    %c147 = arith.constant 147 : index
    %722 = memref.load %arg1[%c147] : memref<180xf32, #tpu.memory_space<smem>>
    %723 = vector.broadcast %722 : f32 to vector<24x128xf32>
    %724 = arith.mulf %723, %721 : vector<24x128xf32>
    %725 = arith.addf %716, %724 : vector<24x128xf32>
    %c157 = arith.constant 157 : index
    %726 = memref.load %arg1[%c157] : memref<180xf32, #tpu.memory_space<smem>>
    %727 = vector.broadcast %726 : f32 to vector<24x128xf32>
    %728 = arith.mulf %727, %721 : vector<24x128xf32>
    %729 = arith.addf %720, %728 : vector<24x128xf32>
    %c1_i32_84 = arith.constant 1 : i32
    %730 = tpu.dynamic_rotate %674 by %c1_i32_84 dim 1 : vector<24x128xf32>, i32 -> vector<24x128xf32>
    %c148 = arith.constant 148 : index
    %731 = memref.load %arg1[%c148] : memref<180xf32, #tpu.memory_space<smem>>
    %732 = vector.broadcast %731 : f32 to vector<24x128xf32>
    %733 = arith.mulf %732, %730 : vector<24x128xf32>
    %734 = arith.addf %725, %733 : vector<24x128xf32>
    %c158 = arith.constant 158 : index
    %735 = memref.load %arg1[%c158] : memref<180xf32, #tpu.memory_space<smem>>
    %736 = vector.broadcast %735 : f32 to vector<24x128xf32>
    %737 = arith.mulf %736, %730 : vector<24x128xf32>
    %738 = arith.addf %729, %737 : vector<24x128xf32>
    %c149 = arith.constant 149 : index
    %739 = memref.load %arg1[%c149] : memref<180xf32, #tpu.memory_space<smem>>
    %740 = vector.broadcast %739 : f32 to vector<24x128xf32>
    %741 = arith.mulf %740, %674 : vector<24x128xf32>
    %742 = arith.addf %734, %741 : vector<24x128xf32>
    %c159 = arith.constant 159 : index
    %743 = memref.load %arg1[%c159] : memref<180xf32, #tpu.memory_space<smem>>
    %744 = vector.broadcast %743 : f32 to vector<24x128xf32>
    %745 = arith.mulf %744, %674 : vector<24x128xf32>
    %746 = arith.addf %738, %745 : vector<24x128xf32>
    %c127_i32_85 = arith.constant 127 : i32
    %747 = tpu.dynamic_rotate %674 by %c127_i32_85 dim 1 : vector<24x128xf32>, i32 -> vector<24x128xf32>
    %c150 = arith.constant 150 : index
    %748 = memref.load %arg1[%c150] : memref<180xf32, #tpu.memory_space<smem>>
    %749 = vector.broadcast %748 : f32 to vector<24x128xf32>
    %750 = arith.mulf %749, %747 : vector<24x128xf32>
    %751 = arith.addf %742, %750 : vector<24x128xf32>
    %c160 = arith.constant 160 : index
    %752 = memref.load %arg1[%c160] : memref<180xf32, #tpu.memory_space<smem>>
    %753 = vector.broadcast %752 : f32 to vector<24x128xf32>
    %754 = arith.mulf %753, %747 : vector<24x128xf32>
    %755 = arith.addf %746, %754 : vector<24x128xf32>
    %c126_i32_86 = arith.constant 126 : i32
    %756 = tpu.dynamic_rotate %674 by %c126_i32_86 dim 1 : vector<24x128xf32>, i32 -> vector<24x128xf32>
    %c151 = arith.constant 151 : index
    %757 = memref.load %arg1[%c151] : memref<180xf32, #tpu.memory_space<smem>>
    %758 = vector.broadcast %757 : f32 to vector<24x128xf32>
    %759 = arith.mulf %758, %756 : vector<24x128xf32>
    %760 = arith.addf %751, %759 : vector<24x128xf32>
    %c161 = arith.constant 161 : index
    %761 = memref.load %arg1[%c161] : memref<180xf32, #tpu.memory_space<smem>>
    %762 = vector.broadcast %761 : f32 to vector<24x128xf32>
    %763 = arith.mulf %762, %756 : vector<24x128xf32>
    %764 = arith.addf %755, %763 : vector<24x128xf32>
    %c162 = arith.constant 162 : index
    %765 = memref.load %arg1[%c162] : memref<180xf32, #tpu.memory_space<smem>>
    %766 = vector.broadcast %765 : f32 to vector<24x128xf32>
    %767 = arith.addf %760, %766 : vector<24x128xf32>
    %cst_87 = arith.constant 0.000000e+00 : f32
    %768 = vector.broadcast %cst_87 : f32 to vector<24x128xf32>
    %769 = arith.select %18, %767, %768 : vector<24x128xi1>, vector<24x128xf32>
    %c163 = arith.constant 163 : index
    %770 = memref.load %arg1[%c163] : memref<180xf32, #tpu.memory_space<smem>>
    %771 = vector.broadcast %770 : f32 to vector<24x128xf32>
    %772 = arith.addf %764, %771 : vector<24x128xf32>
    %cst_88 = arith.constant 0.000000e+00 : f32
    %773 = vector.broadcast %cst_88 : f32 to vector<24x128xf32>
    %774 = arith.select %18, %772, %773 : vector<24x128xi1>, vector<24x128xf32>
    %cst_89 = arith.constant 0.000000e+00 : f32
    %775 = vector.broadcast %cst_89 : f32 to vector<24x128xf32>
    %776 = arith.cmpf oge, %557, %775 : vector<24x128xf32>
    %c164 = arith.constant 164 : index
    %777 = memref.load %arg1[%c164] : memref<180xf32, #tpu.memory_space<smem>>
    %778 = vector.broadcast %777 : f32 to vector<24x128xf32>
    %779 = arith.mulf %778, %557 : vector<24x128xf32>
    %780 = arith.select %776, %557, %779 : vector<24x128xi1>, vector<24x128xf32>
    %cst_90 = arith.constant 0.000000e+00 : f32
    %781 = vector.broadcast %cst_90 : f32 to vector<24x128xf32>
    %782 = arith.cmpf oge, %562, %781 : vector<24x128xf32>
    %c165 = arith.constant 165 : index
    %783 = memref.load %arg1[%c165] : memref<180xf32, #tpu.memory_space<smem>>
    %784 = vector.broadcast %783 : f32 to vector<24x128xf32>
    %785 = arith.mulf %784, %562 : vector<24x128xf32>
    %786 = arith.select %782, %562, %785 : vector<24x128xi1>, vector<24x128xf32>
    %cst_91 = arith.constant 0.000000e+00 : f32
    %787 = vector.broadcast %cst_91 : f32 to vector<24x128xf32>
    %788 = arith.cmpf oge, %769, %787 : vector<24x128xf32>
    %c166 = arith.constant 166 : index
    %789 = memref.load %arg1[%c166] : memref<180xf32, #tpu.memory_space<smem>>
    %790 = vector.broadcast %789 : f32 to vector<24x128xf32>
    %791 = arith.mulf %790, %769 : vector<24x128xf32>
    %792 = arith.select %788, %769, %791 : vector<24x128xi1>, vector<24x128xf32>
    %cst_92 = arith.constant 0.000000e+00 : f32
    %793 = vector.broadcast %cst_92 : f32 to vector<24x128xf32>
    %794 = arith.cmpf oge, %774, %793 : vector<24x128xf32>
    %c167 = arith.constant 167 : index
    %795 = memref.load %arg1[%c167] : memref<180xf32, #tpu.memory_space<smem>>
    %796 = vector.broadcast %795 : f32 to vector<24x128xf32>
    %797 = arith.mulf %796, %774 : vector<24x128xf32>
    %798 = arith.select %794, %774, %797 : vector<24x128xi1>, vector<24x128xf32>
    %cst_93 = arith.constant 0.000000e+00 : f32
    %799 = vector.broadcast %cst_93 : f32 to vector<24x128xf32>
    %cst_94 = arith.constant 0.000000e+00 : f32
    %800 = vector.broadcast %cst_94 : f32 to vector<24x128xf32>
    %c168 = arith.constant 168 : index
    %801 = memref.load %arg1[%c168] : memref<180xf32, #tpu.memory_space<smem>>
    %802 = vector.broadcast %801 : f32 to vector<24x128xf32>
    %803 = arith.mulf %802, %780 : vector<24x128xf32>
    %804 = arith.addf %799, %803 : vector<24x128xf32>
    %c172 = arith.constant 172 : index
    %805 = memref.load %arg1[%c172] : memref<180xf32, #tpu.memory_space<smem>>
    %806 = vector.broadcast %805 : f32 to vector<24x128xf32>
    %807 = arith.mulf %806, %780 : vector<24x128xf32>
    %808 = arith.addf %800, %807 : vector<24x128xf32>
    %c169 = arith.constant 169 : index
    %809 = memref.load %arg1[%c169] : memref<180xf32, #tpu.memory_space<smem>>
    %810 = vector.broadcast %809 : f32 to vector<24x128xf32>
    %811 = arith.mulf %810, %786 : vector<24x128xf32>
    %812 = arith.addf %804, %811 : vector<24x128xf32>
    %c173 = arith.constant 173 : index
    %813 = memref.load %arg1[%c173] : memref<180xf32, #tpu.memory_space<smem>>
    %814 = vector.broadcast %813 : f32 to vector<24x128xf32>
    %815 = arith.mulf %814, %786 : vector<24x128xf32>
    %816 = arith.addf %808, %815 : vector<24x128xf32>
    %c170 = arith.constant 170 : index
    %817 = memref.load %arg1[%c170] : memref<180xf32, #tpu.memory_space<smem>>
    %818 = vector.broadcast %817 : f32 to vector<24x128xf32>
    %819 = arith.mulf %818, %792 : vector<24x128xf32>
    %820 = arith.addf %812, %819 : vector<24x128xf32>
    %c174 = arith.constant 174 : index
    %821 = memref.load %arg1[%c174] : memref<180xf32, #tpu.memory_space<smem>>
    %822 = vector.broadcast %821 : f32 to vector<24x128xf32>
    %823 = arith.mulf %822, %792 : vector<24x128xf32>
    %824 = arith.addf %816, %823 : vector<24x128xf32>
    %c171 = arith.constant 171 : index
    %825 = memref.load %arg1[%c171] : memref<180xf32, #tpu.memory_space<smem>>
    %826 = vector.broadcast %825 : f32 to vector<24x128xf32>
    %827 = arith.mulf %826, %798 : vector<24x128xf32>
    %828 = arith.addf %820, %827 : vector<24x128xf32>
    %c175 = arith.constant 175 : index
    %829 = memref.load %arg1[%c175] : memref<180xf32, #tpu.memory_space<smem>>
    %830 = vector.broadcast %829 : f32 to vector<24x128xf32>
    %831 = arith.mulf %830, %798 : vector<24x128xf32>
    %832 = arith.addf %824, %831 : vector<24x128xf32>
    %c176 = arith.constant 176 : index
    %833 = memref.load %arg1[%c176] : memref<180xf32, #tpu.memory_space<smem>>
    %834 = vector.broadcast %833 : f32 to vector<24x128xf32>
    %835 = arith.addf %828, %834 : vector<24x128xf32>
    %c177 = arith.constant 177 : index
    %836 = memref.load %arg1[%c177] : memref<180xf32, #tpu.memory_space<smem>>
    %837 = vector.broadcast %836 : f32 to vector<24x128xf32>
    %838 = arith.addf %832, %837 : vector<24x128xf32>
    %839 = arith.addf %835, %20 : vector<24x128xf32>
    %840 = arith.addf %838, %22 : vector<24x128xf32>
    %cst_95 = arith.constant 0.000000e+00 : f32
    %841 = vector.broadcast %cst_95 : f32 to vector<24x128xf32>
    %842 = arith.cmpf oge, %839, %841 : vector<24x128xf32>
    %c178 = arith.constant 178 : index
    %843 = memref.load %arg1[%c178] : memref<180xf32, #tpu.memory_space<smem>>
    %844 = vector.broadcast %843 : f32 to vector<24x128xf32>
    %845 = arith.mulf %844, %839 : vector<24x128xf32>
    %846 = arith.select %842, %839, %845 : vector<24x128xi1>, vector<24x128xf32>
    %cst_96 = arith.constant 0.000000e+00 : f32
    %847 = vector.broadcast %cst_96 : f32 to vector<24x128xf32>
    %848 = arith.cmpf oge, %840, %847 : vector<24x128xf32>
    %c179 = arith.constant 179 : index
    %849 = memref.load %arg1[%c179] : memref<180xf32, #tpu.memory_space<smem>>
    %850 = vector.broadcast %849 : f32 to vector<24x128xf32>
    %851 = arith.mulf %850, %840 : vector<24x128xf32>
    %852 = arith.select %848, %840, %851 : vector<24x128xi1>, vector<24x128xf32>
    %c0_97 = arith.constant 0 : index
    %c0_98 = arith.constant 0 : index
    %c0_99 = arith.constant 0 : index
    %c0_100 = arith.constant 0 : index
    %853 = vector.load %arg3[%c0_97, %c0_98, %c0_99, %c0_100] : memref<1x2x24x128xf32, #tpu.memory_space<vmem>>, vector<1x1x24x128xf32>
    %854 = vector.shape_cast %853 : vector<1x1x24x128xf32> to vector<24x128xf32>
    %855 = vector.shape_cast %846 : vector<24x128xf32> to vector<1x1x24x128xf32>
    tpu.vector_store %arg3[%c0_97, %c0_98, %c0_99, %c0_100], %855 {strides = array<i32>} : memref<1x2x24x128xf32, #tpu.memory_space<vmem>>, vector<1x1x24x128xf32>,
    %c0_101 = arith.constant 0 : index
    %c1_102 = arith.constant 1 : index
    %c0_103 = arith.constant 0 : index
    %c0_104 = arith.constant 0 : index
    %856 = vector.load %arg3[%c0_101, %c1_102, %c0_103, %c0_104] : memref<1x2x24x128xf32, #tpu.memory_space<vmem>>, vector<1x1x24x128xf32>
    %857 = vector.shape_cast %856 : vector<1x1x24x128xf32> to vector<24x128xf32>
    %858 = vector.shape_cast %852 : vector<24x128xf32> to vector<1x1x24x128xf32>
    tpu.vector_store %arg3[%c0_101, %c1_102, %c0_103, %c0_104], %858 {strides = array<i32>} : memref<1x2x24x128xf32, #tpu.memory_space<vmem>>, vector<1x1x24x128xf32>,
    return
  }
  func.func @transform_0(%arg0: i32) -> i32 {
    %c0_i32 = arith.constant 0 : i32
    %c0_i32_0 = arith.constant 0 : i32
    return %c0_i32 : i32
  }
  func.func @transform_1(%arg0: i32) -> (i32, i32, i32, i32) {
    %c0_i32 = arith.constant 0 : i32
    %c0_i32_0 = arith.constant 0 : i32
    %c0_i32_1 = arith.constant 0 : i32
    %c0_i32_2 = arith.constant 0 : i32
    return %arg0, %c0_i32, %c0_i32_0, %c0_i32_1 : i32, i32, i32, i32
  }
  func.func @transform_2(%arg0: i32) -> (i32, i32, i32, i32) {
    %c0_i32 = arith.constant 0 : i32
    %c0_i32_0 = arith.constant 0 : i32
    %c0_i32_1 = arith.constant 0 : i32
    %c0_i32_2 = arith.constant 0 : i32
    return %arg0, %c0_i32, %c0_i32_0, %c0_i32_1 : i32, i32, i32, i32
  }
}

</mosaic_0001>

<llo_original>
// kernel: tpu_custom_call.1
$region0: #{tpu_custom_call.1}
  #allocation0 [shape = 'u32[]', space=smem, size = 0x4, offset = 0x4, fixed_abs, tag = 'smem constant byte address 0x4 - core index']
  #allocation1 [shape = 'u32[144,128]{1,0:T(1,128)}', space=vmem, size = 0x12000, scoped, tag = 'internal scratch']
  %s0 = inlined_call_operand.hbm [shape: f32[180], index: 0, kind: input, shape index: {}]
  %s1 = inlined_call_operand.hbm [shape: f32[1,2,24,128], index: 1, kind: input, shape index: {}]
  %s2 = inlined_call_operand.hbm [shape: f32[1,2,24,128], index: 2, kind: output, shape index: {}]
  %s3 = sld [smem:[#allocation0]]
  $region26: #{tpu_custom_call.1} parent=0
    _
  %s5 = ssub.s32 1, %s3
  %s6 = scalar_select 0, %s5, %s3
  $region1: #{tpu_custom_call.1} parent=0
    #allocation2 [shape = 'u8[1024]{0}', space=smem, size = 0x400, scoped, tag = 'input window, operand 0, single buffered']
    #allocation3 [shape = 's32[1]{0}', space=sflag, size = 0x4, scoped, tag = 'scoped memory for tpu_custom_call.1']
    #allocation4 [shape = 's32[1]{0}', space=sflag, size = 0x4, scoped, tag = 'scoped memory for tpu_custom_call.1']
    #allocation5 [shape = 's32[1]{0}', space=sflag, size = 0x4, scoped, tag = 'scoped memory for tpu_custom_call.1']
    #allocation6 [shape = 'u8[24576]{0}', space=vmem, size = 0x6000, scoped, tag = 'input window, operand 1, single buffered']
    #allocation7 [shape = 'u8[24576]{0}', space=vmem, size = 0x6000, scoped, tag = 'output window, operand 0, single buffered']
    %7 = vsyncpa [#allocation5], 0
    %8 = vsyncpa [#allocation3], 0
    %9 = vsyncpa [#allocation4], 0
    // Predicated region
    $region2: #{tpu_custom_call.1} parent=1 // pred_check
      _
    $region3: #{tpu_custom_call.1} parent=1 // pred_check_branch
      %11 = sbr.rel (0) target = $region5
    $region4: #{tpu_custom_call.1} parent=1 // pred_region
      %s13 = ssub.s32 32, 32
      %14 = vsyncadd [#allocation5], %s13
      %17 = dma.hbm_to_smem %s0, 32, [#allocation2], [#allocation5]
    $region5: #{tpu_custom_call.1} parent=1 // pred_fallthru
      _
    // Predicated region
    $region6: #{tpu_custom_call.1} parent=1 // pred_check
      _
    $region7: #{tpu_custom_call.1} parent=1 // pred_check_branch
      %19 = sbr.rel (0) target = $region9
    $region8: #{tpu_custom_call.1} parent=1 // pred_region
      %s21 = ssub.s32 768, 768
      %22 = vsyncadd [#allocation3], %s21
      %s23 = sshll.u32 [#allocation6], 4
      %s24 = int_to_ptr.vmem [resolvable:$true] %s23
      %29 = dma.hbm_to_vmem [thread:$0]  %s1, 768, %s24, [#allocation3], 128, 128, 8
    $region9: #{tpu_custom_call.1} parent=1 // pred_fallthru
      _
    // Predicated region
    $region10: #{tpu_custom_call.1} parent=1 // pred_check
      _
    $region11: #{tpu_custom_call.1} parent=1 // pred_check_branch
      %31 = sbr.rel (0) target = $region13
    $region12: #{tpu_custom_call.1} parent=1 // pred_region
      %32 = dma.done [#allocation5], 32
    $region13: #{tpu_custom_call.1} parent=1 // pred_fallthru
      _
    // Predicated region
    $region14: #{tpu_custom_call.1} parent=1 // pred_check
      _
    $region15: #{tpu_custom_call.1} parent=1 // pred_check_branch
      %34 = sbr.rel (0) target = $region17
    $region16: #{tpu_custom_call.1} parent=1 // pred_region
      %35 = dma.done [#allocation3], 768
    $region17: #{tpu_custom_call.1} parent=1 // pred_fallthru
      _
    %36 = sfence
    %v37 = vlaneseq
    %v38 = vshrl.u32 %v37, 7
    %v39 = vadd.s32 %v38, 8
    %v40 = vadd.s32 %v38, 16
    %v41 = vlaneseq
    %v42 = vand.u32 %v41, 127
    %vm43 = vcmp.ge.s32.totalorder %v38, 4
    %vm44 = vcmp.ge.s32.totalorder %v39, 4
    %vm45 = vcmp.ge.s32.totalorder %v40, 4
    %vm46 = vcmp.lt.s32.totalorder %v38, 20
    %vm47 = vcmp.lt.s32.totalorder %v39, 20
    %vm48 = vcmp.lt.s32.totalorder %v40, 20
    %vm49 = vmand %vm43, %vm46
    %vm50 = vmand %vm44, %vm47
    %vm51 = vmand %vm45, %vm48
    %vm52 = vcmp.ge.s32.totalorder %v42, 4
    %vm53 = vcmp.lt.s32.totalorder %v42, 20
    %vm54 = vmand %vm52, %vm53
    %vm55 = vcmp.ge.s32.totalorder %v42, 28
    %vm56 = vcmp.lt.s32.totalorder %v42, 44
    %vm57 = vmand %vm55, %vm56
    %vm58 = vmor %vm54, %vm57
    %vm59 = vmand %vm49, %vm58
    %vm60 = vmand %vm50, %vm58
    %vm61 = vmand %vm51, %vm58
    %v62 = vld [vmem:[#allocation6] sm:$0xff]
    %v63 = vld [vmem:[#allocation6 + $0x8] sm:$0xff]
    %v64 = vld [vmem:[#allocation6 + $0x10] sm:$0xff]
    %s65 = scalar_lea.vmem [#allocation6], 24
    %v66 = vld [vmem:[%s65] sm:$0xff]
    %v67 = vld [vmem:[%s65 + $0x8] sm:$0xff]
    %v68 = vld [vmem:[%s65 + $0x10] sm:$0xff]
    %v69 = vrot.slane %v62, 7
    %v70 = vrot.slane %v63, 7
    %v71 = vrot.slane %v64, 7
    %vm72 = vcmp.lt.s32.totalorder %v38, 1
    %v73 = vsel %vm72, %v70, %v71
    %v74 = vsel %vm72, %v69, %v70
    %v75 = vsel %vm72, %v71, %v69
    %76 = vrot.lane.b32.xlu0 %v75, 1
    %v77 = vpop.permute.xlu0 %76
    %78 = vrot.lane.b32.xlu0 %v74, 1
    %v79 = vpop.permute.xlu0 %78
    %80 = vrot.lane.b32.xlu0 %v73, 1
    %v81 = vpop.permute.xlu0 %80
    %s82 = sld [smem:[#allocation2]]
    %v83 = vstv %s82
    %v84 = vmul.f32 %v83, %v77
    %v85 = vmul.f32 %v83, %v79
    %v86 = vmul.f32 %v83, %v81
    %v87 = vadd.f32 %v84, 0.0
    %v88 = vadd.f32 %v85, 0.0
    %v89 = vadd.f32 %v86, 0.0
    %s90 = sld [smem:[#allocation2 + $0x12]]
    %v91 = vstv %s90
    %v92 = vmul.f32 %v91, %v77
    %v93 = vmul.f32 %v91, %v79
    %v94 = vmul.f32 %v91, %v81
    %v95 = vadd.f32 %v92, 0.0
    %v96 = vadd.f32 %v93, 0.0
    %v97 = vadd.f32 %v94, 0.0
    %s98 = sld [smem:[#allocation2 + $0x1]]
    %v99 = vstv %s98
    %v100 = vmul.f32 %v99, %v75
    %v101 = vmul.f32 %v99, %v74
    %v102 = vmul.f32 %v99, %v73
    %v103 = vadd.f32 %v87, %v100
    %v104 = vadd.f32 %v88, %v101
    %v105 = vadd.f32 %v89, %v102
    %s106 = sld [smem:[#allocation2 + $0x13]]
    %v107 = vstv %s106
    %v108 = vmul.f32 %v107, %v75
    %v109 = vmul.f32 %v107, %v74
    %v110 = vmul.f32 %v107, %v73
    %v111 = vadd.f32 %v95, %v108
    %v112 = vadd.f32 %v96, %v109
    %v113 = vadd.f32 %v97, %v110
    %114 = vrot.lane.b32.xlu0 %v75, 127
    %v115 = vpop.permute.xlu0 %114
    %116 = vrot.lane.b32.xlu0 %v74, 127
    %v117 = vpop.permute.xlu0 %116
    %118 = vrot.lane.b32.xlu0 %v73, 127
    %v119 = vpop.permute.xlu0 %118
    %s120 = sld [smem:[#allocation2 + $0x2]]
    %v121 = vstv %s120
    %v122 = vmul.f32 %v121, %v115
    %v123 = vmul.f32 %v121, %v117
    %v124 = vmul.f32 %v121, %v119
    %v125 = vadd.f32 %v103, %v122
    %v126 = vadd.f32 %v104, %v123
    %v127 = vadd.f32 %v105, %v124
    %s128 = sld [smem:[#allocation2 + $0x14]]
    %v129 = vstv %s128
    %v130 = vmul.f32 %v129, %v115
    %v131 = vmul.f32 %v129, %v117
    %v132 = vmul.f32 %v129, %v119
    %v133 = vadd.f32 %v111, %v130
    %v134 = vadd.f32 %v112, %v131
    %v135 = vadd.f32 %v113, %v132
    %136 = vrot.lane.b32.xlu0 %v62, 1
    %v137 = vpop.permute.xlu0 %136
    %138 = vrot.lane.b32.xlu0 %v63, 1
    %v139 = vpop.permute.xlu0 %138
    %140 = vrot.lane.b32.xlu0 %v64, 1
    %v141 = vpop.permute.xlu0 %140
    %s142 = sld [smem:[#allocation2 + $0x3]]
    %v143 = vstv %s142
    %v144 = vmul.f32 %v143, %v137
    %v145 = vmul.f32 %v143, %v139
    %v146 = vmul.f32 %v143, %v141
    %v147 = vadd.f32 %v125, %v144
    %v148 = vadd.f32 %v126, %v145
    %v149 = vadd.f32 %v127, %v146
    %s150 = sld [smem:[#allocation2 + $0x15]]
    %v151 = vstv %s150
    %v152 = vmul.f32 %v151, %v137
    %v153 = vmul.f32 %v151, %v139
    %v154 = vmul.f32 %v151, %v141
    %v155 = vadd.f32 %v133, %v152
    %v156 = vadd.f32 %v134, %v153
    %v157 = vadd.f32 %v135, %v154
    %s158 = sld [smem:[#allocation2 + $0x4]]
    %v159 = vstv %s158
    %v160 = vmul.f32 %v159, %v62
    %v161 = vmul.f32 %v159, %v63
    %v162 = vmul.f32 %v159, %v64
    %v163 = vadd.f32 %v147, %v160
    %v164 = vadd.f32 %v148, %v161
    %v165 = vadd.f32 %v149, %v162
    %s166 = sld [smem:[#allocation2 + $0x16]]
    %v167 = vstv %s166
    %v168 = vmul.f32 %v167, %v62
    %v169 = vmul.f32 %v167, %v63
    %v170 = vmul.f32 %v167, %v64
    %v171 = vadd.f32 %v155, %v168
    %v172 = vadd.f32 %v156, %v169
    %v173 = vadd.f32 %v157, %v170
    %174 = vrot.lane.b32.xlu0 %v62, 127
    %v175 = vpop.permute.xlu0 %174
    %176 = vrot.lane.b32.xlu0 %v63, 127
    %v177 = vpop.permute.xlu0 %176
    %178 = vrot.lane.b32.xlu0 %v64, 127
    %v179 = vpop.permute.xlu0 %178
    %s180 = sld [smem:[#allocation2 + $0x5]]
    %v181 = vstv %s180
    %v182 = vmul.f32 %v181, %v175
    %v183 = vmul.f32 %v181, %v177
    %v184 = vmul.f32 %v181, %v179
    %v185 = vadd.f32 %v163, %v182
    %v186 = vadd.f32 %v164, %v183
    %v187 = vadd.f32 %v165, %v184
    %s188 = sld [smem:[#allocation2 + $0x17]]
    %v189 = vstv %s188
    %v190 = vmul.f32 %v189, %v175
    %v191 = vmul.f32 %v189, %v177
    %v192 = vmul.f32 %v189, %v179
    %v193 = vadd.f32 %v171, %v190
    %v194 = vadd.f32 %v172, %v191
    %v195 = vadd.f32 %v173, %v192
    %v196 = vrot.slane %v62, 1
    %v197 = vrot.slane %v63, 1
    %v198 = vrot.slane %v64, 1
    %vm199 = vcmp.lt.s32.totalorder %v38, 7
    %v200 = vsel %vm199, %v197, %v198
    %v201 = vsel %vm199, %v196, %v197
    %v202 = vsel %vm199, %v198, %v196
    %203 = vrot.lane.b32.xlu0 %v201, 1
    %v204 = vpop.permute.xlu0 %203
    %205 = vrot.lane.b32.xlu0 %v200, 1
    %v206 = vpop.permute.xlu0 %205
    %207 = vrot.lane.b32.xlu0 %v202, 1
    %v208 = vpop.permute.xlu0 %207
    %s209 = sld [smem:[#allocation2 + $0x6]]
    %v210 = vstv %s209
    %v211 = vmul.f32 %v210, %v204
    %v212 = vmul.f32 %v210, %v206
    %v213 = vmul.f32 %v210, %v208
    %v214 = vadd.f32 %v185, %v211
    %v215 = vadd.f32 %v186, %v212
    %v216 = vadd.f32 %v187, %v213
    %s217 = sld [smem:[#allocation2 + $0x18]]
    %v218 = vstv %s217
    %v219 = vmul.f32 %v218, %v204
    %v220 = vmul.f32 %v218, %v206
    %v221 = vmul.f32 %v218, %v208
    %v222 = vadd.f32 %v193, %v219
    %v223 = vadd.f32 %v194, %v220
    %v224 = vadd.f32 %v195, %v221
    %s225 = sld [smem:[#allocation2 + $0x7]]
    %v226 = vstv %s225
    %v227 = vmul.f32 %v226, %v201
    %v228 = vmul.f32 %v226, %v200
    %v229 = vmul.f32 %v226, %v202
    %v230 = vadd.f32 %v214, %v227
    %v231 = vadd.f32 %v215, %v228
    %v232 = vadd.f32 %v216, %v229
    %s233 = sld [smem:[#allocation2 + $0x19]]
    %v234 = vstv %s233
    %v235 = vmul.f32 %v234, %v201
    %v236 = vmul.f32 %v234, %v200
    %v237 = vmul.f32 %v234, %v202
    %v238 = vadd.f32 %v222, %v235
    %v239 = vadd.f32 %v223, %v236
    %v240 = vadd.f32 %v224, %v237
    %241 = vrot.lane.b32.xlu0 %v201, 127
    %v242 = vpop.permute.xlu0 %241
    %243 = vrot.lane.b32.xlu0 %v200, 127
    %v244 = vpop.permute.xlu0 %243
    %245 = vrot.lane.b32.xlu0 %v202, 127
    %v246 = vpop.permute.xlu0 %245
    %s247 = sld [smem:[#allocation2 + $0x8]]
    %v248 = vstv %s247
    %v249 = vmul.f32 %v248, %v242
    %v250 = vmul.f32 %v248, %v244
    %v251 = vmul.f32 %v248, %v246
    %v252 = vadd.f32 %v230, %v249
    %v253 = vadd.f32 %v231, %v250
    %v254 = vadd.f32 %v232, %v251
    %s255 = sld [smem:[#allocation2 + $0x1a]]
    %v256 = vstv %s255
    %v257 = vmul.f32 %v256, %v242
    %v258 = vmul.f32 %v256, %v244
    %v259 = vmul.f32 %v256, %v246
    %v260 = vadd.f32 %v238, %v257
    %v261 = vadd.f32 %v239, %v258
    %v262 = vadd.f32 %v240, %v259
    %v263 = vrot.slane %v66, 7
    %v264 = vrot.slane %v67, 7
    %v265 = vrot.slane %v68, 7
    %v266 = vsel %vm72, %v264, %v265
    %v267 = vsel %vm72, %v263, %v264
    %v268 = vsel %vm72, %v265, %v263
    %269 = vrot.lane.b32.xlu0 %v268, 1
    %v270 = vpop.permute.xlu0 %269
    %271 = vrot.lane.b32.xlu0 %v267, 1
    %v272 = vpop.permute.xlu0 %271
    %273 = vrot.lane.b32.xlu0 %v266, 1
    %v274 = vpop.permute.xlu0 %273
    %s275 = sld [smem:[#allocation2 + $0x9]]
    %v276 = vstv %s275
    %v277 = vmul.f32 %v276, %v270
    %v278 = vmul.f32 %v276, %v272
    %v279 = vmul.f32 %v276, %v274
    %v280 = vadd.f32 %v252, %v277
    %v281 = vadd.f32 %v253, %v278
    %v282 = vadd.f32 %v254, %v279
    %s283 = sld [smem:[#allocation2 + $0x1b]]
    %v284 = vstv %s283
    %v285 = vmul.f32 %v284, %v270
    %v286 = vmul.f32 %v284, %v272
    %v287 = vmul.f32 %v284, %v274
    %v288 = vadd.f32 %v260, %v285
    %v289 = vadd.f32 %v261, %v286
    %v290 = vadd.f32 %v262, %v287
    %s291 = sld [smem:[#allocation2 + $0xa]]
    %v292 = vstv %s291
    %v293 = vmul.f32 %v292, %v268
    %v294 = vmul.f32 %v292, %v267
    %v295 = vmul.f32 %v292, %v266
    %v296 = vadd.f32 %v280, %v293
    %v297 = vadd.f32 %v281, %v294
    %v298 = vadd.f32 %v282, %v295
    %s299 = sld [smem:[#allocation2 + $0x1c]]
    %v300 = vstv %s299
    %v301 = vmul.f32 %v300, %v268
    %v302 = vmul.f32 %v300, %v267
    %v303 = vmul.f32 %v300, %v266
    %v304 = vadd.f32 %v288, %v301
    %v305 = vadd.f32 %v289, %v302
    %v306 = vadd.f32 %v290, %v303
    %307 = vrot.lane.b32.xlu0 %v268, 127
    %v308 = vpop.permute.xlu0 %307
    %309 = vrot.lane.b32.xlu0 %v267, 127
    %v310 = vpop.permute.xlu0 %309
    %311 = vrot.lane.b32.xlu0 %v266, 127
    %v312 = vpop.permute.xlu0 %311
    %s313 = sld [smem:[#allocation2 + $0xb]]
    %v314 = vstv %s313
    %v315 = vmul.f32 %v314, %v308
    %v316 = vmul.f32 %v314, %v310
    %v317 = vmul.f32 %v314, %v312
    %v318 = vadd.f32 %v296, %v315
    %v319 = vadd.f32 %v297, %v316
    %v320 = vadd.f32 %v298, %v317
    %s321 = sld [smem:[#allocation2 + $0x1d]]
    %v322 = vstv %s321
    %v323 = vmul.f32 %v322, %v308
    %v324 = vmul.f32 %v322, %v310
    %v325 = vmul.f32 %v322, %v312
    %v326 = vadd.f32 %v304, %v323
    %v327 = vadd.f32 %v305, %v324
    %v328 = vadd.f32 %v306, %v325
    %329 = vrot.lane.b32.xlu0 %v66, 1
    %v330 = vpop.permute.xlu0 %329
    %331 = vrot.lane.b32.xlu0 %v67, 1
    %v332 = vpop.permute.xlu0 %331
    %333 = vrot.lane.b32.xlu0 %v68, 1
    %v334 = vpop.permute.xlu0 %333
    %s335 = sld [smem:[#allocation2 + $0xc]]
    %v336 = vstv %s335
    %v337 = vmul.f32 %v336, %v330
    %v338 = vmul.f32 %v336, %v332
    %v339 = vmul.f32 %v336, %v334
    %v340 = vadd.f32 %v318, %v337
    %v341 = vadd.f32 %v319, %v338
    %v342 = vadd.f32 %v320, %v339
    %s343 = sld [smem:[#allocation2 + $0x1e]]
    %v344 = vstv %s343
    %v345 = vmul.f32 %v344, %v330
    %v346 = vmul.f32 %v344, %v332
    %v347 = vmul.f32 %v344, %v334
    %v348 = vadd.f32 %v326, %v345
    %v349 = vadd.f32 %v327, %v346
    %v350 = vadd.f32 %v328, %v347
    %s351 = sld [smem:[#allocation2 + $0xd]]
    %v352 = vstv %s351
    %v353 = vmul.f32 %v352, %v66
    %v354 = vmul.f32 %v352, %v67
    %v355 = vmul.f32 %v352, %v68
    %v356 = vadd.f32 %v340, %v353
    %v357 = vadd.f32 %v341, %v354
    %v358 = vadd.f32 %v342, %v355
    %s359 = sld [smem:[#allocation2 + $0x1f]]
    %v360 = vstv %s359
    %v361 = vmul.f32 %v360, %v66
    %v362 = vmul.f32 %v360, %v67
    %v363 = vmul.f32 %v360, %v68
    %v364 = vadd.f32 %v348, %v361
    %v365 = vadd.f32 %v349, %v362
    %v366 = vadd.f32 %v350, %v363
    %367 = vrot.lane.b32.xlu0 %v66, 127
    %v368 = vpop.permute.xlu0 %367
    %369 = vrot.lane.b32.xlu0 %v67, 127
    %v370 = vpop.permute.xlu0 %369
    %371 = vrot.lane.b32.xlu0 %v68, 127
    %v372 = vpop.permute.xlu0 %371
    %s373 = sld [smem:[#allocation2 + $0xe]]
    %v374 = vstv %s373
    %v375 = vmul.f32 %v374, %v368
    %v376 = vmul.f32 %v374, %v370
    %v377 = vmul.f32 %v374, %v372
    %v378 = vadd.f32 %v356, %v375
    %v379 = vadd.f32 %v357, %v376
    %v380 = vadd.f32 %v358, %v377
    %s381 = sld [smem:[#allocation2 + $0x20]]
    %v382 = vstv %s381
    %v383 = vmul.f32 %v382, %v368
    %v384 = vmul.f32 %v382, %v370
    %v385 = vmul.f32 %v382, %v372
    %v386 = vadd.f32 %v364, %v383
    %v387 = vadd.f32 %v365, %v384
    %v388 = vadd.f32 %v366, %v385
    %v389 = vrot.slane %v66, 1
    %v390 = vrot.slane %v67, 1
    %v391 = vrot.slane %v68, 1
    %v392 = vsel %vm199, %v390, %v391
    %v393 = vsel %vm199, %v389, %v390
    %v394 = vsel %vm199, %v391, %v389
    %395 = vrot.lane.b32.xlu0 %v393, 1
    %v396 = vpop.permute.xlu0 %395
    %397 = vrot.lane.b32.xlu0 %v392, 1
    %v398 = vpop.permute.xlu0 %397
    %399 = vrot.lane.b32.xlu0 %v394, 1
    %v400 = vpop.permute.xlu0 %399
    %s401 = sld [smem:[#allocation2 + $0xf]]
    %v402 = vstv %s401
    %v403 = vmul.f32 %v402, %v396
    %v404 = vmul.f32 %v402, %v398
    %v405 = vmul.f32 %v402, %v400
    %v406 = vadd.f32 %v378, %v403
    %v407 = vadd.f32 %v379, %v404
    %v408 = vadd.f32 %v380, %v405
    %s409 = sld [smem:[#allocation2 + $0x21]]
    %v410 = vstv %s409
    %v411 = vmul.f32 %v410, %v396
    %v412 = vmul.f32 %v410, %v398
    %v413 = vmul.f32 %v410, %v400
    %v414 = vadd.f32 %v386, %v411
    %v415 = vadd.f32 %v387, %v412
    %v416 = vadd.f32 %v388, %v413
    %s417 = sld [smem:[#allocation2 + $0x10]]
    %v418 = vstv %s417
    %v419 = vmul.f32 %v418, %v393
    %v420 = vmul.f32 %v418, %v392
    %v421 = vmul.f32 %v418, %v394
    %v422 = vadd.f32 %v406, %v419
    %v423 = vadd.f32 %v407, %v420
    %v424 = vadd.f32 %v408, %v421
    %s425 = sld [smem:[#allocation2 + $0x22]]
    %v426 = vstv %s425
    %v427 = vmul.f32 %v426, %v393
    %v428 = vmul.f32 %v426, %v392
    %v429 = vmul.f32 %v426, %v394
    %v430 = vadd.f32 %v414, %v427
    %v431 = vadd.f32 %v415, %v428
    %v432 = vadd.f32 %v416, %v429
    %433 = vrot.lane.b32.xlu0 %v393, 127
    %v434 = vpop.permute.xlu0 %433
    %435 = vrot.lane.b32.xlu0 %v392, 127
    %v436 = vpop.permute.xlu0 %435
    %437 = vrot.lane.b32.xlu0 %v394, 127
    %v438 = vpop.permute.xlu0 %437
    %s439 = sld [smem:[#allocation2 + $0x11]]
    %v440 = vstv %s439
    %v441 = vmul.f32 %v440, %v434
    %v442 = vmul.f32 %v440, %v436
    %v443 = vmul.f32 %v440, %v438
    %v444 = vadd.f32 %v422, %v441
    %v445 = vadd.f32 %v423, %v442
    %v446 = vadd.f32 %v424, %v443
    %s447 = sld [smem:[#allocation2 + $0x23]]
    %v448 = vstv %s447
    %v449 = vmul.f32 %v448, %v434
    %v450 = vmul.f32 %v448, %v436
    %v451 = vmul.f32 %v448, %v438
    %v452 = vadd.f32 %v430, %v449
    %v453 = vadd.f32 %v431, %v450
    %v454 = vadd.f32 %v432, %v451
    %s455 = sld [smem:[#allocation2 + $0x24]]
    %v456 = vstv %s455
    %v457 = vadd.f32 %v444, %v456
    %v458 = vadd.f32 %v445, %v456
    %v459 = vadd.f32 %v446, %v456
    %v460 = vsel %vm59, %v457, 0.0
    %v461 = vsel %vm60, %v458, 0.0
    %v462 = vsel %vm61, %v459, 0.0
    %s463 = sld [smem:[#allocation2 + $0x25]]
    %v464 = vstv %s463
    %v465 = vadd.f32 %v452, %v464
    %v466 = vadd.f32 %v453, %v464
    %v467 = vadd.f32 %v454, %v464
    %v468 = vsel %vm59, %v465, 0.0
    %v469 = vsel %vm60, %v466, 0.0
    %v470 = vsel %vm61, %v467, 0.0
    %vm471 = vcmp.ge.f32.partialorder %v460, 0.0
    %vm472 = vcmp.ge.f32.partialorder %v461, 0.0
    %vm473 = vcmp.ge.f32.partialorder %v462, 0.0
    %s474 = sld [smem:[#allocation2 + $0x26]]
    %v475 = vstv %s474
    %v476 = vmul.f32 %v475, %v460
    %v477 = vmul.f32 %v475, %v461
    %v478 = vmul.f32 %v475, %v462
    %v479 = vsel %vm471, %v460, %v476
    %v480 = vsel %vm472, %v461, %v477
    %v481 = vsel %vm473, %v462, %v478
    %vm482 = vcmp.ge.f32.partialorder %v468, 0.0
    %vm483 = vcmp.ge.f32.partialorder %v469, 0.0
    %vm484 = vcmp.ge.f32.partialorder %v470, 0.0
    %s485 = sld [smem:[#allocation2 + $0x27]]
    %v486 = vstv %s485
    %v487 = vmul.f32 %v486, %v468
    %v488 = vmul.f32 %v486, %v469
    %v489 = vmul.f32 %v486, %v470
    %v490 = vsel %vm482, %v468, %v487
    %v491 = vsel %vm483, %v469, %v488
    %v492 = vsel %vm484, %v470, %v489
    %493 = vrot.lane.b32.xlu0 %v479, 4
    %v494 = vpop.permute.xlu0 %493
    %495 = vrot.lane.b32.xlu0 %v480, 4
    %v496 = vpop.permute.xlu0 %495
    %497 = vrot.lane.b32.xlu0 %v481, 4
    %v498 = vpop.permute.xlu0 %497
    %s499 = sld [smem:[#allocation2 + $0x28]]
    %v500 = vstv %s499
    %v501 = vmul.f32 %v500, %v494
    %v502 = vmul.f32 %v500, %v496
    %v503 = vmul.f32 %v500, %v498
    %v504 = vadd.f32 %v501, 0.0
    %v505 = vadd.f32 %v502, 0.0
    %v506 = vadd.f32 %v503, 0.0
    %s507 = sld [smem:[#allocation2 + $0x3a]]
    %v508 = vstv %s507
    %v509 = vmul.f32 %v508, %v494
    %v510 = vmul.f32 %v508, %v496
    %v511 = vmul.f32 %v508, %v498
    %v512 = vadd.f32 %v509, 0.0
    %v513 = vadd.f32 %v510, 0.0
    %v514 = vadd.f32 %v511, 0.0
    %515 = vrot.lane.b32.xlu0 %v479, 3
    %v516 = vpop.permute.xlu0 %515
    %517 = vrot.lane.b32.xlu0 %v480, 3
    %v518 = vpop.permute.xlu0 %517
    %519 = vrot.lane.b32.xlu0 %v481, 3
    %v520 = vpop.permute.xlu0 %519
    %s521 = sld [smem:[#allocation2 + $0x29]]
    %v522 = vstv %s521
    %v523 = vmul.f32 %v522, %v516
    %v524 = vmul.f32 %v522, %v518
    %v525 = vmul.f32 %v522, %v520
    %v526 = vadd.f32 %v504, %v523
    %v527 = vadd.f32 %v505, %v524
    %v528 = vadd.f32 %v506, %v525
    %s529 = sld [smem:[#allocation2 + $0x3b]]
    %v530 = vstv %s529
    %v531 = vmul.f32 %v530, %v516
    %v532 = vmul.f32 %v530, %v518
    %v533 = vmul.f32 %v530, %v520
    %v534 = vadd.f32 %v512, %v531
    %v535 = vadd.f32 %v513, %v532
    %v536 = vadd.f32 %v514, %v533
    %537 = vrot.lane.b32.xlu0 %v479, 2
    %v538 = vpop.permute.xlu0 %537
    %539 = vrot.lane.b32.xlu0 %v480, 2
    %v540 = vpop.permute.xlu0 %539
    %541 = vrot.lane.b32.xlu0 %v481, 2
    %v542 = vpop.permute.xlu0 %541
    %s543 = sld [smem:[#allocation2 + $0x2a]]
    %v544 = vstv %s543
    %v545 = vmul.f32 %v544, %v538
    %v546 = vmul.f32 %v544, %v540
    %v547 = vmul.f32 %v544, %v542
    %v548 = vadd.f32 %v526, %v545
    %v549 = vadd.f32 %v527, %v546
    %v550 = vadd.f32 %v528, %v547
    %s551 = sld [smem:[#allocation2 + $0x3c]]
    %v552 = vstv %s551
    %v553 = vmul.f32 %v552, %v538
    %v554 = vmul.f32 %v552, %v540
    %v555 = vmul.f32 %v552, %v542
    %v556 = vadd.f32 %v534, %v553
    %v557 = vadd.f32 %v535, %v554
    %v558 = vadd.f32 %v536, %v555
    %559 = vrot.lane.b32.xlu0 %v479, 1
    %v560 = vpop.permute.xlu0 %559
    %561 = vrot.lane.b32.xlu0 %v480, 1
    %v562 = vpop.permute.xlu0 %561
    %563 = vrot.lane.b32.xlu0 %v481, 1
    %v564 = vpop.permute.xlu0 %563
    %s565 = sld [smem:[#allocation2 + $0x2b]]
    %v566 = vstv %s565
    %v567 = vmul.f32 %v566, %v560
    %v568 = vmul.f32 %v566, %v562
    %v569 = vmul.f32 %v566, %v564
    %v570 = vadd.f32 %v548, %v567
    %v571 = vadd.f32 %v549, %v568
    %v572 = vadd.f32 %v550, %v569
    %s573 = sld [smem:[#allocation2 + $0x3d]]
    %v574 = vstv %s573
    %v575 = vmul.f32 %v574, %v560
    %v576 = vmul.f32 %v574, %v562
    %v577 = vmul.f32 %v574, %v564
    %v578 = vadd.f32 %v556, %v575
    %v579 = vadd.f32 %v557, %v576
    %v580 = vadd.f32 %v558, %v577
    %s581 = sld [smem:[#allocation2 + $0x2c]]
    %v582 = vstv %s581
    %v583 = vmul.f32 %v582, %v479
    %v584 = vmul.f32 %v582, %v480
    %v585 = vmul.f32 %v582, %v481
    %v586 = vadd.f32 %v570, %v583
    %v587 = vadd.f32 %v571, %v584
    %v588 = vadd.f32 %v572, %v585
    %s589 = sld [smem:[#allocation2 + $0x3e]]
    %v590 = vstv %s589
    %v591 = vmul.f32 %v590, %v479
    %v592 = vmul.f32 %v590, %v480
    %v593 = vmul.f32 %v590, %v481
    %v594 = vadd.f32 %v578, %v591
    %v595 = vadd.f32 %v579, %v592
    %v596 = vadd.f32 %v580, %v593
    %597 = vrot.lane.b32.xlu0 %v479, 127
    %v598 = vpop.permute.xlu0 %597
    %599 = vrot.lane.b32.xlu0 %v480, 127
    %v600 = vpop.permute.xlu0 %599
    %601 = vrot.lane.b32.xlu0 %v481, 127
    %v602 = vpop.permute.xlu0 %601
    %s603 = sld [smem:[#allocation2 + $0x2d]]
    %v604 = vstv %s603
    %v605 = vmul.f32 %v604, %v598
    %v606 = vmul.f32 %v604, %v600
    %v607 = vmul.f32 %v604, %v602
    %v608 = vadd.f32 %v586, %v605
    %v609 = vadd.f32 %v587, %v606
    %v610 = vadd.f32 %v588, %v607
    %s611 = sld [smem:[#allocation2 + $0x3f]]
    %v612 = vstv %s611
    %v613 = vmul.f32 %v612, %v598
    %v614 = vmul.f32 %v612, %v600
    %v615 = vmul.f32 %v612, %v602
    %v616 = vadd.f32 %v594, %v613
    %v617 = vadd.f32 %v595, %v614
    %v618 = vadd.f32 %v596, %v615
    %619 = vrot.lane.b32.xlu0 %v479, 126
    %v620 = vpop.permute.xlu0 %619
    %621 = vrot.lane.b32.xlu0 %v480, 126
    %v622 = vpop.permute.xlu0 %621
    %623 = vrot.lane.b32.xlu0 %v481, 126
    %v624 = vpop.permute.xlu0 %623
    %s625 = sld [smem:[#allocation2 + $0x2e]]
    %v626 = vstv %s625
    %v627 = vmul.f32 %v626, %v620
    %v628 = vmul.f32 %v626, %v622
    %v629 = vmul.f32 %v626, %v624
    %v630 = vadd.f32 %v608, %v627
    %v631 = vadd.f32 %v609, %v628
    %v632 = vadd.f32 %v610, %v629
    %s633 = sld [smem:[#allocation2 + $0x40]]
    %v634 = vstv %s633
    %v635 = vmul.f32 %v634, %v620
    %v636 = vmul.f32 %v634, %v622
    %v637 = vmul.f32 %v634, %v624
    %v638 = vadd.f32 %v616, %v635
    %v639 = vadd.f32 %v617, %v636
    %v640 = vadd.f32 %v618, %v637
    %641 = vrot.lane.b32.xlu0 %v479, 125
    %v642 = vpop.permute.xlu0 %641
    %643 = vrot.lane.b32.xlu0 %v480, 125
    %v644 = vpop.permute.xlu0 %643
    %645 = vrot.lane.b32.xlu0 %v481, 125
    %v646 = vpop.permute.xlu0 %645
    %s647 = sld [smem:[#allocation2 + $0x2f]]
    %v648 = vstv %s647
    %v649 = vmul.f32 %v648, %v642
    %v650 = vmul.f32 %v648, %v644
    %v651 = vmul.f32 %v648, %v646
    %v652 = vadd.f32 %v630, %v649
    %v653 = vadd.f32 %v631, %v650
    %v654 = vadd.f32 %v632, %v651
    %s655 = sld [smem:[#allocation2 + $0x41]]
    %v656 = vstv %s655
    %v657 = vmul.f32 %v656, %v642
    %v658 = vmul.f32 %v656, %v644
    %v659 = vmul.f32 %v656, %v646
    %v660 = vadd.f32 %v638, %v657
    %v661 = vadd.f32 %v639, %v658
    %v662 = vadd.f32 %v640, %v659
    %663 = vrot.lane.b32.xlu0 %v479, 124
    %v664 = vpop.permute.xlu0 %663
    %665 = vrot.lane.b32.xlu0 %v480, 124
    %v666 = vpop.permute.xlu0 %665
    %667 = vrot.lane.b32.xlu0 %v481, 124
    %v668 = vpop.permute.xlu0 %667
    %s669 = sld [smem:[#allocation2 + $0x30]]
    %v670 = vstv %s669
    %v671 = vmul.f32 %v670, %v664
    %v672 = vmul.f32 %v670, %v666
    %v673 = vmul.f32 %v670, %v668
    %v674 = vadd.f32 %v652, %v671
    %v675 = vadd.f32 %v653, %v672
    %v676 = vadd.f32 %v654, %v673
    %s677 = sld [smem:[#allocation2 + $0x42]]
    %v678 = vstv %s677
    %v679 = vmul.f32 %v678, %v664
    %v680 = vmul.f32 %v678, %v666
    %v681 = vmul.f32 %v678, %v668
    %v682 = vadd.f32 %v660, %v679
    %v683 = vadd.f32 %v661, %v680
    %v684 = vadd.f32 %v662, %v681
    %685 = vrot.lane.b32.xlu0 %v490, 4
    %v686 = vpop.permute.xlu0 %685
    %687 = vrot.lane.b32.xlu0 %v491, 4
    %v688 = vpop.permute.xlu0 %687
    %689 = vrot.lane.b32.xlu0 %v492, 4
    %v690 = vpop.permute.xlu0 %689
    %s691 = sld [smem:[#allocation2 + $0x31]]
    %v692 = vstv %s691
    %v693 = vmul.f32 %v692, %v686
    %v694 = vmul.f32 %v692, %v688
    %v695 = vmul.f32 %v692, %v690
    %v696 = vadd.f32 %v674, %v693
    %v697 = vadd.f32 %v675, %v694
    %v698 = vadd.f32 %v676, %v695
    %s699 = sld [smem:[#allocation2 + $0x43]]
    %v700 = vstv %s699
    %v701 = vmul.f32 %v700, %v686
    %v702 = vmul.f32 %v700, %v688
    %v703 = vmul.f32 %v700, %v690
    %v704 = vadd.f32 %v682, %v701
    %v705 = vadd.f32 %v683, %v702
    %v706 = vadd.f32 %v684, %v703
    %707 = vrot.lane.b32.xlu0 %v490, 3
    %v708 = vpop.permute.xlu0 %707
    %709 = vrot.lane.b32.xlu0 %v491, 3
    %v710 = vpop.permute.xlu0 %709
    %711 = vrot.lane.b32.xlu0 %v492, 3
    %v712 = vpop.permute.xlu0 %711
    %s713 = sld [smem:[#allocation2 + $0x32]]
    %v714 = vstv %s713
    %v715 = vmul.f32 %v714, %v708
    %v716 = vmul.f32 %v714, %v710
    %v717 = vmul.f32 %v714, %v712
    %v718 = vadd.f32 %v696, %v715
    %v719 = vadd.f32 %v697, %v716
    %v720 = vadd.f32 %v698, %v717
    %s721 = sld [smem:[#allocation2 + $0x44]]
    %v722 = vstv %s721
    %v723 = vmul.f32 %v722, %v708
    %v724 = vmul.f32 %v722, %v710
    %v725 = vmul.f32 %v722, %v712
    %v726 = vadd.f32 %v704, %v723
    %v727 = vadd.f32 %v705, %v724
    %v728 = vadd.f32 %v706, %v725
    %729 = vrot.lane.b32.xlu0 %v490, 2
    %v730 = vpop.permute.xlu0 %729
    %731 = vrot.lane.b32.xlu0 %v491, 2
    %v732 = vpop.permute.xlu0 %731
    %733 = vrot.lane.b32.xlu0 %v492, 2
    %v734 = vpop.permute.xlu0 %733
    %s735 = sld [smem:[#allocation2 + $0x33]]
    %v736 = vstv %s735
    %v737 = vmul.f32 %v736, %v730
    %v738 = vmul.f32 %v736, %v732
    %v739 = vmul.f32 %v736, %v734
    %v740 = vadd.f32 %v718, %v737
    %v741 = vadd.f32 %v719, %v738
    %v742 = vadd.f32 %v720, %v739
    %s743 = sld [smem:[#allocation2 + $0x45]]
    %v744 = vstv %s743
    %v745 = vmul.f32 %v744, %v730
    %v746 = vmul.f32 %v744, %v732
    %v747 = vmul.f32 %v744, %v734
    %v748 = vadd.f32 %v726, %v745
    %v749 = vadd.f32 %v727, %v746
    %v750 = vadd.f32 %v728, %v747
    %751 = vrot.lane.b32.xlu0 %v490, 1
    %v752 = vpop.permute.xlu0 %751
    %753 = vrot.lane.b32.xlu0 %v491, 1
    %v754 = vpop.permute.xlu0 %753
    %755 = vrot.lane.b32.xlu0 %v492, 1
    %v756 = vpop.permute.xlu0 %755
    %s757 = sld [smem:[#allocation2 + $0x34]]
    %v758 = vstv %s757
    %v759 = vmul.f32 %v758, %v752
    %v760 = vmul.f32 %v758, %v754
    %v761 = vmul.f32 %v758, %v756
    %v762 = vadd.f32 %v740, %v759
    %v763 = vadd.f32 %v741, %v760
    %v764 = vadd.f32 %v742, %v761
    %s765 = sld [smem:[#allocation2 + $0x46]]
    %v766 = vstv %s765
    %v767 = vmul.f32 %v766, %v752
    %v768 = vmul.f32 %v766, %v754
    %v769 = vmul.f32 %v766, %v756
    %v770 = vadd.f32 %v748, %v767
    %v771 = vadd.f32 %v749, %v768
    %v772 = vadd.f32 %v750, %v769
    %s773 = sld [smem:[#allocation2 + $0x35]]
    %v774 = vstv %s773
    %v775 = vmul.f32 %v774, %v490
    %v776 = vmul.f32 %v774, %v491
    %v777 = vmul.f32 %v774, %v492
    %v778 = vadd.f32 %v762, %v775
    %v779 = vadd.f32 %v763, %v776
    %v780 = vadd.f32 %v764, %v777
    %s781 = sld [smem:[#allocation2 + $0x47]]
    %v782 = vstv %s781
    %v783 = vmul.f32 %v782, %v490
    %v784 = vmul.f32 %v782, %v491
    %v785 = vmul.f32 %v782, %v492
    %v786 = vadd.f32 %v770, %v783
    %v787 = vadd.f32 %v771, %v784
    %v788 = vadd.f32 %v772, %v785
    %789 = vrot.lane.b32.xlu0 %v490, 127
    %v790 = vpop.permute.xlu0 %789
    %791 = vrot.lane.b32.xlu0 %v491, 127
    %v792 = vpop.permute.xlu0 %791
    %793 = vrot.lane.b32.xlu0 %v492, 127
    %v794 = vpop.permute.xlu0 %793
    %s795 = sld [smem:[#allocation2 + $0x36]]
    %v796 = vstv %s795
    %v797 = vmul.f32 %v796, %v790
    %v798 = vmul.f32 %v796, %v792
    %v799 = vmul.f32 %v796, %v794
    %v800 = vadd.f32 %v778, %v797
    %v801 = vadd.f32 %v779, %v798
    %v802 = vadd.f32 %v780, %v799
    %s803 = sld [smem:[#allocation2 + $0x48]]
    %v804 = vstv %s803
    %v805 = vmul.f32 %v804, %v790
    %v806 = vmul.f32 %v804, %v792
    %v807 = vmul.f32 %v804, %v794
    %v808 = vadd.f32 %v786, %v805
    %v809 = vadd.f32 %v787, %v806
    %v810 = vadd.f32 %v788, %v807
    %811 = vrot.lane.b32.xlu0 %v490, 126
    %v812 = vpop.permute.xlu0 %811
    %813 = vrot.lane.b32.xlu0 %v491, 126
    %v814 = vpop.permute.xlu0 %813
    %815 = vrot.lane.b32.xlu0 %v492, 126
    %v816 = vpop.permute.xlu0 %815
    %s817 = sld [smem:[#allocation2 + $0x37]]
    %v818 = vstv %s817
    %v819 = vmul.f32 %v818, %v812
    %v820 = vmul.f32 %v818, %v814
    %v821 = vmul.f32 %v818, %v816
    %v822 = vadd.f32 %v800, %v819
    %v823 = vadd.f32 %v801, %v820
    %v824 = vadd.f32 %v802, %v821
    %s825 = sld [smem:[#allocation2 + $0x49]]
    %v826 = vstv %s825
    %v827 = vmul.f32 %v826, %v812
    %v828 = vmul.f32 %v826, %v814
    %v829 = vmul.f32 %v826, %v816
    %v830 = vadd.f32 %v808, %v827
    %v831 = vadd.f32 %v809, %v828
    %v832 = vadd.f32 %v810, %v829
    %833 = vrot.lane.b32.xlu0 %v490, 125
    %v834 = vpop.permute.xlu0 %833
    %835 = vrot.lane.b32.xlu0 %v491, 125
    %v836 = vpop.permute.xlu0 %835
    %837 = vrot.lane.b32.xlu0 %v492, 125
    %v838 = vpop.permute.xlu0 %837
    %s839 = sld [smem:[#allocation2 + $0x38]]
    %v840 = vstv %s839
    %v841 = vmul.f32 %v840, %v834
    %v842 = vmul.f32 %v840, %v836
    %v843 = vmul.f32 %v840, %v838
    %v844 = vadd.f32 %v822, %v841
    %v845 = vadd.f32 %v823, %v842
    %v846 = vadd.f32 %v824, %v843
    %s847 = sld [smem:[#allocation2 + $0x4a]]
    %v848 = vstv %s847
    %v849 = vmul.f32 %v848, %v834
    %v850 = vmul.f32 %v848, %v836
    %v851 = vmul.f32 %v848, %v838
    %v852 = vadd.f32 %v830, %v849
    %v853 = vadd.f32 %v831, %v850
    %v854 = vadd.f32 %v832, %v851
    %855 = vrot.lane.b32.xlu0 %v490, 124
    %v856 = vpop.permute.xlu0 %855
    %857 = vrot.lane.b32.xlu0 %v491, 124
    %v858 = vpop.permute.xlu0 %857
    %859 = vrot.lane.b32.xlu0 %v492, 124
    %v860 = vpop.permute.xlu0 %859
    %s861 = sld [smem:[#allocation2 + $0x39]]
    %v862 = vstv %s861
    %v863 = vmul.f32 %v862, %v856
    %v864 = vmul.f32 %v862, %v858
    %v865 = vmul.f32 %v862, %v860
    %v866 = vadd.f32 %v844, %v863
    %v867 = vadd.f32 %v845, %v864
    %v868 = vadd.f32 %v846, %v865
    %s869 = sld [smem:[#allocation2 + $0x4b]]
    %v870 = vstv %s869
    %v871 = vmul.f32 %v870, %v856
    %v872 = vmul.f32 %v870, %v858
    %v873 = vmul.f32 %v870, %v860
    %v874 = vadd.f32 %v852, %v871
    %v875 = vadd.f32 %v853, %v872
    %v876 = vadd.f32 %v854, %v873
    %s877 = sld [smem:[#allocation2 + $0x4c]]
    %v878 = vstv %s877
    %v879 = vadd.f32 %v866, %v878
    %v880 = vadd.f32 %v867, %v878
    %v881 = vadd.f32 %v868, %v878
    %v882 = vsel %vm59, %v879, 0.0
    %v883 = vsel %vm60, %v880, 0.0
    %v884 = vsel %vm61, %v881, 0.0
    %s885 = sld [smem:[#allocation2 + $0x4d]]
    %v886 = vstv %s885
    %v887 = vadd.f32 %v874, %v886
    %v888 = vadd.f32 %v875, %v886
    %v889 = vadd.f32 %v876, %v886
    %v890 = vsel %vm59, %v887, 0.0
    %v891 = vsel %vm60, %v888, 0.0
    %v892 = vsel %vm61, %v889, 0.0
    %vm893 = vcmp.ge.f32.partialorder %v882, 0.0
    %vm894 = vcmp.ge.f32.partialorder %v883, 0.0
    %vm895 = vcmp.ge.f32.partialorder %v884, 0.0
    %s896 = sld [smem:[#allocation2 + $0x4e]]
    %v897 = vstv %s896
    %v898 = vmul.f32 %v897, %v882
    %v899 = vmul.f32 %v897, %v883
    %v900 = vmul.f32 %v897, %v884
    %v901 = vsel %vm893, %v882, %v898
    %v902 = vsel %vm894, %v883, %v899
    %v903 = vsel %vm895, %v884, %v900
    %vm904 = vcmp.ge.f32.partialorder %v890, 0.0
    %vm905 = vcmp.ge.f32.partialorder %v891, 0.0
    %vm906 = vcmp.ge.f32.partialorder %v892, 0.0
    %s907 = sld [smem:[#allocation2 + $0x4f]]
    %v908 = vstv %s907
    %v909 = vmul.f32 %v908, %v890
    %v910 = vmul.f32 %v908, %v891
    %v911 = vmul.f32 %v908, %v892
    %v912 = vsel %vm904, %v890, %v909
    %v913 = vsel %vm905, %v891, %v910
    %v914 = vsel %vm906, %v892, %v911
    %v915 = vrot.slane %v901, 4
    %v916 = vrot.slane %v902, 4
    %v917 = vrot.slane %v903, 4
    %vm918 = vcmp.lt.s32.totalorder %v38, 4
    %v919 = vsel %vm918, %v916, %v917
    %v920 = vsel %vm918, %v915, %v916
    %v921 = vsel %vm918, %v917, %v915
    %s922 = sld [smem:[#allocation2 + $0x50]]
    %v923 = vstv %s922
    %v924 = vmul.f32 %v923, %v921
    %v925 = vmul.f32 %v923, %v920
    %v926 = vmul.f32 %v923, %v919
    %v927 = vadd.f32 %v924, 0.0
    %v928 = vadd.f32 %v925, 0.0
    %v929 = vadd.f32 %v926, 0.0
    %s930 = sld [smem:[#allocation2 + $0x62]]
    %v931 = vstv %s930
    %v932 = vmul.f32 %v931, %v921
    %v933 = vmul.f32 %v931, %v920
    %v934 = vmul.f32 %v931, %v919
    %v935 = vadd.f32 %v932, 0.0
    %v936 = vadd.f32 %v933, 0.0
    %v937 = vadd.f32 %v934, 0.0
    %v938 = vrot.slane %v901, 5
    %v939 = vrot.slane %v902, 5
    %v940 = vrot.slane %v903, 5
    %vm941 = vcmp.lt.s32.totalorder %v38, 3
    %v942 = vsel %vm941, %v939, %v940
    %v943 = vsel %vm941, %v938, %v939
    %v944 = vsel %vm941, %v940, %v938
    %s945 = sld [smem:[#allocation2 + $0x51]]
    %v946 = vstv %s945
    %v947 = vmul.f32 %v946, %v944
    %v948 = vmul.f32 %v946, %v943
    %v949 = vmul.f32 %v946, %v942
    %v950 = vadd.f32 %v927, %v947
    %v951 = vadd.f32 %v928, %v948
    %v952 = vadd.f32 %v929, %v949
    %s953 = sld [smem:[#allocation2 + $0x63]]
    %v954 = vstv %s953
    %v955 = vmul.f32 %v954, %v944
    %v956 = vmul.f32 %v954, %v943
    %v957 = vmul.f32 %v954, %v942
    %v958 = vadd.f32 %v935, %v955
    %v959 = vadd.f32 %v936, %v956
    %v960 = vadd.f32 %v937, %v957
    %v961 = vrot.slane %v901, 6
    %v962 = vrot.slane %v902, 6
    %v963 = vrot.slane %v903, 6
    %vm964 = vcmp.lt.s32.totalorder %v38, 2
    %v965 = vsel %vm964, %v962, %v963
    %v966 = vsel %vm964, %v961, %v962
    %v967 = vsel %vm964, %v963, %v961
    %s968 = sld [smem:[#allocation2 + $0x52]]
    %v969 = vstv %s968
    %v970 = vmul.f32 %v969, %v967
    %v971 = vmul.f32 %v969, %v966
    %v972 = vmul.f32 %v969, %v965
    %v973 = vadd.f32 %v950, %v970
    %v974 = vadd.f32 %v951, %v971
    %v975 = vadd.f32 %v952, %v972
    %s976 = sld [smem:[#allocation2 + $0x64]]
    %v977 = vstv %s976
    %v978 = vmul.f32 %v977, %v967
    %v979 = vmul.f32 %v977, %v966
    %v980 = vmul.f32 %v977, %v965
    %v981 = vadd.f32 %v958, %v978
    %v982 = vadd.f32 %v959, %v979
    %v983 = vadd.f32 %v960, %v980
    %v984 = vrot.slane %v901, 7
    %v985 = vrot.slane %v902, 7
    %v986 = vrot.slane %v903, 7
    %v987 = vsel %vm72, %v985, %v986
    %v988 = vsel %vm72, %v984, %v985
    %v989 = vsel %vm72, %v986, %v984
    %s990 = sld [smem:[#allocation2 + $0x53]]
    %v991 = vstv %s990
    %v992 = vmul.f32 %v991, %v989
    %v993 = vmul.f32 %v991, %v988
    %v994 = vmul.f32 %v991, %v987
    %v995 = vadd.f32 %v973, %v992
    %v996 = vadd.f32 %v974, %v993
    %v997 = vadd.f32 %v975, %v994
    %s998 = sld [smem:[#allocation2 + $0x65]]
    %v999 = vstv %s998
    %v1000 = vmul.f32 %v999, %v989
    %v1001 = vmul.f32 %v999, %v988
    %v1002 = vmul.f32 %v999, %v987
    %v1003 = vadd.f32 %v981, %v1000
    %v1004 = vadd.f32 %v982, %v1001
    %v1005 = vadd.f32 %v983, %v1002
    %s1006 = sld [smem:[#allocation2 + $0x54]]
    %v1007 = vstv %s1006
    %v1008 = vmul.f32 %v1007, %v901
    %v1009 = vmul.f32 %v1007, %v902
    %v1010 = vmul.f32 %v1007, %v903
    %v1011 = vadd.f32 %v995, %v1008
    %v1012 = vadd.f32 %v996, %v1009
    %v1013 = vadd.f32 %v997, %v1010
    %s1014 = sld [smem:[#allocation2 + $0x66]]
    %v1015 = vstv %s1014
    %v1016 = vmul.f32 %v1015, %v901
    %v1017 = vmul.f32 %v1015, %v902
    %v1018 = vmul.f32 %v1015, %v903
    %v1019 = vadd.f32 %v1003, %v1016
    %v1020 = vadd.f32 %v1004, %v1017
    %v1021 = vadd.f32 %v1005, %v1018
    %v1022 = vrot.slane %v901, 1
    %v1023 = vrot.slane %v902, 1
    %v1024 = vrot.slane %v903, 1
    %v1025 = vsel %vm199, %v1023, %v1024
    %v1026 = vsel %vm199, %v1022, %v1023
    %v1027 = vsel %vm199, %v1024, %v1022
    %s1028 = sld [smem:[#allocation2 + $0x55]]
    %v1029 = vstv %s1028
    %v1030 = vmul.f32 %v1029, %v1026
    %v1031 = vmul.f32 %v1029, %v1025
    %v1032 = vmul.f32 %v1029, %v1027
    %v1033 = vadd.f32 %v1011, %v1030
    %v1034 = vadd.f32 %v1012, %v1031
    %v1035 = vadd.f32 %v1013, %v1032
    %s1036 = sld [smem:[#allocation2 + $0x67]]
    %v1037 = vstv %s1036
    %v1038 = vmul.f32 %v1037, %v1026
    %v1039 = vmul.f32 %v1037, %v1025
    %v1040 = vmul.f32 %v1037, %v1027
    %v1041 = vadd.f32 %v1019, %v1038
    %v1042 = vadd.f32 %v1020, %v1039
    %v1043 = vadd.f32 %v1021, %v1040
    %v1044 = vrot.slane %v901, 2
    %v1045 = vrot.slane %v902, 2
    %v1046 = vrot.slane %v903, 2
    %vm1047 = vcmp.lt.s32.totalorder %v38, 6
    %v1048 = vsel %vm1047, %v1045, %v1046
    %v1049 = vsel %vm1047, %v1044, %v1045
    %v1050 = vsel %vm1047, %v1046, %v1044
    %s1051 = sld [smem:[#allocation2 + $0x56]]
    %v1052 = vstv %s1051
    %v1053 = vmul.f32 %v1052, %v1049
    %v1054 = vmul.f32 %v1052, %v1048
    %v1055 = vmul.f32 %v1052, %v1050
    %v1056 = vadd.f32 %v1033, %v1053
    %v1057 = vadd.f32 %v1034, %v1054
    %v1058 = vadd.f32 %v1035, %v1055
    %s1059 = sld [smem:[#allocation2 + $0x68]]
    %v1060 = vstv %s1059
    %v1061 = vmul.f32 %v1060, %v1049
    %v1062 = vmul.f32 %v1060, %v1048
    %v1063 = vmul.f32 %v1060, %v1050
    %v1064 = vadd.f32 %v1041, %v1061
    %v1065 = vadd.f32 %v1042, %v1062
    %v1066 = vadd.f32 %v1043, %v1063
    %v1067 = vrot.slane %v901, 3
    %v1068 = vrot.slane %v902, 3
    %v1069 = vrot.slane %v903, 3
    %vm1070 = vcmp.lt.s32.totalorder %v38, 5
    %v1071 = vsel %vm1070, %v1068, %v1069
    %v1072 = vsel %vm1070, %v1067, %v1068
    %v1073 = vsel %vm1070, %v1069, %v1067
    %s1074 = sld [smem:[#allocation2 + $0x57]]
    %v1075 = vstv %s1074
    %v1076 = vmul.f32 %v1075, %v1072
    %v1077 = vmul.f32 %v1075, %v1071
    %v1078 = vmul.f32 %v1075, %v1073
    %v1079 = vadd.f32 %v1056, %v1076
    %v1080 = vadd.f32 %v1057, %v1077
    %v1081 = vadd.f32 %v1058, %v1078
    %s1082 = sld [smem:[#allocation2 + $0x69]]
    %v1083 = vstv %s1082
    %v1084 = vmul.f32 %v1083, %v1072
    %v1085 = vmul.f32 %v1083, %v1071
    %v1086 = vmul.f32 %v1083, %v1073
    %v1087 = vadd.f32 %v1064, %v1084
    %v1088 = vadd.f32 %v1065, %v1085
    %v1089 = vadd.f32 %v1066, %v1086
    %s1090 = sld [smem:[#allocation2 + $0x58]]
    %v1091 = vstv %s1090
    %v1092 = vmul.f32 %v1091, %v920
    %v1093 = vmul.f32 %v1091, %v919
    %v1094 = vmul.f32 %v1091, %v921
    %v1095 = vadd.f32 %v1079, %v1092
    %v1096 = vadd.f32 %v1080, %v1093
    %v1097 = vadd.f32 %v1081, %v1094
    %s1098 = sld [smem:[#allocation2 + $0x6a]]
    %v1099 = vstv %s1098
    %v1100 = vmul.f32 %v1099, %v920
    %v1101 = vmul.f32 %v1099, %v919
    %v1102 = vmul.f32 %v1099, %v921
    %v1103 = vadd.f32 %v1087, %v1100
    %v1104 = vadd.f32 %v1088, %v1101
    %v1105 = vadd.f32 %v1089, %v1102
    %v1106 = vrot.slane %v912, 4
    %v1107 = vrot.slane %v913, 4
    %v1108 = vrot.slane %v914, 4
    %v1109 = vsel %vm918, %v1107, %v1108
    %v1110 = vsel %vm918, %v1106, %v1107
    %v1111 = vsel %vm918, %v1108, %v1106
    %s1112 = sld [smem:[#allocation2 + $0x59]]
    %v1113 = vstv %s1112
    %v1114 = vmul.f32 %v1113, %v1111
    %v1115 = vmul.f32 %v1113, %v1110
    %v1116 = vmul.f32 %v1113, %v1109
    %v1117 = vadd.f32 %v1095, %v1114
    %v1118 = vadd.f32 %v1096, %v1115
    %v1119 = vadd.f32 %v1097, %v1116
    %s1120 = sld [smem:[#allocation2 + $0x6b]]
    %v1121 = vstv %s1120
    %v1122 = vmul.f32 %v1121, %v1111
    %v1123 = vmul.f32 %v1121, %v1110
    %v1124 = vmul.f32 %v1121, %v1109
    %v1125 = vadd.f32 %v1103, %v1122
    %v1126 = vadd.f32 %v1104, %v1123
    %v1127 = vadd.f32 %v1105, %v1124
    %v1128 = vrot.slane %v912, 5
    %v1129 = vrot.slane %v913, 5
    %v1130 = vrot.slane %v914, 5
    %v1131 = vsel %vm941, %v1129, %v1130
    %v1132 = vsel %vm941, %v1128, %v1129
    %v1133 = vsel %vm941, %v1130, %v1128
    %s1134 = sld [smem:[#allocation2 + $0x5a]]
    %v1135 = vstv %s1134
    %v1136 = vmul.f32 %v1135, %v1133
    %v1137 = vmul.f32 %v1135, %v1132
    %v1138 = vmul.f32 %v1135, %v1131
    %v1139 = vadd.f32 %v1117, %v1136
    %v1140 = vadd.f32 %v1118, %v1137
    %v1141 = vadd.f32 %v1119, %v1138
    %s1142 = sld [smem:[#allocation2 + $0x6c]]
    %v1143 = vstv %s1142
    %v1144 = vmul.f32 %v1143, %v1133
    %v1145 = vmul.f32 %v1143, %v1132
    %v1146 = vmul.f32 %v1143, %v1131
    %v1147 = vadd.f32 %v1125, %v1144
    %v1148 = vadd.f32 %v1126, %v1145
    %v1149 = vadd.f32 %v1127, %v1146
    %v1150 = vrot.slane %v912, 6
    %v1151 = vrot.slane %v913, 6
    %v1152 = vrot.slane %v914, 6
    %v1153 = vsel %vm964, %v1151, %v1152
    %v1154 = vsel %vm964, %v1150, %v1151
    %v1155 = vsel %vm964, %v1152, %v1150
    %s1156 = sld [smem:[#allocation2 + $0x5b]]
    %v1157 = vstv %s1156
    %v1158 = vmul.f32 %v1157, %v1155
    %v1159 = vmul.f32 %v1157, %v1154
    %v1160 = vmul.f32 %v1157, %v1153
    %v1161 = vadd.f32 %v1139, %v1158
    %v1162 = vadd.f32 %v1140, %v1159
    %v1163 = vadd.f32 %v1141, %v1160
    %s1164 = sld [smem:[#allocation2 + $0x6d]]
    %v1165 = vstv %s1164
    %v1166 = vmul.f32 %v1165, %v1155
    %v1167 = vmul.f32 %v1165, %v1154
    %v1168 = vmul.f32 %v1165, %v1153
    %v1169 = vadd.f32 %v1147, %v1166
    %v1170 = vadd.f32 %v1148, %v1167
    %v1171 = vadd.f32 %v1149, %v1168
    %v1172 = vrot.slane %v912, 7
    %v1173 = vrot.slane %v913, 7
    %v1174 = vrot.slane %v914, 7
    %v1175 = vsel %vm72, %v1173, %v1174
    %v1176 = vsel %vm72, %v1172, %v1173
    %v1177 = vsel %vm72, %v1174, %v1172
    %s1178 = sld [smem:[#allocation2 + $0x5c]]
    %v1179 = vstv %s1178
    %v1180 = vmul.f32 %v1179, %v1177
    %v1181 = vmul.f32 %v1179, %v1176
    %v1182 = vmul.f32 %v1179, %v1175
    %v1183 = vadd.f32 %v1161, %v1180
    %v1184 = vadd.f32 %v1162, %v1181
    %v1185 = vadd.f32 %v1163, %v1182
    %s1186 = sld [smem:[#allocation2 + $0x6e]]
    %v1187 = vstv %s1186
    %v1188 = vmul.f32 %v1187, %v1177
    %v1189 = vmul.f32 %v1187, %v1176
    %v1190 = vmul.f32 %v1187, %v1175
    %v1191 = vadd.f32 %v1169, %v1188
    %v1192 = vadd.f32 %v1170, %v1189
    %v1193 = vadd.f32 %v1171, %v1190
    %s1194 = sld [smem:[#allocation2 + $0x5d]]
    %v1195 = vstv %s1194
    %v1196 = vmul.f32 %v1195, %v912
    %v1197 = vmul.f32 %v1195, %v913
    %v1198 = vmul.f32 %v1195, %v914
    %v1199 = vadd.f32 %v1183, %v1196
    %v1200 = vadd.f32 %v1184, %v1197
    %v1201 = vadd.f32 %v1185, %v1198
    %s1202 = sld [smem:[#allocation2 + $0x6f]]
    %v1203 = vstv %s1202
    %v1204 = vmul.f32 %v1203, %v912
    %v1205 = vmul.f32 %v1203, %v913
    %v1206 = vmul.f32 %v1203, %v914
    %v1207 = vadd.f32 %v1191, %v1204
    %v1208 = vadd.f32 %v1192, %v1205
    %v1209 = vadd.f32 %v1193, %v1206
    %v1210 = vrot.slane %v912, 1
    %v1211 = vrot.slane %v913, 1
    %v1212 = vrot.slane %v914, 1
    %v1213 = vsel %vm199, %v1211, %v1212
    %v1214 = vsel %vm199, %v1210, %v1211
    %v1215 = vsel %vm199, %v1212, %v1210
    %s1216 = sld [smem:[#allocation2 + $0x5e]]
    %v1217 = vstv %s1216
    %v1218 = vmul.f32 %v1217, %v1214
    %v1219 = vmul.f32 %v1217, %v1213
    %v1220 = vmul.f32 %v1217, %v1215
    %v1221 = vadd.f32 %v1199, %v1218
    %v1222 = vadd.f32 %v1200, %v1219
    %v1223 = vadd.f32 %v1201, %v1220
    %s1224 = sld [smem:[#allocation2 + $0x70]]
    %v1225 = vstv %s1224
    %v1226 = vmul.f32 %v1225, %v1214
    %v1227 = vmul.f32 %v1225, %v1213
    %v1228 = vmul.f32 %v1225, %v1215
    %v1229 = vadd.f32 %v1207, %v1226
    %v1230 = vadd.f32 %v1208, %v1227
    %v1231 = vadd.f32 %v1209, %v1228
    %v1232 = vrot.slane %v912, 2
    %v1233 = vrot.slane %v913, 2
    %v1234 = vrot.slane %v914, 2
    %v1235 = vsel %vm1047, %v1233, %v1234
    %v1236 = vsel %vm1047, %v1232, %v1233
    %v1237 = vsel %vm1047, %v1234, %v1232
    %s1238 = sld [smem:[#allocation2 + $0x5f]]
    %v1239 = vstv %s1238
    %v1240 = vmul.f32 %v1239, %v1236
    %v1241 = vmul.f32 %v1239, %v1235
    %v1242 = vmul.f32 %v1239, %v1237
    %v1243 = vadd.f32 %v1221, %v1240
    %v1244 = vadd.f32 %v1222, %v1241
    %v1245 = vadd.f32 %v1223, %v1242
    %s1246 = sld [smem:[#allocation2 + $0x71]]
    %v1247 = vstv %s1246
    %v1248 = vmul.f32 %v1247, %v1236
    %v1249 = vmul.f32 %v1247, %v1235
    %v1250 = vmul.f32 %v1247, %v1237
    %v1251 = vadd.f32 %v1229, %v1248
    %v1252 = vadd.f32 %v1230, %v1249
    %v1253 = vadd.f32 %v1231, %v1250
    %v1254 = vrot.slane %v912, 3
    %v1255 = vrot.slane %v913, 3
    %v1256 = vrot.slane %v914, 3
    %v1257 = vsel %vm1070, %v1255, %v1256
    %v1258 = vsel %vm1070, %v1254, %v1255
    %v1259 = vsel %vm1070, %v1256, %v1254
    %s1260 = sld [smem:[#allocation2 + $0x60]]
    %v1261 = vstv %s1260
    %v1262 = vmul.f32 %v1261, %v1258
    %v1263 = vmul.f32 %v1261, %v1257
    %v1264 = vmul.f32 %v1261, %v1259
    %v1265 = vadd.f32 %v1243, %v1262
    %v1266 = vadd.f32 %v1244, %v1263
    %v1267 = vadd.f32 %v1245, %v1264
    %s1268 = sld [smem:[#allocation2 + $0x72]]
    %v1269 = vstv %s1268
    %v1270 = vmul.f32 %v1269, %v1258
    %v1271 = vmul.f32 %v1269, %v1257
    %v1272 = vmul.f32 %v1269, %v1259
    %v1273 = vadd.f32 %v1251, %v1270
    %v1274 = vadd.f32 %v1252, %v1271
    %v1275 = vadd.f32 %v1253, %v1272
    %s1276 = sld [smem:[#allocation2 + $0x61]]
    %v1277 = vstv %s1276
    %v1278 = vmul.f32 %v1277, %v1110
    %v1279 = vmul.f32 %v1277, %v1109
    %v1280 = vmul.f32 %v1277, %v1111
    %v1281 = vadd.f32 %v1265, %v1278
    %v1282 = vadd.f32 %v1266, %v1279
    %v1283 = vadd.f32 %v1267, %v1280
    %s1284 = sld [smem:[#allocation2 + $0x73]]
    %v1285 = vstv %s1284
    %v1286 = vmul.f32 %v1285, %v1110
    %v1287 = vmul.f32 %v1285, %v1109
    %v1288 = vmul.f32 %v1285, %v1111
    %v1289 = vadd.f32 %v1273, %v1286
    %v1290 = vadd.f32 %v1274, %v1287
    %v1291 = vadd.f32 %v1275, %v1288
    %s1292 = sld [smem:[#allocation2 + $0x74]]
    %v1293 = vstv %s1292
    %v1294 = vadd.f32 %v1281, %v1293
    %v1295 = vadd.f32 %v1282, %v1293
    %v1296 = vadd.f32 %v1283, %v1293
    %v1297 = vsel %vm59, %v1294, 0.0
    %v1298 = vsel %vm60, %v1295, 0.0
    %v1299 = vsel %vm61, %v1296, 0.0
    %s1300 = sld [smem:[#allocation2 + $0x75]]
    %v1301 = vstv %s1300
    %v1302 = vadd.f32 %v1289, %v1301
    %v1303 = vadd.f32 %v1290, %v1301
    %v1304 = vadd.f32 %v1291, %v1301
    %v1305 = vsel %vm59, %v1302, 0.0
    %v1306 = vsel %vm60, %v1303, 0.0
    %v1307 = vsel %vm61, %v1304, 0.0
    %v1308 = vrot.slane %v62, 6
    %v1309 = vrot.slane %v63, 6
    %v1310 = vrot.slane %v64, 6
    %v1311 = vsel %vm964, %v1309, %v1310
    %v1312 = vsel %vm964, %v1308, %v1309
    %v1313 = vsel %vm964, %v1310, %v1308
    %s1314 = sld [smem:[#allocation2 + $0x76]]
    %v1315 = vstv %s1314
    %v1316 = vmul.f32 %v1315, %v1313
    %v1317 = vmul.f32 %v1315, %v1312
    %v1318 = vmul.f32 %v1315, %v1311
    %v1319 = vadd.f32 %v1316, 0.0
    %v1320 = vadd.f32 %v1317, 0.0
    %v1321 = vadd.f32 %v1318, 0.0
    %s1322 = sld [smem:[#allocation2 + $0x80]]
    %v1323 = vstv %s1322
    %v1324 = vmul.f32 %v1323, %v1313
    %v1325 = vmul.f32 %v1323, %v1312
    %v1326 = vmul.f32 %v1323, %v1311
    %v1327 = vadd.f32 %v1324, 0.0
    %v1328 = vadd.f32 %v1325, 0.0
    %v1329 = vadd.f32 %v1326, 0.0
    %s1330 = sld [smem:[#allocation2 + $0x77]]
    %v1331 = vstv %s1330
    %v1332 = vmul.f32 %v1331, %v75
    %v1333 = vmul.f32 %v1331, %v74
    %v1334 = vmul.f32 %v1331, %v73
    %v1335 = vadd.f32 %v1319, %v1332
    %v1336 = vadd.f32 %v1320, %v1333
    %v1337 = vadd.f32 %v1321, %v1334
    %s1338 = sld [smem:[#allocation2 + $0x81]]
    %v1339 = vstv %s1338
    %v1340 = vmul.f32 %v1339, %v75
    %v1341 = vmul.f32 %v1339, %v74
    %v1342 = vmul.f32 %v1339, %v73
    %v1343 = vadd.f32 %v1327, %v1340
    %v1344 = vadd.f32 %v1328, %v1341
    %v1345 = vadd.f32 %v1329, %v1342
    %s1346 = sld [smem:[#allocation2 + $0x78]]
    %v1347 = vstv %s1346
    %v1348 = vmul.f32 %v1347, %v62
    %v1349 = vmul.f32 %v1347, %v63
    %v1350 = vmul.f32 %v1347, %v64
    %v1351 = vadd.f32 %v1335, %v1348
    %v1352 = vadd.f32 %v1336, %v1349
    %v1353 = vadd.f32 %v1337, %v1350
    %s1354 = sld [smem:[#allocation2 + $0x82]]
    %v1355 = vstv %s1354
    %v1356 = vmul.f32 %v1355, %v62
    %v1357 = vmul.f32 %v1355, %v63
    %v1358 = vmul.f32 %v1355, %v64
    %v1359 = vadd.f32 %v1343, %v1356
    %v1360 = vadd.f32 %v1344, %v1357
    %v1361 = vadd.f32 %v1345, %v1358
    %s1362 = sld [smem:[#allocation2 + $0x79]]
    %v1363 = vstv %s1362
    %v1364 = vmul.f32 %v1363, %v201
    %v1365 = vmul.f32 %v1363, %v200
    %v1366 = vmul.f32 %v1363, %v202
    %v1367 = vadd.f32 %v1351, %v1364
    %v1368 = vadd.f32 %v1352, %v1365
    %v1369 = vadd.f32 %v1353, %v1366
    %s1370 = sld [smem:[#allocation2 + $0x83]]
    %v1371 = vstv %s1370
    %v1372 = vmul.f32 %v1371, %v201
    %v1373 = vmul.f32 %v1371, %v200
    %v1374 = vmul.f32 %v1371, %v202
    %v1375 = vadd.f32 %v1359, %v1372
    %v1376 = vadd.f32 %v1360, %v1373
    %v1377 = vadd.f32 %v1361, %v1374
    %v1378 = vrot.slane %v62, 2
    %v1379 = vrot.slane %v63, 2
    %v1380 = vrot.slane %v64, 2
    %v1381 = vsel %vm1047, %v1379, %v1380
    %v1382 = vsel %vm1047, %v1378, %v1379
    %v1383 = vsel %vm1047, %v1380, %v1378
    %s1384 = sld [smem:[#allocation2 + $0x7a]]
    %v1385 = vstv %s1384
    %v1386 = vmul.f32 %v1385, %v1382
    %v1387 = vmul.f32 %v1385, %v1381
    %v1388 = vmul.f32 %v1385, %v1383
    %v1389 = vadd.f32 %v1367, %v1386
    %v1390 = vadd.f32 %v1368, %v1387
    %v1391 = vadd.f32 %v1369, %v1388
    %s1392 = sld [smem:[#allocation2 + $0x84]]
    %v1393 = vstv %s1392
    %v1394 = vmul.f32 %v1393, %v1382
    %v1395 = vmul.f32 %v1393, %v1381
    %v1396 = vmul.f32 %v1393, %v1383
    %v1397 = vadd.f32 %v1375, %v1394
    %v1398 = vadd.f32 %v1376, %v1395
    %v1399 = vadd.f32 %v1377, %v1396
    %v1400 = vrot.slane %v66, 6
    %v1401 = vrot.slane %v67, 6
    %v1402 = vrot.slane %v68, 6
    %v1403 = vsel %vm964, %v1401, %v1402
    %v1404 = vsel %vm964, %v1400, %v1401
    %v1405 = vsel %vm964, %v1402, %v1400
    %s1406 = sld [smem:[#allocation2 + $0x7b]]
    %v1407 = vstv %s1406
    %v1408 = vmul.f32 %v1407, %v1405
    %v1409 = vmul.f32 %v1407, %v1404
    %v1410 = vmul.f32 %v1407, %v1403
    %v1411 = vadd.f32 %v1389, %v1408
    %v1412 = vadd.f32 %v1390, %v1409
    %v1413 = vadd.f32 %v1391, %v1410
    %s1414 = sld [smem:[#allocation2 + $0x85]]
    %v1415 = vstv %s1414
    %v1416 = vmul.f32 %v1415, %v1405
    %v1417 = vmul.f32 %v1415, %v1404
    %v1418 = vmul.f32 %v1415, %v1403
    %v1419 = vadd.f32 %v1397, %v1416
    %v1420 = vadd.f32 %v1398, %v1417
    %v1421 = vadd.f32 %v1399, %v1418
    %s1422 = sld [smem:[#allocation2 + $0x7c]]
    %v1423 = vstv %s1422
    %v1424 = vmul.f32 %v1423, %v268
    %v1425 = vmul.f32 %v1423, %v267
    %v1426 = vmul.f32 %v1423, %v266
    %v1427 = vadd.f32 %v1411, %v1424
    %v1428 = vadd.f32 %v1412, %v1425
    %v1429 = vadd.f32 %v1413, %v1426
    %s1430 = sld [smem:[#allocation2 + $0x86]]
    %v1431 = vstv %s1430
    %v1432 = vmul.f32 %v1431, %v268
    %v1433 = vmul.f32 %v1431, %v267
    %v1434 = vmul.f32 %v1431, %v266
    %v1435 = vadd.f32 %v1419, %v1432
    %v1436 = vadd.f32 %v1420, %v1433
    %v1437 = vadd.f32 %v1421, %v1434
    %s1438 = sld [smem:[#allocation2 + $0x7d]]
    %v1439 = vstv %s1438
    %v1440 = vmul.f32 %v1439, %v66
    %v1441 = vmul.f32 %v1439, %v67
    %v1442 = vmul.f32 %v1439, %v68
    %v1443 = vadd.f32 %v1427, %v1440
    %v1444 = vadd.f32 %v1428, %v1441
    %v1445 = vadd.f32 %v1429, %v1442
    %s1446 = sld [smem:[#allocation2 + $0x87]]
    %v1447 = vstv %s1446
    %v1448 = vmul.f32 %v1447, %v66
    %v1449 = vmul.f32 %v1447, %v67
    %v1450 = vmul.f32 %v1447, %v68
    %v1451 = vadd.f32 %v1435, %v1448
    %v1452 = vadd.f32 %v1436, %v1449
    %v1453 = vadd.f32 %v1437, %v1450
    %s1454 = sld [smem:[#allocation2 + $0x7e]]
    %v1455 = vstv %s1454
    %v1456 = vmul.f32 %v1455, %v393
    %v1457 = vmul.f32 %v1455, %v392
    %v1458 = vmul.f32 %v1455, %v394
    %v1459 = vadd.f32 %v1443, %v1456
    %v1460 = vadd.f32 %v1444, %v1457
    %v1461 = vadd.f32 %v1445, %v1458
    %s1462 = sld [smem:[#allocation2 + $0x88]]
    %v1463 = vstv %s1462
    %v1464 = vmul.f32 %v1463, %v393
    %v1465 = vmul.f32 %v1463, %v392
    %v1466 = vmul.f32 %v1463, %v394
    %v1467 = vadd.f32 %v1451, %v1464
    %v1468 = vadd.f32 %v1452, %v1465
    %v1469 = vadd.f32 %v1453, %v1466
    %v1470 = vrot.slane %v66, 2
    %v1471 = vrot.slane %v67, 2
    %v1472 = vrot.slane %v68, 2
    %v1473 = vsel %vm1047, %v1471, %v1472
    %v1474 = vsel %vm1047, %v1470, %v1471
    %v1475 = vsel %vm1047, %v1472, %v1470
    %s1476 = sld [smem:[#allocation2 + $0x7f]]
    %v1477 = vstv %s1476
    %v1478 = vmul.f32 %v1477, %v1474
    %v1479 = vmul.f32 %v1477, %v1473
    %v1480 = vmul.f32 %v1477, %v1475
    %v1481 = vadd.f32 %v1459, %v1478
    %v1482 = vadd.f32 %v1460, %v1479
    %v1483 = vadd.f32 %v1461, %v1480
    %s1484 = sld [smem:[#allocation2 + $0x89]]
    %v1485 = vstv %s1484
    %v1486 = vmul.f32 %v1485, %v1474
    %v1487 = vmul.f32 %v1485, %v1473
    %v1488 = vmul.f32 %v1485, %v1475
    %v1489 = vadd.f32 %v1467, %v1486
    %v1490 = vadd.f32 %v1468, %v1487
    %v1491 = vadd.f32 %v1469, %v1488
    %s1492 = sld [smem:[#allocation2 + $0x8a]]
    %v1493 = vstv %s1492
    %v1494 = vadd.f32 %v1481, %v1493
    %v1495 = vadd.f32 %v1482, %v1493
    %v1496 = vadd.f32 %v1483, %v1493
    %v1497 = vsel %vm59, %v1494, 0.0
    %v1498 = vsel %vm60, %v1495, 0.0
    %v1499 = vsel %vm61, %v1496, 0.0
    %s1500 = sld [smem:[#allocation2 + $0x8b]]
    %v1501 = vstv %s1500
    %v1502 = vadd.f32 %v1489, %v1501
    %v1503 = vadd.f32 %v1490, %v1501
    %v1504 = vadd.f32 %v1491, %v1501
    %v1505 = vsel %vm59, %v1502, 0.0
    %v1506 = vsel %vm60, %v1503, 0.0
    %v1507 = vsel %vm61, %v1504, 0.0
    %vm1508 = vcmp.ge.f32.partialorder %v1497, 0.0
    %vm1509 = vcmp.ge.f32.partialorder %v1498, 0.0
    %vm1510 = vcmp.ge.f32.partialorder %v1499, 0.0
    %s1511 = sld [smem:[#allocation2 + $0x8c]]
    %v1512 = vstv %s1511
    %v1513 = vmul.f32 %v1512, %v1497
    %v1514 = vmul.f32 %v1512, %v1498
    %v1515 = vmul.f32 %v1512, %v1499
    %v1516 = vsel %vm1508, %v1497, %v1513
    %v1517 = vsel %vm1509, %v1498, %v1514
    %v1518 = vsel %vm1510, %v1499, %v1515
    %vm1519 = vcmp.ge.f32.partialorder %v1505, 0.0
    %vm1520 = vcmp.ge.f32.partialorder %v1506, 0.0
    %vm1521 = vcmp.ge.f32.partialorder %v1507, 0.0
    %s1522 = sld [smem:[#allocation2 + $0x8d]]
    %v1523 = vstv %s1522
    %v1524 = vmul.f32 %v1523, %v1505
    %v1525 = vmul.f32 %v1523, %v1506
    %v1526 = vmul.f32 %v1523, %v1507
    %v1527 = vsel %vm1519, %v1505, %v1524
    %v1528 = vsel %vm1520, %v1506, %v1525
    %v1529 = vsel %vm1521, %v1507, %v1526
    %1530 = vrot.lane.b32.xlu0 %v1516, 2
    %v1531 = vpop.permute.xlu0 %1530
    %1532 = vrot.lane.b32.xlu0 %v1517, 2
    %v1533 = vpop.permute.xlu0 %1532
    %1534 = vrot.lane.b32.xlu0 %v1518, 2
    %v1535 = vpop.permute.xlu0 %1534
    %s1536 = sld [smem:[#allocation2 + $0x8e]]
    %v1537 = vstv %s1536
    %v1538 = vmul.f32 %v1537, %v1531
    %v1539 = vmul.f32 %v1537, %v1533
    %v1540 = vmul.f32 %v1537, %v1535
    %v1541 = vadd.f32 %v1538, 0.0
    %v1542 = vadd.f32 %v1539, 0.0
    %v1543 = vadd.f32 %v1540, 0.0
    %s1544 = sld [smem:[#allocation2 + $0x98]]
    %v1545 = vstv %s1544
    %v1546 = vmul.f32 %v1545, %v1531
    %v1547 = vmul.f32 %v1545, %v1533
    %v1548 = vmul.f32 %v1545, %v1535
    %v1549 = vadd.f32 %v1546, 0.0
    %v1550 = vadd.f32 %v1547, 0.0
    %v1551 = vadd.f32 %v1548, 0.0
    %1552 = vrot.lane.b32.xlu0 %v1516, 1
    %v1553 = vpop.permute.xlu0 %1552
    %1554 = vrot.lane.b32.xlu0 %v1517, 1
    %v1555 = vpop.permute.xlu0 %1554
    %1556 = vrot.lane.b32.xlu0 %v1518, 1
    %v1557 = vpop.permute.xlu0 %1556
    %s1558 = sld [smem:[#allocation2 + $0x8f]]
    %v1559 = vstv %s1558
    %v1560 = vmul.f32 %v1559, %v1553
    %v1561 = vmul.f32 %v1559, %v1555
    %v1562 = vmul.f32 %v1559, %v1557
    %v1563 = vadd.f32 %v1541, %v1560
    %v1564 = vadd.f32 %v1542, %v1561
    %v1565 = vadd.f32 %v1543, %v1562
    %s1566 = sld [smem:[#allocation2 + $0x99]]
    %v1567 = vstv %s1566
    %v1568 = vmul.f32 %v1567, %v1553
    %v1569 = vmul.f32 %v1567, %v1555
    %v1570 = vmul.f32 %v1567, %v1557
    %v1571 = vadd.f32 %v1549, %v1568
    %v1572 = vadd.f32 %v1550, %v1569
    %v1573 = vadd.f32 %v1551, %v1570
    %s1574 = sld [smem:[#allocation2 + $0x90]]
    %v1575 = vstv %s1574
    %v1576 = vmul.f32 %v1575, %v1516
    %v1577 = vmul.f32 %v1575, %v1517
    %v1578 = vmul.f32 %v1575, %v1518
    %v1579 = vadd.f32 %v1563, %v1576
    %v1580 = vadd.f32 %v1564, %v1577
    %v1581 = vadd.f32 %v1565, %v1578
    %s1582 = sld [smem:[#allocation2 + $0x9a]]
    %v1583 = vstv %s1582
    %v1584 = vmul.f32 %v1583, %v1516
    %v1585 = vmul.f32 %v1583, %v1517
    %v1586 = vmul.f32 %v1583, %v1518
    %v1587 = vadd.f32 %v1571, %v1584
    %v1588 = vadd.f32 %v1572, %v1585
    %v1589 = vadd.f32 %v1573, %v1586
    %1590 = vrot.lane.b32.xlu0 %v1516, 127
    %v1591 = vpop.permute.xlu0 %1590
    %1592 = vrot.lane.b32.xlu0 %v1517, 127
    %v1593 = vpop.permute.xlu0 %1592
    %1594 = vrot.lane.b32.xlu0 %v1518, 127
    %v1595 = vpop.permute.xlu0 %1594
    %s1596 = sld [smem:[#allocation2 + $0x91]]
    %v1597 = vstv %s1596
    %v1598 = vmul.f32 %v1597, %v1591
    %v1599 = vmul.f32 %v1597, %v1593
    %v1600 = vmul.f32 %v1597, %v1595
    %v1601 = vadd.f32 %v1579, %v1598
    %v1602 = vadd.f32 %v1580, %v1599
    %v1603 = vadd.f32 %v1581, %v1600
    %s1604 = sld [smem:[#allocation2 + $0x9b]]
    %v1605 = vstv %s1604
    %v1606 = vmul.f32 %v1605, %v1591
    %v1607 = vmul.f32 %v1605, %v1593
    %v1608 = vmul.f32 %v1605, %v1595
    %v1609 = vadd.f32 %v1587, %v1606
    %v1610 = vadd.f32 %v1588, %v1607
    %v1611 = vadd.f32 %v1589, %v1608
    %1612 = vrot.lane.b32.xlu0 %v1516, 126
    %v1613 = vpop.permute.xlu0 %1612
    %1614 = vrot.lane.b32.xlu0 %v1517, 126
    %v1615 = vpop.permute.xlu0 %1614
    %1616 = vrot.lane.b32.xlu0 %v1518, 126
    %v1617 = vpop.permute.xlu0 %1616
    %s1618 = sld [smem:[#allocation2 + $0x92]]
    %v1619 = vstv %s1618
    %v1620 = vmul.f32 %v1619, %v1613
    %v1621 = vmul.f32 %v1619, %v1615
    %v1622 = vmul.f32 %v1619, %v1617
    %v1623 = vadd.f32 %v1601, %v1620
    %v1624 = vadd.f32 %v1602, %v1621
    %v1625 = vadd.f32 %v1603, %v1622
    %s1626 = sld [smem:[#allocation2 + $0x9c]]
    %v1627 = vstv %s1626
    %v1628 = vmul.f32 %v1627, %v1613
    %v1629 = vmul.f32 %v1627, %v1615
    %v1630 = vmul.f32 %v1627, %v1617
    %v1631 = vadd.f32 %v1609, %v1628
    %v1632 = vadd.f32 %v1610, %v1629
    %v1633 = vadd.f32 %v1611, %v1630
    %1634 = vrot.lane.b32.xlu0 %v1527, 2
    %v1635 = vpop.permute.xlu0 %1634
    %1636 = vrot.lane.b32.xlu0 %v1528, 2
    %v1637 = vpop.permute.xlu0 %1636
    %1638 = vrot.lane.b32.xlu0 %v1529, 2
    %v1639 = vpop.permute.xlu0 %1638
    %s1640 = sld [smem:[#allocation2 + $0x93]]
    %v1641 = vstv %s1640
    %v1642 = vmul.f32 %v1641, %v1635
    %v1643 = vmul.f32 %v1641, %v1637
    %v1644 = vmul.f32 %v1641, %v1639
    %v1645 = vadd.f32 %v1623, %v1642
    %v1646 = vadd.f32 %v1624, %v1643
    %v1647 = vadd.f32 %v1625, %v1644
    %s1648 = sld [smem:[#allocation2 + $0x9d]]
    %v1649 = vstv %s1648
    %v1650 = vmul.f32 %v1649, %v1635
    %v1651 = vmul.f32 %v1649, %v1637
    %v1652 = vmul.f32 %v1649, %v1639
    %v1653 = vadd.f32 %v1631, %v1650
    %v1654 = vadd.f32 %v1632, %v1651
    %v1655 = vadd.f32 %v1633, %v1652
    %1656 = vrot.lane.b32.xlu0 %v1527, 1
    %v1657 = vpop.permute.xlu0 %1656
    %1658 = vrot.lane.b32.xlu0 %v1528, 1
    %v1659 = vpop.permute.xlu0 %1658
    %1660 = vrot.lane.b32.xlu0 %v1529, 1
    %v1661 = vpop.permute.xlu0 %1660
    %s1662 = sld [smem:[#allocation2 + $0x94]]
    %v1663 = vstv %s1662
    %v1664 = vmul.f32 %v1663, %v1657
    %v1665 = vmul.f32 %v1663, %v1659
    %v1666 = vmul.f32 %v1663, %v1661
    %v1667 = vadd.f32 %v1645, %v1664
    %v1668 = vadd.f32 %v1646, %v1665
    %v1669 = vadd.f32 %v1647, %v1666
    %s1670 = sld [smem:[#allocation2 + $0x9e]]
    %v1671 = vstv %s1670
    %v1672 = vmul.f32 %v1671, %v1657
    %v1673 = vmul.f32 %v1671, %v1659
    %v1674 = vmul.f32 %v1671, %v1661
    %v1675 = vadd.f32 %v1653, %v1672
    %v1676 = vadd.f32 %v1654, %v1673
    %v1677 = vadd.f32 %v1655, %v1674
    %s1678 = sld [smem:[#allocation2 + $0x95]]
    %v1679 = vstv %s1678
    %v1680 = vmul.f32 %v1679, %v1527
    %v1681 = vmul.f32 %v1679, %v1528
    %v1682 = vmul.f32 %v1679, %v1529
    %v1683 = vadd.f32 %v1667, %v1680
    %v1684 = vadd.f32 %v1668, %v1681
    %v1685 = vadd.f32 %v1669, %v1682
    %s1686 = sld [smem:[#allocation2 + $0x9f]]
    %v1687 = vstv %s1686
    %v1688 = vmul.f32 %v1687, %v1527
    %v1689 = vmul.f32 %v1687, %v1528
    %v1690 = vmul.f32 %v1687, %v1529
    %v1691 = vadd.f32 %v1675, %v1688
    %v1692 = vadd.f32 %v1676, %v1689
    %v1693 = vadd.f32 %v1677, %v1690
    %1694 = vrot.lane.b32.xlu0 %v1527, 127
    %v1695 = vpop.permute.xlu0 %1694
    %1696 = vrot.lane.b32.xlu0 %v1528, 127
    %v1697 = vpop.permute.xlu0 %1696
    %1698 = vrot.lane.b32.xlu0 %v1529, 127
    %v1699 = vpop.permute.xlu0 %1698
    %s1700 = sld [smem:[#allocation2 + $0x96]]
    %v1701 = vstv %s1700
    %v1702 = vmul.f32 %v1701, %v1695
    %v1703 = vmul.f32 %v1701, %v1697
    %v1704 = vmul.f32 %v1701, %v1699
    %v1705 = vadd.f32 %v1683, %v1702
    %v1706 = vadd.f32 %v1684, %v1703
    %v1707 = vadd.f32 %v1685, %v1704
    %s1708 = sld [smem:[#allocation2 + $0xa0]]
    %v1709 = vstv %s1708
    %v1710 = vmul.f32 %v1709, %v1695
    %v1711 = vmul.f32 %v1709, %v1697
    %v1712 = vmul.f32 %v1709, %v1699
    %v1713 = vadd.f32 %v1691, %v1710
    %v1714 = vadd.f32 %v1692, %v1711
    %v1715 = vadd.f32 %v1693, %v1712
    %1716 = vrot.lane.b32.xlu0 %v1527, 126
    %v1717 = vpop.permute.xlu0 %1716
    %1718 = vrot.lane.b32.xlu0 %v1528, 126
    %v1719 = vpop.permute.xlu0 %1718
    %1720 = vrot.lane.b32.xlu0 %v1529, 126
    %v1721 = vpop.permute.xlu0 %1720
    %s1722 = sld [smem:[#allocation2 + $0x97]]
    %v1723 = vstv %s1722
    %v1724 = vmul.f32 %v1723, %v1717
    %v1725 = vmul.f32 %v1723, %v1719
    %v1726 = vmul.f32 %v1723, %v1721
    %v1727 = vadd.f32 %v1705, %v1724
    %v1728 = vadd.f32 %v1706, %v1725
    %v1729 = vadd.f32 %v1707, %v1726
    %s1730 = sld [smem:[#allocation2 + $0xa1]]
    %v1731 = vstv %s1730
    %v1732 = vmul.f32 %v1731, %v1717
    %v1733 = vmul.f32 %v1731, %v1719
    %v1734 = vmul.f32 %v1731, %v1721
    %v1735 = vadd.f32 %v1713, %v1732
    %v1736 = vadd.f32 %v1714, %v1733
    %v1737 = vadd.f32 %v1715, %v1734
    %s1738 = sld [smem:[#allocation2 + $0xa2]]
    %v1739 = vstv %s1738
    %v1740 = vadd.f32 %v1727, %v1739
    %v1741 = vadd.f32 %v1728, %v1739
    %v1742 = vadd.f32 %v1729, %v1739
    %v1743 = vsel %vm59, %v1740, 0.0
    %v1744 = vsel %vm60, %v1741, 0.0
    %v1745 = vsel %vm61, %v1742, 0.0
    %s1746 = sld [smem:[#allocation2 + $0xa3]]
    %v1747 = vstv %s1746
    %v1748 = vadd.f32 %v1735, %v1747
    %v1749 = vadd.f32 %v1736, %v1747
    %v1750 = vadd.f32 %v1737, %v1747
    %v1751 = vsel %vm59, %v1748, 0.0
    %v1752 = vsel %vm60, %v1749, 0.0
    %v1753 = vsel %vm61, %v1750, 0.0
    %vm1754 = vcmp.ge.f32.partialorder %v1297, 0.0
    %vm1755 = vcmp.ge.f32.partialorder %v1298, 0.0
    %vm1756 = vcmp.ge.f32.partialorder %v1299, 0.0
    %s1757 = sld [smem:[#allocation2 + $0xa4]]
    %v1758 = vstv %s1757
    %v1759 = vmul.f32 %v1758, %v1297
    %v1760 = vmul.f32 %v1758, %v1298
    %v1761 = vmul.f32 %v1758, %v1299
    %v1762 = vsel %vm1754, %v1297, %v1759
    %v1763 = vsel %vm1755, %v1298, %v1760
    %v1764 = vsel %vm1756, %v1299, %v1761
    %vm1765 = vcmp.ge.f32.partialorder %v1305, 0.0
    %vm1766 = vcmp.ge.f32.partialorder %v1306, 0.0
    %vm1767 = vcmp.ge.f32.partialorder %v1307, 0.0
    %s1768 = sld [smem:[#allocation2 + $0xa5]]
    %v1769 = vstv %s1768
    %v1770 = vmul.f32 %v1769, %v1305
    %v1771 = vmul.f32 %v1769, %v1306
    %v1772 = vmul.f32 %v1769, %v1307
    %v1773 = vsel %vm1765, %v1305, %v1770
    %v1774 = vsel %vm1766, %v1306, %v1771
    %v1775 = vsel %vm1767, %v1307, %v1772
    %vm1776 = vcmp.ge.f32.partialorder %v1743, 0.0
    %vm1777 = vcmp.ge.f32.partialorder %v1744, 0.0
    %vm1778 = vcmp.ge.f32.partialorder %v1745, 0.0
    %s1779 = sld [smem:[#allocation2 + $0xa6]]
    %v1780 = vstv %s1779
    %v1781 = vmul.f32 %v1780, %v1743
    %v1782 = vmul.f32 %v1780, %v1744
    %v1783 = vmul.f32 %v1780, %v1745
    %v1784 = vsel %vm1776, %v1743, %v1781
    %v1785 = vsel %vm1777, %v1744, %v1782
    %v1786 = vsel %vm1778, %v1745, %v1783
    %vm1787 = vcmp.ge.f32.partialorder %v1751, 0.0
    %vm1788 = vcmp.ge.f32.partialorder %v1752, 0.0
    %vm1789 = vcmp.ge.f32.partialorder %v1753, 0.0
    %s1790 = sld [smem:[#allocation2 + $0xa7]]
    %v1791 = vstv %s1790
    %v1792 = vmul.f32 %v1791, %v1751
    %v1793 = vmul.f32 %v1791, %v1752
    %v1794 = vmul.f32 %v1791, %v1753
    %v1795 = vsel %vm1787, %v1751, %v1792
    %v1796 = vsel %vm1788, %v1752, %v1793
    %v1797 = vsel %vm1789, %v1753, %v1794
    %s1798 = sld [smem:[#allocation2 + $0xa8]]
    %v1799 = vstv %s1798
    %v1800 = vmul.f32 %v1799, %v1762
    %v1801 = vmul.f32 %v1799, %v1763
    %v1802 = vmul.f32 %v1799, %v1764
    %v1803 = vadd.f32 %v1800, 0.0
    %v1804 = vadd.f32 %v1801, 0.0
    %v1805 = vadd.f32 %v1802, 0.0
    %s1806 = sld [smem:[#allocation2 + $0xac]]
    %v1807 = vstv %s1806
    %v1808 = vmul.f32 %v1807, %v1762
    %v1809 = vmul.f32 %v1807, %v1763
    %v1810 = vmul.f32 %v1807, %v1764
    %v1811 = vadd.f32 %v1808, 0.0
    %v1812 = vadd.f32 %v1809, 0.0
    %v1813 = vadd.f32 %v1810, 0.0
    %s1814 = sld [smem:[#allocation2 + $0xa9]]
    %v1815 = vstv %s1814
    %v1816 = vmul.f32 %v1815, %v1773
    %v1817 = vmul.f32 %v1815, %v1774
    %v1818 = vmul.f32 %v1815, %v1775
    %v1819 = vadd.f32 %v1803, %v1816
    %v1820 = vadd.f32 %v1804, %v1817
    %v1821 = vadd.f32 %v1805, %v1818
    %s1822 = sld [smem:[#allocation2 + $0xad]]
    %v1823 = vstv %s1822
    %v1824 = vmul.f32 %v1823, %v1773
    %v1825 = vmul.f32 %v1823, %v1774
    %v1826 = vmul.f32 %v1823, %v1775
    %v1827 = vadd.f32 %v1811, %v1824
    %v1828 = vadd.f32 %v1812, %v1825
    %v1829 = vadd.f32 %v1813, %v1826
    %s1830 = sld [smem:[#allocation2 + $0xaa]]
    %v1831 = vstv %s1830
    %v1832 = vmul.f32 %v1831, %v1784
    %v1833 = vmul.f32 %v1831, %v1785
    %v1834 = vmul.f32 %v1831, %v1786
    %v1835 = vadd.f32 %v1819, %v1832
    %v1836 = vadd.f32 %v1820, %v1833
    %v1837 = vadd.f32 %v1821, %v1834
    %s1838 = sld [smem:[#allocation2 + $0xae]]
    %v1839 = vstv %s1838
    %v1840 = vmul.f32 %v1839, %v1784
    %v1841 = vmul.f32 %v1839, %v1785
    %v1842 = vmul.f32 %v1839, %v1786
    %v1843 = vadd.f32 %v1827, %v1840
    %v1844 = vadd.f32 %v1828, %v1841
    %v1845 = vadd.f32 %v1829, %v1842
    %s1846 = sld [smem:[#allocation2 + $0xab]]
    %v1847 = vstv %s1846
    %v1848 = vmul.f32 %v1847, %v1795
    %v1849 = vmul.f32 %v1847, %v1796
    %v1850 = vmul.f32 %v1847, %v1797
    %v1851 = vadd.f32 %v1835, %v1848
    %v1852 = vadd.f32 %v1836, %v1849
    %v1853 = vadd.f32 %v1837, %v1850
    %s1854 = sld [smem:[#allocation2 + $0xaf]]
    %v1855 = vstv %s1854
    %v1856 = vmul.f32 %v1855, %v1795
    %v1857 = vmul.f32 %v1855, %v1796
    %v1858 = vmul.f32 %v1855, %v1797
    %v1859 = vadd.f32 %v1843, %v1856
    %v1860 = vadd.f32 %v1844, %v1857
    %v1861 = vadd.f32 %v1845, %v1858
    %s1862 = sld [smem:[#allocation2 + $0xb0]]
    %v1863 = vstv %s1862
    %v1864 = vadd.f32 %v1851, %v1863
    %v1865 = vadd.f32 %v1852, %v1863
    %v1866 = vadd.f32 %v1853, %v1863
    %s1867 = sld [smem:[#allocation2 + $0xb1]]
    %v1868 = vstv %s1867
    %v1869 = vadd.f32 %v1859, %v1868
    %v1870 = vadd.f32 %v1860, %v1868
    %v1871 = vadd.f32 %v1861, %v1868
    %v1872 = vadd.f32 %v1864, %v62
    %v1873 = vadd.f32 %v1865, %v63
    %v1874 = vadd.f32 %v1866, %v64
    %v1875 = vadd.f32 %v1869, %v66
    %v1876 = vadd.f32 %v1870, %v67
    %v1877 = vadd.f32 %v1871, %v68
    %vm1878 = vcmp.ge.f32.partialorder %v1872, 0.0
    %vm1879 = vcmp.ge.f32.partialorder %v1873, 0.0
    %vm1880 = vcmp.ge.f32.partialorder %v1874, 0.0
    %s1881 = sld [smem:[#allocation2 + $0xb2]]
    %v1882 = vstv %s1881
    %v1883 = vmul.f32 %v1882, %v1872
    %v1884 = vmul.f32 %v1882, %v1873
    %v1885 = vmul.f32 %v1882, %v1874
    %v1886 = vsel %vm1878, %v1872, %v1883
    %v1887 = vsel %vm1879, %v1873, %v1884
    %v1888 = vsel %vm1880, %v1874, %v1885
    %vm1889 = vcmp.ge.f32.partialorder %v1875, 0.0
    %vm1890 = vcmp.ge.f32.partialorder %v1876, 0.0
    %vm1891 = vcmp.ge.f32.partialorder %v1877, 0.0
    %s1892 = sld [smem:[#allocation2 + $0xb3]]
    %v1893 = vstv %s1892
    %v1894 = vmul.f32 %v1893, %v1875
    %v1895 = vmul.f32 %v1893, %v1876
    %v1896 = vmul.f32 %v1893, %v1877
    %v1897 = vsel %vm1889, %v1875, %v1894
    %v1898 = vsel %vm1890, %v1876, %v1895
    %v1899 = vsel %vm1891, %v1877, %v1896
    %1900 = vst [vmem:[#allocation7] sm:$0xff] %v1886
    %1901 = vst [vmem:[#allocation7 + $0x8] sm:$0xff] %v1887
    %1902 = vst [vmem:[#allocation7 + $0x10] sm:$0xff] %v1888
    %s1903 = scalar_lea.vmem [#allocation7], 24
    %1904 = vst [vmem:[%s1903] sm:$0xff] %v1897
    %1905 = vst [vmem:[%s1903 + $0x8] sm:$0xff] %v1898
    %1906 = vst [vmem:[%s1903 + $0x10] sm:$0xff] %v1899
    // Predicated region
    $region18: #{tpu_custom_call.1} parent=1 // pred_check
      _
    $region19: #{tpu_custom_call.1} parent=1 // pred_check_branch
      %1908 = sbr.rel (0) target = $region21
    $region20: #{tpu_custom_call.1} parent=1 // pred_region
      %s1910 = ssub.s32 768, 768
      %1911 = vsyncadd [#allocation4], %s1910
      %s1912 = sshll.u32 [#allocation7], 4
      %s1913 = int_to_ptr.vmem [resolvable:$true] %s1912
      %1918 = dma.vmem_to_hbm [thread:$0]  %s1913, 768, %s2, [#allocation4], 128, 128, 8
    $region21: #{tpu_custom_call.1} parent=1 // pred_fallthru
      _
    // Predicated region
    $region22: #{tpu_custom_call.1} parent=1 // pred_check
      _
    $region23: #{tpu_custom_call.1} parent=1 // pred_check_branch
      %1920 = sbr.rel (0) target = $region25
    $region24: #{tpu_custom_call.1} parent=1 // pred_region
      %1921 = dma.done [#allocation4], 768
    $region25: #{tpu_custom_call.1} parent=1 // pred_fallthru
      _
    %1922 = vsyncpa [#allocation3], 1
    %1923 = vsyncpa [#allocation4], 1
    %1924 = vsyncpa [#allocation5], 1

</llo_original>
